<compile_context>
chip_gen: v7x
topology: tpu7x:2x2x1
jax: 0.10.0
libtpu: 0.0.40
codegen_flags: <defaults>
</compile_context>

<pallas_src>
import functools

import jax
import jax.numpy as jnp
from jax import lax
from jax.experimental import pallas as pl
from jax.experimental.pallas import tpu as pltpu


def _ist_kernel(
    # chunked per-step inputs (block index follows the chunk grid axis)
    gi_seq_ref,      # (C, B, 3D) f32 : x @ W_ih + b_ih (+ b_hh halves for r/z)
    mask_ref,        # (C, B, 1)  f32 {0,1}
    # initial state (resident, read at chunk 0 only)
    h0_ref,          # (B, D)  f32
    acc0_ref,        # (B, D)  f32
    # resident parameters (constant index_map -> DMA'd once, stay in VMEM)
    tanh_tokens_ref, # (T, D)   f32   (already pre-tanh'd if requested)
    hist_tiled_ref,  # (B*T, A) att_dt (tanh(tokens) @ W_hist + b_hist, tiled over B)
    w_hh_ref,        # (D, 3D)  bf16
    b_hh_n_ref,      # (1, D)   f32   (n-gate half of b_hh)
    w_ctx_ref,       # (D, A)   bf16
    b_ctx_ref,       # (1, A)   f32
    v_ref,           # (1, A)   att_dt
    # chunked outputs
    emb_seq_ref,     # (C, B, D) f32
    h_seq_ref,       # (C, B, D) f32
    # VMEM scratch carrying the recurrent state across steps / chunks
    h_carry,         # (B, D) f32
    acc_carry,       # (B, D) f32
    *,
    token_dim: int,
    token_count: int,
    att_dim: int,
    batch: int,
    chunk: int,
    tanh_post: bool,
    decay_factor: float,
    bf16_att: bool,
    unroll: bool,
):
    D, T, A, B = token_dim, token_count, att_dim, batch
    cdt = jnp.bfloat16                                   # MXU operand dtype
    att_dt = jnp.bfloat16 if bf16_att else jnp.float32   # attention tanh dtype

    @pl.when(pl.program_id(0) == 0)
    def _():
        h_carry[...] = h0_ref[...]
        acc_carry[...] = acc0_ref[...]

    # Resident operands: load once per chunk, hoisted out of the step loop.
    w_hh = w_hh_ref[...]
    b_hh_n = b_hh_n_ref[...]
    w_ctx = w_ctx_ref[...]
    b_ctx = b_ctx_ref[...]
    hist_tiled = hist_tiled_ref[...]
    v_row = v_ref[...]
    tanh_tokens = tanh_tokens_ref[...]

    def step(t, carry):
        del carry
        gi = gi_seq_ref[t]                         # (B, 3D) f32 (biases folded)
        active = mask_ref[t] > 0.0                 # (B, 1) bool
        h = h_carry[...]                           # (B, D) f32
        acc = acc_carry[...]                       # (B, D) f32

        # ---- GRUCell (PyTorch semantics, gate order r, z, n) ----
        gh = jnp.dot(h.astype(cdt), w_hh, preferred_element_type=jnp.float32)
        r = jax.nn.sigmoid(gi[:, 0:D] + gh[:, 0:D])
        z = jax.nn.sigmoid(gi[:, D:2 * D] + gh[:, D:2 * D])
        n = jnp.tanh(gi[:, 2 * D:3 * D] + r * (gh[:, 2 * D:3 * D] + b_hh_n))
        h_cand = (1.0 - z) * n + z * h             # (B, D) f32

        # ---- additive attention over the precomputed token projections ----
        ctx = jnp.dot(h_cand.astype(cdt), w_ctx,
                      preferred_element_type=jnp.float32) + b_ctx    # (B, A) f32
        # Replicate ctx over the token axis; hist is already pre-tiled.
        ctx_rep = jnp.broadcast_to(ctx.astype(att_dt)[:, None, :],
                                   (B, T, A)).reshape(B * T, A)
        e = jnp.tanh(hist_tiled + ctx_rep)                           # (B*T, A) att_dt
        prod = (e * v_row).astype(jnp.float32)                       # promote for reduce
        scores = jnp.sum(prod.reshape(B, T, A), axis=-1)             # (B, T) f32

        # softmax over the token axis (f32; weights kept f32 to protect carry)
        scores = scores - jnp.max(scores, axis=-1, keepdims=True)
        p = jnp.exp(scores)
        weights = p * pl.reciprocal(jnp.sum(p, axis=-1, keepdims=True),
                                    approx=True)
        emb = jnp.dot(weights, tanh_tokens,
                      preferred_element_type=jnp.float32)            # (B, D) f32

        # ---- accumulator / hidden update (masked select, exact semantics) ----
        out = jnp.tanh(acc) if tanh_post else acc
        emb_out = jnp.where(active, out * decay_factor + emb, out)
        h_out = jnp.where(active, h_cand, h)

        emb_seq_ref[t] = emb_out
        h_seq_ref[t] = h_out
        # carry to the next step (stays in VMEM; never round-trips HBM)
        h_carry[...] = h_out
        acc_carry[...] = emb_out
        return 0

    lax.fori_loop(0, chunk, step, 0, unroll=unroll)


def _pick_chunk(S: int, cap: int = 256) -> int:
    """Largest divisor of S that is <= cap (cap sized for v7x's 64 MiB VMEM)."""
    c = min(S, cap)
    while S % c:
        c -= 1
    return c


def ist_incremental_encoder(features_seq, h0, acc0, mask_seq, params, *,
                            tanh_pre, tanh_post, decay_factor, chunk=None):
    """Runs the module forward for every step in features_seq (S, B, F).

    Carry convention: h_{t+1} = h_out_t, accumulator_{t+1} = embedding_out_t.
    Returns (emb_seq, h_seq), each (S, B, D).
    """
    S, B, F = features_seq.shape
    D = h0.shape[1]
    T = params["tokens"].shape[0]
    A = params["w_ctx"].shape[1]

    if chunk is None:
        chunk = _pick_chunk(S)
    assert S % chunk == 0
    unroll = chunk <= 16          # short fixed trip counts: full LLO visibility

    # bf16 attention tanh only on chips with a bf16 VPU/EUP (v6e / v7x).
    # Inverted match so an unexpected v7x device_kind string cannot silently
    # drop us onto the slower f32 path.
    try:
        kind = jax.devices()[0].device_kind.lower()
    except Exception:  # pragma: no cover
        kind = ""
    bf16_att = not any(v in kind for v in ("v2", "v3", "v4", "v5"))
    att_dt = jnp.bfloat16 if bf16_att else jnp.float32
    cdt = jnp.bfloat16

    # ---- hoisted, recurrence-independent precompute (plain XLA, once) ----
    tokens = params["tokens"]
    tanh_tokens = jnp.tanh(tokens) if tanh_pre else tokens              # (T, D)
    hist_proj = tanh_tokens @ params["w_hist"] + params["b_hist"]       # (T, A)
    hist_tiled = jnp.tile(hist_proj, (B, 1)).astype(att_dt)             # (B*T, A)

    b_hh = params["b_hh"]
    rz_bias = jnp.concatenate(
        [b_hh[:, :2 * D], jnp.zeros((1, D), b_hh.dtype)], axis=1)       # (1, 3D)
    # Hoisted GRU input projection: one big (S*B, F) x (F, 3D) matmul, with
    # b_ih and the r/z halves of b_hh folded in.
    gi_seq = (jnp.einsum('sbf,fg->sbg', features_seq, params["w_ih"])
              + params["b_ih"] + rz_bias).astype(jnp.float32)           # (S, B, 3D)
    b_hh_n = b_hh[:, 2 * D:].astype(jnp.float32)                        # (1, D)

    mask_f = mask_seq.astype(jnp.float32).reshape(S, B, 1)

    kernel = functools.partial(
        _ist_kernel,
        token_dim=D, token_count=T, att_dim=A, batch=B, chunk=chunk,
        tanh_post=tanh_post, decay_factor=float(decay_factor),
        bf16_att=bf16_att, unroll=unroll,
    )

    chunked = lambda last: pl.BlockSpec((chunk, B, last), lambda c: (c, 0, 0))
    const = lambda shape: pl.BlockSpec(shape, lambda c: (0,) * len(shape))

    in_specs = [
        chunked(3 * D),               # gi_seq    (per chunk)
        chunked(1),                   # mask      (per chunk)
        const((B, D)),                # h0         (resident)
        const((B, D)),                # acc0       (resident)
        const((T, D)),                # tanh_tokens
        const((B * T, A)),            # hist_tiled
        const((D, 3 * D)),            # w_hh
        const((1, D)),                # b_hh (n gate)
        const((D, A)),                # w_ctx
        const((1, A)),                # b_ctx
        const((1, A)),                # v
    ]
    out_specs = (
        pl.BlockSpec((chunk, B, D), lambda c: (c, 0, 0)),   # emb_seq (lane-dense D)
        pl.BlockSpec((chunk, B, D), lambda c: (c, 0, 0)),   # h_seq
    )

    emb_seq, h_seq = pl.pallas_call(
        kernel,
        out_shape=(
            jax.ShapeDtypeStruct((S, B, D), jnp.float32),
            jax.ShapeDtypeStruct((S, B, D), jnp.float32),
        ),
        grid=(S // chunk,),
        in_specs=in_specs,
        out_specs=out_specs,
        scratch_shapes=[
            pltpu.VMEM((B, D), jnp.float32),   # h carry
            pltpu.VMEM((B, D), jnp.float32),   # accumulator carry
        ],
        compiler_params=pltpu.CompilerParams(
            dimension_semantics=("arbitrary",),   # time recurrence is serial
        ),
    )(
        gi_seq, mask_f, h0, acc0,
        tanh_tokens.astype(jnp.float32), hist_tiled,
        params["w_hh"].astype(cdt), b_hh_n,
        params["w_ctx"].astype(cdt), params["b_ctx"],
        params["v"].astype(att_dt),
    )
    return emb_seq, h_seq


# ----------------------------- pure-JAX reference -----------------------------

def _ist_reference_step(features, h, accumulator, mask, params, *,
                        tanh_pre, tanh_post, decay_factor):
    """f32 reference for one call of the PyTorch module's forward."""
    D = h.shape[1]
    gi = features @ params["w_ih"] + params["b_ih"]
    gh = h @ params["w_hh"] + params["b_hh"]
    r = jax.nn.sigmoid(gi[:, :D] + gh[:, :D])
    z = jax.nn.sigmoid(gi[:, D:2 * D] + gh[:, D:2 * D])
    n = jnp.tanh(gi[:, 2 * D:] + r * gh[:, 2 * D:])
    h_cand = (1.0 - z) * n + z * h

    tokens = params["tokens"]
    if tanh_pre:
        tokens = jnp.tanh(tokens)
    hist = tokens @ params["w_hist"] + params["b_hist"]
    ctx = h_cand @ params["w_ctx"] + params["b_ctx"]
    e = jnp.tanh(hist[None, :, :] + ctx[:, None, :])
    scores = jnp.sum(e * params["v"][0][None, None, :], axis=-1)
    w = jax.nn.softmax(scores, axis=-1)
    emb = w @ tokens

    out = jnp.tanh(accumulator) if tanh_post else accumulator
    m = mask.astype(jnp.float32)[:, None]
    emb_out = jnp.where(m > 0, out * decay_factor + emb, out)
    h_out = jnp.where(m > 0, h_cand, h)
    return emb_out, h_out


def ist_reference_seq(features_seq, h0, acc0, mask_seq, params, **kw):
    h, acc = h0, acc0
    embs, hs = [], []
    for t in range(features_seq.shape[0]):
        emb, h = _ist_reference_step(features_seq[t], h, acc, mask_seq[t],
                                     params, **kw)
        acc = emb                       # accumulator_{t+1} = embedding_out_t
        embs.append(emb)
        hs.append(h)
    return jnp.stack(embs), jnp.stack(hs)


# ------------------------------------ demo ------------------------------------

if __name__ == "__main__":
    # Module hyper-parameters (ISTIncrementalEncoder.__init__)
    TOKEN_COUNT = 16          # token_count
    TOKEN_DIM = 128           # token_dim (== GRUCell hidden size)
    NUM_FEATURES = 16         # num_features (GRUCell input size)
    ATT_DIM = 128             # att_dim (context_dim == att_dim)
    EXT_IST_TANH_PRE = True
    EXT_IST_TANH_POST = True
    ACCUMULATOR_DECAY = 0.9                     # __init__ arg
    DECAY_FACTOR = 1.0 - ACCUMULATOR_DECAY      # == self.accumulator_decay field

    S = 4   # time steps (fits in one chunk -> a single grid iteration)
    B = 8   # batch (multiple of 8 -> one f32 sublane group)

    key = jax.random.PRNGKey(0)
    ks = jax.random.split(key, 16)

    params = {
        "tokens": jax.random.normal(ks[0], (TOKEN_COUNT, TOKEN_DIM), jnp.float32),
        # GRUCell weights, stored as (in_dim, 3*hidden) - gate order r, z, n
        "w_ih": 0.1 * jax.random.normal(ks[1], (NUM_FEATURES, 3 * TOKEN_DIM), jnp.float32),
        "b_ih": 0.1 * jax.random.normal(ks[2], (1, 3 * TOKEN_DIM), jnp.float32),
        "w_hh": 0.1 * jax.random.normal(ks[3], (TOKEN_DIM, 3 * TOKEN_DIM), jnp.float32),
        "b_hh": 0.1 * jax.random.normal(ks[4], (1, 3 * TOKEN_DIM), jnp.float32),
        # Additive attention parameters
        "w_hist": 0.1 * jax.random.normal(ks[5], (TOKEN_DIM, ATT_DIM), jnp.float32),
        "b_hist": 0.1 * jax.random.normal(ks[6], (1, ATT_DIM), jnp.float32),
        "w_ctx": 0.1 * jax.random.normal(ks[7], (TOKEN_DIM, ATT_DIM), jnp.float32),
        "b_ctx": 0.1 * jax.random.normal(ks[8], (1, ATT_DIM), jnp.float32),
        "v": 0.1 * jax.random.normal(ks[9], (1, ATT_DIM), jnp.float32),
    }

    features_seq = jax.random.normal(ks[10], (S, B, NUM_FEATURES), jnp.float32)
    h0 = 0.5 * jax.random.normal(ks[11], (B, TOKEN_DIM), jnp.float32)
    acc0 = 0.5 * jax.random.normal(ks[12], (B, TOKEN_DIM), jnp.float32)
    mask_seq = (jax.random.uniform(ks[13], (S, B)) > 0.3)

    emb_seq, h_seq = ist_incremental_encoder(
        features_seq, h0, acc0, mask_seq, params,
        tanh_pre=EXT_IST_TANH_PRE, tanh_post=EXT_IST_TANH_POST,
        decay_factor=DECAY_FACTOR,
    )
    jax.block_until_ready((emb_seq, h_seq))

    emb_ref, h_ref = ist_reference_seq(
        features_seq, h0, acc0, mask_seq, params,
        tanh_pre=EXT_IST_TANH_PRE, tanh_post=EXT_IST_TANH_POST,
        decay_factor=DECAY_FACTOR,
    )

    assert emb_seq.shape == (S, B, TOKEN_DIM) and h_seq.shape == (S, B, TOKEN_DIM)
    # Tolerance reflects intentional bf16 MXU operands (and the bf16 attention
    # path on v6e/v7x) inside the kernel vs. the full-f32 reference,
    # accumulated over S recurrent steps; observed errors are well below this.
    assert jnp.allclose(emb_seq, emb_ref, atol=3e-2, rtol=3e-2)
    assert jnp.allclose(h_seq, h_ref, atol=3e-2, rtol=3e-2)

    print("KERNEL_OK")
</pallas_src>

<mosaic_0001>
module attributes {stable_mosaic.version = 11 : i64} {
  func.func @_ist_kernel(%arg0: i32, %arg1: memref<4x8x384xf32, #tpu.memory_space<vmem>>, %arg2: memref<4x8x1xf32, #tpu.memory_space<vmem>>, %arg3: memref<8x128xf32, #tpu.memory_space<vmem>>, %arg4: memref<8x128xf32, #tpu.memory_space<vmem>>, %arg5: memref<16x128xf32, #tpu.memory_space<vmem>>, %arg6: memref<128x128xbf16, #tpu.memory_space<vmem>>, %arg7: memref<128x384xbf16, #tpu.memory_space<vmem>>, %arg8: memref<1x128xf32, #tpu.memory_space<vmem>>, %arg9: memref<128x128xbf16, #tpu.memory_space<vmem>>, %arg10: memref<1x128xf32, #tpu.memory_space<vmem>>, %arg11: memref<1x128xbf16, #tpu.memory_space<vmem>>, %arg12: memref<4x8x128xf32, #tpu.memory_space<vmem>>, %arg13: memref<4x8x128xf32, #tpu.memory_space<vmem>>, %arg14: memref<8x128xf32, #tpu.memory_space<vmem>>, %arg15: memref<8x128xf32, #tpu.memory_space<vmem>>) attributes {dimension_semantics = [#tpu.dimension_semantics<arbitrary>], iteration_bounds = array<i64: 1>, scalar_prefetch = 0 : i64, scratch_operands = 2 : i64, tpu.core_type = #tpu.core_type<tc>, window_params = [{transform_indices = @transform_0, window_bounds = array<i64: 4, 8, 384>}, {transform_indices = @transform_1, window_bounds = array<i64: 4, 8, 1>}, {pipeline_mode = #tpu.pipeline_mode<synchronous>, transform_indices = @transform_2, window_bounds = array<i64: 8, 128>}, {pipeline_mode = #tpu.pipeline_mode<synchronous>, transform_indices = @transform_3, window_bounds = array<i64: 8, 128>}, {pipeline_mode = #tpu.pipeline_mode<synchronous>, transform_indices = @transform_4, window_bounds = array<i64: 16, 128>}, {pipeline_mode = #tpu.pipeline_mode<synchronous>, transform_indices = @transform_5, window_bounds = array<i64: 128, 128>}, {pipeline_mode = #tpu.pipeline_mode<synchronous>, transform_indices = @transform_6, window_bounds = array<i64: 128, 384>}, {pipeline_mode = #tpu.pipeline_mode<synchronous>, transform_indices = @transform_7, window_bounds = array<i64: 1, 128>}, {pipeline_mode = #tpu.pipeline_mode<synchronous>, transform_indices = @transform_8, window_bounds = array<i64: 128, 128>}, {pipeline_mode = #tpu.pipeline_mode<synchronous>, transform_indices = @transform_9, window_bounds = array<i64: 1, 128>}, {pipeline_mode = #tpu.pipeline_mode<synchronous>, transform_indices = @transform_10, window_bounds = array<i64: 1, 128>}, {transform_indices = @transform_11, window_bounds = array<i64: 4, 8, 128>}, {transform_indices = @transform_12, window_bounds = array<i64: 4, 8, 128>}]} {
    %c0_i32 = arith.constant 0 : i32
    %0 = arith.cmpi eq, %arg0, %c0_i32 : i32
    %1 = arith.extui %0 : i1 to i32
    %c0_i32_0 = arith.constant 0 : i32
    %2 = arith.cmpi ne, %1, %c0_i32_0 : i32
    scf.if %2 {
      %c0_122 = arith.constant 0 : index
      %c0_123 = arith.constant 0 : index
      %358 = vector.load %arg3[%c0_122, %c0_123] : memref<8x128xf32, #tpu.memory_space<vmem>>, vector<8x128xf32>
      %c0_124 = arith.constant 0 : index
      %c0_125 = arith.constant 0 : index
      %359 = vector.load %arg14[%c0_124, %c0_125] : memref<8x128xf32, #tpu.memory_space<vmem>>, vector<8x128xf32>
      tpu.vector_store %arg14[%c0_124, %c0_125], %358 {strides = array<i32>} : memref<8x128xf32, #tpu.memory_space<vmem>>, vector<8x128xf32>,
      %c0_126 = arith.constant 0 : index
      %c0_127 = arith.constant 0 : index
      %360 = vector.load %arg4[%c0_126, %c0_127] : memref<8x128xf32, #tpu.memory_space<vmem>>, vector<8x128xf32>
      %c0_128 = arith.constant 0 : index
      %c0_129 = arith.constant 0 : index
      %361 = vector.load %arg15[%c0_128, %c0_129] : memref<8x128xf32, #tpu.memory_space<vmem>>, vector<8x128xf32>
      tpu.vector_store %arg15[%c0_128, %c0_129], %360 {strides = array<i32>} : memref<8x128xf32, #tpu.memory_space<vmem>>, vector<8x128xf32>,
    } else {
    }
    %c0 = arith.constant 0 : index
    %c0_1 = arith.constant 0 : index
    %3 = vector.load %arg7[%c0, %c0_1] : memref<128x384xbf16, #tpu.memory_space<vmem>>, vector<128x384xbf16>
    %c0_2 = arith.constant 0 : index
    %c0_3 = arith.constant 0 : index
    %4 = vector.load %arg8[%c0_2, %c0_3] : memref<1x128xf32, #tpu.memory_space<vmem>>, vector<1x128xf32>
    %c0_4 = arith.constant 0 : index
    %c0_5 = arith.constant 0 : index
    %5 = vector.load %arg9[%c0_4, %c0_5] : memref<128x128xbf16, #tpu.memory_space<vmem>>, vector<128x128xbf16>
    %c0_6 = arith.constant 0 : index
    %c0_7 = arith.constant 0 : index
    %6 = vector.load %arg10[%c0_6, %c0_7] : memref<1x128xf32, #tpu.memory_space<vmem>>, vector<1x128xf32>
    %c0_8 = arith.constant 0 : index
    %c0_9 = arith.constant 0 : index
    %7 = vector.load %arg6[%c0_8, %c0_9] : memref<128x128xbf16, #tpu.memory_space<vmem>>, vector<128x128xbf16>
    %c0_10 = arith.constant 0 : index
    %c0_11 = arith.constant 0 : index
    %8 = vector.load %arg11[%c0_10, %c0_11] : memref<1x128xbf16, #tpu.memory_space<vmem>>, vector<1x128xbf16>
    %c0_12 = arith.constant 0 : index
    %c0_13 = arith.constant 0 : index
    %9 = vector.load %arg5[%c0_12, %c0_13] : memref<16x128xf32, #tpu.memory_space<vmem>>, vector<16x128xf32>
    %c0_i32_14 = arith.constant 0 : i32
    %10 = arith.index_cast %c0_i32_14 : i32 to index
    %c0_15 = arith.constant 0 : index
    %c0_16 = arith.constant 0 : index
    %11 = vector.load %arg1[%10, %c0_15, %c0_16] : memref<4x8x384xf32, #tpu.memory_space<vmem>>, vector<1x8x384xf32>
    %12 = vector.shape_cast %11 : vector<1x8x384xf32> to vector<8x384xf32>
    %13 = arith.index_cast %c0_i32_14 : i32 to index
    %c0_17 = arith.constant 0 : index
    %c0_18 = arith.constant 0 : index
    %14 = vector.load %arg2[%13, %c0_17, %c0_18] : memref<4x8x1xf32, #tpu.memory_space<vmem>>, vector<1x8x1xf32>
    %15 = vector.shape_cast %14 : vector<1x8x1xf32> to vector<8x1xf32>
    %cst = arith.constant 0.000000e+00 : f32
    %16 = vector.broadcast %cst : f32 to vector<8x1xf32>
    %17 = arith.cmpf ogt, %15, %16 : vector<8x1xf32>
    %c0_19 = arith.constant 0 : index
    %c0_20 = arith.constant 0 : index
    %18 = vector.load %arg14[%c0_19, %c0_20] : memref<8x128xf32, #tpu.memory_space<vmem>>, vector<8x128xf32>
    %c0_21 = arith.constant 0 : index
    %c0_22 = arith.constant 0 : index
    %19 = vector.load %arg15[%c0_21, %c0_22] : memref<8x128xf32, #tpu.memory_space<vmem>>, vector<8x128xf32>
    %20 = arith.truncf %18 : vector<8x128xf32> to vector<8x128xbf16>
    %cst_23 = arith.constant dense<0.000000e+00> : vector<8x384xf32>
    %21 = tpu.matmul %20, %3, %cst_23 {dimension_numbers = #tpu.dot_dimension_numbers<[1], [0], [0], [1], [0, 0, 1, 1], [], []>} : vector<8x128xbf16>, vector<128x384xbf16>, vector<8x384xf32> -> vector<8x384xf32>
    %22 = vector.extract_strided_slice %12 {offsets = [0, 0], sizes = [8, 128], strides = [1, 1]} : vector<8x384xf32> to vector<8x128xf32>
    %23 = vector.extract_strided_slice %21 {offsets = [0, 0], sizes = [8, 128], strides = [1, 1]} : vector<8x384xf32> to vector<8x128xf32>
    %24 = arith.addf %22, %23 : vector<8x128xf32>
    %25 = arith.negf %24 : vector<8x128xf32>
    %26 = math.exp %25 : vector<8x128xf32>
    %cst_24 = arith.constant 1.000000e+00 : f32
    %27 = vector.broadcast %cst_24 : f32 to vector<8x128xf32>
    %28 = arith.addf %27, %26 : vector<8x128xf32>
    %29 = arith.divf %27, %28 : vector<8x128xf32>
    %30 = vector.extract_strided_slice %12 {offsets = [0, 128], sizes = [8, 128], strides = [1, 1]} : vector<8x384xf32> to vector<8x128xf32>
    %31 = vector.extract_strided_slice %21 {offsets = [0, 128], sizes = [8, 128], strides = [1, 1]} : vector<8x384xf32> to vector<8x128xf32>
    %32 = arith.addf %30, %31 : vector<8x128xf32>
    %33 = arith.negf %32 : vector<8x128xf32>
    %34 = math.exp %33 : vector<8x128xf32>
    %cst_25 = arith.constant 1.000000e+00 : f32
    %35 = vector.broadcast %cst_25 : f32 to vector<8x128xf32>
    %36 = arith.addf %35, %34 : vector<8x128xf32>
    %37 = arith.divf %35, %36 : vector<8x128xf32>
    %38 = vector.extract_strided_slice %12 {offsets = [0, 256], sizes = [8, 128], strides = [1, 1]} : vector<8x384xf32> to vector<8x128xf32>
    %39 = vector.extract_strided_slice %21 {offsets = [0, 256], sizes = [8, 128], strides = [1, 1]} : vector<8x384xf32> to vector<8x128xf32>
    %40 = vector.broadcast %4 : vector<1x128xf32> to vector<8x128xf32>
    %41 = arith.addf %39, %40 : vector<8x128xf32>
    %42 = arith.mulf %29, %41 : vector<8x128xf32>
    %43 = arith.addf %38, %42 : vector<8x128xf32>
    %44 = math.tanh %43 : vector<8x128xf32>
    %cst_26 = arith.constant 1.000000e+00 : f32
    %45 = vector.broadcast %cst_26 : f32 to vector<8x128xf32>
    %46 = arith.subf %45, %37 : vector<8x128xf32>
    %47 = arith.mulf %46, %44 : vector<8x128xf32>
    %48 = arith.mulf %37, %18 : vector<8x128xf32>
    %49 = arith.addf %47, %48 : vector<8x128xf32>
    %50 = arith.truncf %49 : vector<8x128xf32> to vector<8x128xbf16>
    %cst_27 = arith.constant dense<0.000000e+00> : vector<8x128xf32>
    %51 = tpu.matmul %50, %5, %cst_27 {dimension_numbers = #tpu.dot_dimension_numbers<[1], [0], [0], [1], [0, 0, 1, 1], [], []>} : vector<8x128xbf16>, vector<128x128xbf16>, vector<8x128xf32> -> vector<8x128xf32>
    %52 = vector.broadcast %6 : vector<1x128xf32> to vector<8x128xf32>
    %53 = arith.addf %51, %52 : vector<8x128xf32>
    %54 = arith.truncf %53 : vector<8x128xf32> to vector<8x128xbf16>
    %55 = vector.shape_cast %54 : vector<8x128xbf16> to vector<8x1x128xbf16>
    %56 = vector.shape_cast %55 : vector<8x1x128xbf16> to vector<8x1x128xbf16>
    %57 = vector.broadcast %56 : vector<8x1x128xbf16> to vector<8x16x128xbf16>
    %58 = vector.shape_cast %57 : vector<8x16x128xbf16> to vector<128x128xbf16>
    %59 = arith.addf %7, %58 : vector<128x128xbf16>
    %60 = math.tanh %59 : vector<128x128xbf16>
    %61 = vector.broadcast %8 : vector<1x128xbf16> to vector<128x128xbf16>
    %62 = arith.mulf %60, %61 : vector<128x128xbf16>
    %63 = arith.extf %62 : vector<128x128xbf16> to vector<128x128xf32>
    %64 = vector.shape_cast %63 : vector<128x128xf32> to vector<8x16x128xf32>
    %cst_28 = arith.constant dense<0.000000e+00> : vector<8x16xf32>
    %65 = vector.multi_reduction <add>, %64, %cst_28 [2] : vector<8x16x128xf32> to vector<8x16xf32>
    %cst_29 = arith.constant dense<0xFF800000> : vector<8xf32>
    %66 = vector.multi_reduction <maximumf>, %65, %cst_29 [1] : vector<8x16xf32> to vector<8xf32>
    %67 = vector.shape_cast %66 : vector<8xf32> to vector<8x1xf32>
    %68 = vector.broadcast %67 : vector<8x1xf32> to vector<8x16xf32>
    %69 = arith.subf %65, %68 : vector<8x16xf32>
    %70 = math.exp %69 : vector<8x16xf32>
    %cst_30 = arith.constant dense<0.000000e+00> : vector<8xf32>
    %71 = vector.multi_reduction <add>, %70, %cst_30 [1] : vector<8x16xf32> to vector<8xf32>
    %72 = vector.shape_cast %71 : vector<8xf32> to vector<8x1xf32>
    %73 = tpu.reciprocal %72 {approx = true} : vector<8x1xf32> -> vector<8x1xf32>
    %74 = vector.broadcast %73 : vector<8x1xf32> to vector<8x16xf32>
    %75 = arith.mulf %70, %74 : vector<8x16xf32>
    %cst_31 = arith.constant dense<0.000000e+00> : vector<8x128xf32>
    %76 = tpu.matmul %75, %9, %cst_31 {dimension_numbers = #tpu.dot_dimension_numbers<[1], [0], [0], [1], [0, 0, 1, 1], [], []>} : vector<8x16xf32>, vector<16x128xf32>, vector<8x128xf32> -> vector<8x128xf32>
    %77 = math.tanh %19 : vector<8x128xf32>
    %cst_32 = arith.constant 1.000000e-01 : f32
    %78 = vector.broadcast %cst_32 : f32 to vector<8x128xf32>
    %79 = arith.mulf %77, %78 : vector<8x128xf32>
    %80 = arith.addf %79, %76 : vector<8x128xf32>
    %81 = vector.shape_cast %17 : vector<8x1xi1> to vector<8x1xi1>
    %82 = vector.broadcast %81 : vector<8x1xi1> to vector<8x128xi1>
    %83 = arith.select %82, %80, %77 : vector<8x128xi1>, vector<8x128xf32>
    %84 = vector.shape_cast %17 : vector<8x1xi1> to vector<8x1xi1>
    %85 = vector.broadcast %84 : vector<8x1xi1> to vector<8x128xi1>
    %86 = arith.select %85, %49, %18 : vector<8x128xi1>, vector<8x128xf32>
    %87 = arith.index_cast %c0_i32_14 : i32 to index
    %c0_33 = arith.constant 0 : index
    %c0_34 = arith.constant 0 : index
    %88 = vector.load %arg12[%87, %c0_33, %c0_34] : memref<4x8x128xf32, #tpu.memory_space<vmem>>, vector<1x8x128xf32>
    %89 = vector.shape_cast %88 : vector<1x8x128xf32> to vector<8x128xf32>
    %90 = vector.shape_cast %83 : vector<8x128xf32> to vector<1x8x128xf32>
    tpu.vector_store %arg12[%87, %c0_33, %c0_34], %90 {strides = array<i32>} : memref<4x8x128xf32, #tpu.memory_space<vmem>>, vector<1x8x128xf32>,
    %91 = arith.index_cast %c0_i32_14 : i32 to index
    %c0_35 = arith.constant 0 : index
    %c0_36 = arith.constant 0 : index
    %92 = vector.load %arg13[%91, %c0_35, %c0_36] : memref<4x8x128xf32, #tpu.memory_space<vmem>>, vector<1x8x128xf32>
    %93 = vector.shape_cast %92 : vector<1x8x128xf32> to vector<8x128xf32>
    %94 = vector.shape_cast %86 : vector<8x128xf32> to vector<1x8x128xf32>
    tpu.vector_store %arg13[%91, %c0_35, %c0_36], %94 {strides = array<i32>} : memref<4x8x128xf32, #tpu.memory_space<vmem>>, vector<1x8x128xf32>,
    %c0_37 = arith.constant 0 : index
    %c0_38 = arith.constant 0 : index
    %95 = vector.load %arg14[%c0_37, %c0_38] : memref<8x128xf32, #tpu.memory_space<vmem>>, vector<8x128xf32>
    tpu.vector_store %arg14[%c0_37, %c0_38], %86 {strides = array<i32>} : memref<8x128xf32, #tpu.memory_space<vmem>>, vector<8x128xf32>,
    %c0_39 = arith.constant 0 : index
    %c0_40 = arith.constant 0 : index
    %96 = vector.load %arg15[%c0_39, %c0_40] : memref<8x128xf32, #tpu.memory_space<vmem>>, vector<8x128xf32>
    tpu.vector_store %arg15[%c0_39, %c0_40], %83 {strides = array<i32>} : memref<8x128xf32, #tpu.memory_space<vmem>>, vector<8x128xf32>,
    %c1_i32 = arith.constant 1 : i32
    %97 = arith.index_cast %c1_i32 : i32 to index
    %c0_41 = arith.constant 0 : index
    %c0_42 = arith.constant 0 : index
    %98 = vector.load %arg1[%97, %c0_41, %c0_42] : memref<4x8x384xf32, #tpu.memory_space<vmem>>, vector<1x8x384xf32>
    %99 = vector.shape_cast %98 : vector<1x8x384xf32> to vector<8x384xf32>
    %100 = arith.index_cast %c1_i32 : i32 to index
    %c0_43 = arith.constant 0 : index
    %c0_44 = arith.constant 0 : index
    %101 = vector.load %arg2[%100, %c0_43, %c0_44] : memref<4x8x1xf32, #tpu.memory_space<vmem>>, vector<1x8x1xf32>
    %102 = vector.shape_cast %101 : vector<1x8x1xf32> to vector<8x1xf32>
    %cst_45 = arith.constant 0.000000e+00 : f32
    %103 = vector.broadcast %cst_45 : f32 to vector<8x1xf32>
    %104 = arith.cmpf ogt, %102, %103 : vector<8x1xf32>
    %c0_46 = arith.constant 0 : index
    %c0_47 = arith.constant 0 : index
    %105 = vector.load %arg14[%c0_46, %c0_47] : memref<8x128xf32, #tpu.memory_space<vmem>>, vector<8x128xf32>
    %c0_48 = arith.constant 0 : index
    %c0_49 = arith.constant 0 : index
    %106 = vector.load %arg15[%c0_48, %c0_49] : memref<8x128xf32, #tpu.memory_space<vmem>>, vector<8x128xf32>
    %107 = arith.truncf %105 : vector<8x128xf32> to vector<8x128xbf16>
    %cst_50 = arith.constant dense<0.000000e+00> : vector<8x384xf32>
    %108 = tpu.matmul %107, %3, %cst_50 {dimension_numbers = #tpu.dot_dimension_numbers<[1], [0], [0], [1], [0, 0, 1, 1], [], []>} : vector<8x128xbf16>, vector<128x384xbf16>, vector<8x384xf32> -> vector<8x384xf32>
    %109 = vector.extract_strided_slice %99 {offsets = [0, 0], sizes = [8, 128], strides = [1, 1]} : vector<8x384xf32> to vector<8x128xf32>
    %110 = vector.extract_strided_slice %108 {offsets = [0, 0], sizes = [8, 128], strides = [1, 1]} : vector<8x384xf32> to vector<8x128xf32>
    %111 = arith.addf %109, %110 : vector<8x128xf32>
    %112 = arith.negf %111 : vector<8x128xf32>
    %113 = math.exp %112 : vector<8x128xf32>
    %cst_51 = arith.constant 1.000000e+00 : f32
    %114 = vector.broadcast %cst_51 : f32 to vector<8x128xf32>
    %115 = arith.addf %114, %113 : vector<8x128xf32>
    %116 = arith.divf %114, %115 : vector<8x128xf32>
    %117 = vector.extract_strided_slice %99 {offsets = [0, 128], sizes = [8, 128], strides = [1, 1]} : vector<8x384xf32> to vector<8x128xf32>
    %118 = vector.extract_strided_slice %108 {offsets = [0, 128], sizes = [8, 128], strides = [1, 1]} : vector<8x384xf32> to vector<8x128xf32>
    %119 = arith.addf %117, %118 : vector<8x128xf32>
    %120 = arith.negf %119 : vector<8x128xf32>
    %121 = math.exp %120 : vector<8x128xf32>
    %cst_52 = arith.constant 1.000000e+00 : f32
    %122 = vector.broadcast %cst_52 : f32 to vector<8x128xf32>
    %123 = arith.addf %122, %121 : vector<8x128xf32>
    %124 = arith.divf %122, %123 : vector<8x128xf32>
    %125 = vector.extract_strided_slice %99 {offsets = [0, 256], sizes = [8, 128], strides = [1, 1]} : vector<8x384xf32> to vector<8x128xf32>
    %126 = vector.extract_strided_slice %108 {offsets = [0, 256], sizes = [8, 128], strides = [1, 1]} : vector<8x384xf32> to vector<8x128xf32>
    %127 = vector.broadcast %4 : vector<1x128xf32> to vector<8x128xf32>
    %128 = arith.addf %126, %127 : vector<8x128xf32>
    %129 = arith.mulf %116, %128 : vector<8x128xf32>
    %130 = arith.addf %125, %129 : vector<8x128xf32>
    %131 = math.tanh %130 : vector<8x128xf32>
    %cst_53 = arith.constant 1.000000e+00 : f32
    %132 = vector.broadcast %cst_53 : f32 to vector<8x128xf32>
    %133 = arith.subf %132, %124 : vector<8x128xf32>
    %134 = arith.mulf %133, %131 : vector<8x128xf32>
    %135 = arith.mulf %124, %105 : vector<8x128xf32>
    %136 = arith.addf %134, %135 : vector<8x128xf32>
    %137 = arith.truncf %136 : vector<8x128xf32> to vector<8x128xbf16>
    %cst_54 = arith.constant dense<0.000000e+00> : vector<8x128xf32>
    %138 = tpu.matmul %137, %5, %cst_54 {dimension_numbers = #tpu.dot_dimension_numbers<[1], [0], [0], [1], [0, 0, 1, 1], [], []>} : vector<8x128xbf16>, vector<128x128xbf16>, vector<8x128xf32> -> vector<8x128xf32>
    %139 = vector.broadcast %6 : vector<1x128xf32> to vector<8x128xf32>
    %140 = arith.addf %138, %139 : vector<8x128xf32>
    %141 = arith.truncf %140 : vector<8x128xf32> to vector<8x128xbf16>
    %142 = vector.shape_cast %141 : vector<8x128xbf16> to vector<8x1x128xbf16>
    %143 = vector.shape_cast %142 : vector<8x1x128xbf16> to vector<8x1x128xbf16>
    %144 = vector.broadcast %143 : vector<8x1x128xbf16> to vector<8x16x128xbf16>
    %145 = vector.shape_cast %144 : vector<8x16x128xbf16> to vector<128x128xbf16>
    %146 = arith.addf %7, %145 : vector<128x128xbf16>
    %147 = math.tanh %146 : vector<128x128xbf16>
    %148 = vector.broadcast %8 : vector<1x128xbf16> to vector<128x128xbf16>
    %149 = arith.mulf %147, %148 : vector<128x128xbf16>
    %150 = arith.extf %149 : vector<128x128xbf16> to vector<128x128xf32>
    %151 = vector.shape_cast %150 : vector<128x128xf32> to vector<8x16x128xf32>
    %cst_55 = arith.constant dense<0.000000e+00> : vector<8x16xf32>
    %152 = vector.multi_reduction <add>, %151, %cst_55 [2] : vector<8x16x128xf32> to vector<8x16xf32>
    %cst_56 = arith.constant dense<0xFF800000> : vector<8xf32>
    %153 = vector.multi_reduction <maximumf>, %152, %cst_56 [1] : vector<8x16xf32> to vector<8xf32>
    %154 = vector.shape_cast %153 : vector<8xf32> to vector<8x1xf32>
    %155 = vector.broadcast %154 : vector<8x1xf32> to vector<8x16xf32>
    %156 = arith.subf %152, %155 : vector<8x16xf32>
    %157 = math.exp %156 : vector<8x16xf32>
    %cst_57 = arith.constant dense<0.000000e+00> : vector<8xf32>
    %158 = vector.multi_reduction <add>, %157, %cst_57 [1] : vector<8x16xf32> to vector<8xf32>
    %159 = vector.shape_cast %158 : vector<8xf32> to vector<8x1xf32>
    %160 = tpu.reciprocal %159 {approx = true} : vector<8x1xf32> -> vector<8x1xf32>
    %161 = vector.broadcast %160 : vector<8x1xf32> to vector<8x16xf32>
    %162 = arith.mulf %157, %161 : vector<8x16xf32>
    %cst_58 = arith.constant dense<0.000000e+00> : vector<8x128xf32>
    %163 = tpu.matmul %162, %9, %cst_58 {dimension_numbers = #tpu.dot_dimension_numbers<[1], [0], [0], [1], [0, 0, 1, 1], [], []>} : vector<8x16xf32>, vector<16x128xf32>, vector<8x128xf32> -> vector<8x128xf32>
    %164 = math.tanh %106 : vector<8x128xf32>
    %cst_59 = arith.constant 1.000000e-01 : f32
    %165 = vector.broadcast %cst_59 : f32 to vector<8x128xf32>
    %166 = arith.mulf %164, %165 : vector<8x128xf32>
    %167 = arith.addf %166, %163 : vector<8x128xf32>
    %168 = vector.shape_cast %104 : vector<8x1xi1> to vector<8x1xi1>
    %169 = vector.broadcast %168 : vector<8x1xi1> to vector<8x128xi1>
    %170 = arith.select %169, %167, %164 : vector<8x128xi1>, vector<8x128xf32>
    %171 = vector.shape_cast %104 : vector<8x1xi1> to vector<8x1xi1>
    %172 = vector.broadcast %171 : vector<8x1xi1> to vector<8x128xi1>
    %173 = arith.select %172, %136, %105 : vector<8x128xi1>, vector<8x128xf32>
    %174 = arith.index_cast %c1_i32 : i32 to index
    %c0_60 = arith.constant 0 : index
    %c0_61 = arith.constant 0 : index
    %175 = vector.load %arg12[%174, %c0_60, %c0_61] : memref<4x8x128xf32, #tpu.memory_space<vmem>>, vector<1x8x128xf32>
    %176 = vector.shape_cast %175 : vector<1x8x128xf32> to vector<8x128xf32>
    %177 = vector.shape_cast %170 : vector<8x128xf32> to vector<1x8x128xf32>
    tpu.vector_store %arg12[%174, %c0_60, %c0_61], %177 {strides = array<i32>} : memref<4x8x128xf32, #tpu.memory_space<vmem>>, vector<1x8x128xf32>,
    %178 = arith.index_cast %c1_i32 : i32 to index
    %c0_62 = arith.constant 0 : index
    %c0_63 = arith.constant 0 : index
    %179 = vector.load %arg13[%178, %c0_62, %c0_63] : memref<4x8x128xf32, #tpu.memory_space<vmem>>, vector<1x8x128xf32>
    %180 = vector.shape_cast %179 : vector<1x8x128xf32> to vector<8x128xf32>
    %181 = vector.shape_cast %173 : vector<8x128xf32> to vector<1x8x128xf32>
    tpu.vector_store %arg13[%178, %c0_62, %c0_63], %181 {strides = array<i32>} : memref<4x8x128xf32, #tpu.memory_space<vmem>>, vector<1x8x128xf32>,
    %c0_64 = arith.constant 0 : index
    %c0_65 = arith.constant 0 : index
    %182 = vector.load %arg14[%c0_64, %c0_65] : memref<8x128xf32, #tpu.memory_space<vmem>>, vector<8x128xf32>
    tpu.vector_store %arg14[%c0_64, %c0_65], %173 {strides = array<i32>} : memref<8x128xf32, #tpu.memory_space<vmem>>, vector<8x128xf32>,
    %c0_66 = arith.constant 0 : index
    %c0_67 = arith.constant 0 : index
    %183 = vector.load %arg15[%c0_66, %c0_67] : memref<8x128xf32, #tpu.memory_space<vmem>>, vector<8x128xf32>
    tpu.vector_store %arg15[%c0_66, %c0_67], %170 {strides = array<i32>} : memref<8x128xf32, #tpu.memory_space<vmem>>, vector<8x128xf32>,
    %c2_i32 = arith.constant 2 : i32
    %184 = arith.index_cast %c2_i32 : i32 to index
    %c0_68 = arith.constant 0 : index
    %c0_69 = arith.constant 0 : index
    %185 = vector.load %arg1[%184, %c0_68, %c0_69] : memref<4x8x384xf32, #tpu.memory_space<vmem>>, vector<1x8x384xf32>
    %186 = vector.shape_cast %185 : vector<1x8x384xf32> to vector<8x384xf32>
    %187 = arith.index_cast %c2_i32 : i32 to index
    %c0_70 = arith.constant 0 : index
    %c0_71 = arith.constant 0 : index
    %188 = vector.load %arg2[%187, %c0_70, %c0_71] : memref<4x8x1xf32, #tpu.memory_space<vmem>>, vector<1x8x1xf32>
    %189 = vector.shape_cast %188 : vector<1x8x1xf32> to vector<8x1xf32>
    %cst_72 = arith.constant 0.000000e+00 : f32
    %190 = vector.broadcast %cst_72 : f32 to vector<8x1xf32>
    %191 = arith.cmpf ogt, %189, %190 : vector<8x1xf32>
    %c0_73 = arith.constant 0 : index
    %c0_74 = arith.constant 0 : index
    %192 = vector.load %arg14[%c0_73, %c0_74] : memref<8x128xf32, #tpu.memory_space<vmem>>, vector<8x128xf32>
    %c0_75 = arith.constant 0 : index
    %c0_76 = arith.constant 0 : index
    %193 = vector.load %arg15[%c0_75, %c0_76] : memref<8x128xf32, #tpu.memory_space<vmem>>, vector<8x128xf32>
    %194 = arith.truncf %192 : vector<8x128xf32> to vector<8x128xbf16>
    %cst_77 = arith.constant dense<0.000000e+00> : vector<8x384xf32>
    %195 = tpu.matmul %194, %3, %cst_77 {dimension_numbers = #tpu.dot_dimension_numbers<[1], [0], [0], [1], [0, 0, 1, 1], [], []>} : vector<8x128xbf16>, vector<128x384xbf16>, vector<8x384xf32> -> vector<8x384xf32>
    %196 = vector.extract_strided_slice %186 {offsets = [0, 0], sizes = [8, 128], strides = [1, 1]} : vector<8x384xf32> to vector<8x128xf32>
    %197 = vector.extract_strided_slice %195 {offsets = [0, 0], sizes = [8, 128], strides = [1, 1]} : vector<8x384xf32> to vector<8x128xf32>
    %198 = arith.addf %196, %197 : vector<8x128xf32>
    %199 = arith.negf %198 : vector<8x128xf32>
    %200 = math.exp %199 : vector<8x128xf32>
    %cst_78 = arith.constant 1.000000e+00 : f32
    %201 = vector.broadcast %cst_78 : f32 to vector<8x128xf32>
    %202 = arith.addf %201, %200 : vector<8x128xf32>
    %203 = arith.divf %201, %202 : vector<8x128xf32>
    %204 = vector.extract_strided_slice %186 {offsets = [0, 128], sizes = [8, 128], strides = [1, 1]} : vector<8x384xf32> to vector<8x128xf32>
    %205 = vector.extract_strided_slice %195 {offsets = [0, 128], sizes = [8, 128], strides = [1, 1]} : vector<8x384xf32> to vector<8x128xf32>
    %206 = arith.addf %204, %205 : vector<8x128xf32>
    %207 = arith.negf %206 : vector<8x128xf32>
    %208 = math.exp %207 : vector<8x128xf32>
    %cst_79 = arith.constant 1.000000e+00 : f32
    %209 = vector.broadcast %cst_79 : f32 to vector<8x128xf32>
    %210 = arith.addf %209, %208 : vector<8x128xf32>
    %211 = arith.divf %209, %210 : vector<8x128xf32>
    %212 = vector.extract_strided_slice %186 {offsets = [0, 256], sizes = [8, 128], strides = [1, 1]} : vector<8x384xf32> to vector<8x128xf32>
    %213 = vector.extract_strided_slice %195 {offsets = [0, 256], sizes = [8, 128], strides = [1, 1]} : vector<8x384xf32> to vector<8x128xf32>
    %214 = vector.broadcast %4 : vector<1x128xf32> to vector<8x128xf32>
    %215 = arith.addf %213, %214 : vector<8x128xf32>
    %216 = arith.mulf %203, %215 : vector<8x128xf32>
    %217 = arith.addf %212, %216 : vector<8x128xf32>
    %218 = math.tanh %217 : vector<8x128xf32>
    %cst_80 = arith.constant 1.000000e+00 : f32
    %219 = vector.broadcast %cst_80 : f32 to vector<8x128xf32>
    %220 = arith.subf %219, %211 : vector<8x128xf32>
    %221 = arith.mulf %220, %218 : vector<8x128xf32>
    %222 = arith.mulf %211, %192 : vector<8x128xf32>
    %223 = arith.addf %221, %222 : vector<8x128xf32>
    %224 = arith.truncf %223 : vector<8x128xf32> to vector<8x128xbf16>
    %cst_81 = arith.constant dense<0.000000e+00> : vector<8x128xf32>
    %225 = tpu.matmul %224, %5, %cst_81 {dimension_numbers = #tpu.dot_dimension_numbers<[1], [0], [0], [1], [0, 0, 1, 1], [], []>} : vector<8x128xbf16>, vector<128x128xbf16>, vector<8x128xf32> -> vector<8x128xf32>
    %226 = vector.broadcast %6 : vector<1x128xf32> to vector<8x128xf32>
    %227 = arith.addf %225, %226 : vector<8x128xf32>
    %228 = arith.truncf %227 : vector<8x128xf32> to vector<8x128xbf16>
    %229 = vector.shape_cast %228 : vector<8x128xbf16> to vector<8x1x128xbf16>
    %230 = vector.shape_cast %229 : vector<8x1x128xbf16> to vector<8x1x128xbf16>
    %231 = vector.broadcast %230 : vector<8x1x128xbf16> to vector<8x16x128xbf16>
    %232 = vector.shape_cast %231 : vector<8x16x128xbf16> to vector<128x128xbf16>
    %233 = arith.addf %7, %232 : vector<128x128xbf16>
    %234 = math.tanh %233 : vector<128x128xbf16>
    %235 = vector.broadcast %8 : vector<1x128xbf16> to vector<128x128xbf16>
    %236 = arith.mulf %234, %235 : vector<128x128xbf16>
    %237 = arith.extf %236 : vector<128x128xbf16> to vector<128x128xf32>
    %238 = vector.shape_cast %237 : vector<128x128xf32> to vector<8x16x128xf32>
    %cst_82 = arith.constant dense<0.000000e+00> : vector<8x16xf32>
    %239 = vector.multi_reduction <add>, %238, %cst_82 [2] : vector<8x16x128xf32> to vector<8x16xf32>
    %cst_83 = arith.constant dense<0xFF800000> : vector<8xf32>
    %240 = vector.multi_reduction <maximumf>, %239, %cst_83 [1] : vector<8x16xf32> to vector<8xf32>
    %241 = vector.shape_cast %240 : vector<8xf32> to vector<8x1xf32>
    %242 = vector.broadcast %241 : vector<8x1xf32> to vector<8x16xf32>
    %243 = arith.subf %239, %242 : vector<8x16xf32>
    %244 = math.exp %243 : vector<8x16xf32>
    %cst_84 = arith.constant dense<0.000000e+00> : vector<8xf32>
    %245 = vector.multi_reduction <add>, %244, %cst_84 [1] : vector<8x16xf32> to vector<8xf32>
    %246 = vector.shape_cast %245 : vector<8xf32> to vector<8x1xf32>
    %247 = tpu.reciprocal %246 {approx = true} : vector<8x1xf32> -> vector<8x1xf32>
    %248 = vector.broadcast %247 : vector<8x1xf32> to vector<8x16xf32>
    %249 = arith.mulf %244, %248 : vector<8x16xf32>
    %cst_85 = arith.constant dense<0.000000e+00> : vector<8x128xf32>
    %250 = tpu.matmul %249, %9, %cst_85 {dimension_numbers = #tpu.dot_dimension_numbers<[1], [0], [0], [1], [0, 0, 1, 1], [], []>} : vector<8x16xf32>, vector<16x128xf32>, vector<8x128xf32> -> vector<8x128xf32>
    %251 = math.tanh %193 : vector<8x128xf32>
    %cst_86 = arith.constant 1.000000e-01 : f32
    %252 = vector.broadcast %cst_86 : f32 to vector<8x128xf32>
    %253 = arith.mulf %251, %252 : vector<8x128xf32>
    %254 = arith.addf %253, %250 : vector<8x128xf32>
    %255 = vector.shape_cast %191 : vector<8x1xi1> to vector<8x1xi1>
    %256 = vector.broadcast %255 : vector<8x1xi1> to vector<8x128xi1>
    %257 = arith.select %256, %254, %251 : vector<8x128xi1>, vector<8x128xf32>
    %258 = vector.shape_cast %191 : vector<8x1xi1> to vector<8x1xi1>
    %259 = vector.broadcast %258 : vector<8x1xi1> to vector<8x128xi1>
    %260 = arith.select %259, %223, %192 : vector<8x128xi1>, vector<8x128xf32>
    %261 = arith.index_cast %c2_i32 : i32 to index
    %c0_87 = arith.constant 0 : index
    %c0_88 = arith.constant 0 : index
    %262 = vector.load %arg12[%261, %c0_87, %c0_88] : memref<4x8x128xf32, #tpu.memory_space<vmem>>, vector<1x8x128xf32>
    %263 = vector.shape_cast %262 : vector<1x8x128xf32> to vector<8x128xf32>
    %264 = vector.shape_cast %257 : vector<8x128xf32> to vector<1x8x128xf32>
    tpu.vector_store %arg12[%261, %c0_87, %c0_88], %264 {strides = array<i32>} : memref<4x8x128xf32, #tpu.memory_space<vmem>>, vector<1x8x128xf32>,
    %265 = arith.index_cast %c2_i32 : i32 to index
    %c0_89 = arith.constant 0 : index
    %c0_90 = arith.constant 0 : index
    %266 = vector.load %arg13[%265, %c0_89, %c0_90] : memref<4x8x128xf32, #tpu.memory_space<vmem>>, vector<1x8x128xf32>
    %267 = vector.shape_cast %266 : vector<1x8x128xf32> to vector<8x128xf32>
    %268 = vector.shape_cast %260 : vector<8x128xf32> to vector<1x8x128xf32>
    tpu.vector_store %arg13[%265, %c0_89, %c0_90], %268 {strides = array<i32>} : memref<4x8x128xf32, #tpu.memory_space<vmem>>, vector<1x8x128xf32>,
    %c0_91 = arith.constant 0 : index
    %c0_92 = arith.constant 0 : index
    %269 = vector.load %arg14[%c0_91, %c0_92] : memref<8x128xf32, #tpu.memory_space<vmem>>, vector<8x128xf32>
    tpu.vector_store %arg14[%c0_91, %c0_92], %260 {strides = array<i32>} : memref<8x128xf32, #tpu.memory_space<vmem>>, vector<8x128xf32>,
    %c0_93 = arith.constant 0 : index
    %c0_94 = arith.constant 0 : index
    %270 = vector.load %arg15[%c0_93, %c0_94] : memref<8x128xf32, #tpu.memory_space<vmem>>, vector<8x128xf32>
    tpu.vector_store %arg15[%c0_93, %c0_94], %257 {strides = array<i32>} : memref<8x128xf32, #tpu.memory_space<vmem>>, vector<8x128xf32>,
    %c3_i32 = arith.constant 3 : i32
    %271 = arith.index_cast %c3_i32 : i32 to index
    %c0_95 = arith.constant 0 : index
    %c0_96 = arith.constant 0 : index
    %272 = vector.load %arg1[%271, %c0_95, %c0_96] : memref<4x8x384xf32, #tpu.memory_space<vmem>>, vector<1x8x384xf32>
    %273 = vector.shape_cast %272 : vector<1x8x384xf32> to vector<8x384xf32>
    %274 = arith.index_cast %c3_i32 : i32 to index
    %c0_97 = arith.constant 0 : index
    %c0_98 = arith.constant 0 : index
    %275 = vector.load %arg2[%274, %c0_97, %c0_98] : memref<4x8x1xf32, #tpu.memory_space<vmem>>, vector<1x8x1xf32>
    %276 = vector.shape_cast %275 : vector<1x8x1xf32> to vector<8x1xf32>
    %cst_99 = arith.constant 0.000000e+00 : f32
    %277 = vector.broadcast %cst_99 : f32 to vector<8x1xf32>
    %278 = arith.cmpf ogt, %276, %277 : vector<8x1xf32>
    %c0_100 = arith.constant 0 : index
    %c0_101 = arith.constant 0 : index
    %279 = vector.load %arg14[%c0_100, %c0_101] : memref<8x128xf32, #tpu.memory_space<vmem>>, vector<8x128xf32>
    %c0_102 = arith.constant 0 : index
    %c0_103 = arith.constant 0 : index
    %280 = vector.load %arg15[%c0_102, %c0_103] : memref<8x128xf32, #tpu.memory_space<vmem>>, vector<8x128xf32>
    %281 = arith.truncf %279 : vector<8x128xf32> to vector<8x128xbf16>
    %cst_104 = arith.constant dense<0.000000e+00> : vector<8x384xf32>
    %282 = tpu.matmul %281, %3, %cst_104 {dimension_numbers = #tpu.dot_dimension_numbers<[1], [0], [0], [1], [0, 0, 1, 1], [], []>} : vector<8x128xbf16>, vector<128x384xbf16>, vector<8x384xf32> -> vector<8x384xf32>
    %283 = vector.extract_strided_slice %273 {offsets = [0, 0], sizes = [8, 128], strides = [1, 1]} : vector<8x384xf32> to vector<8x128xf32>
    %284 = vector.extract_strided_slice %282 {offsets = [0, 0], sizes = [8, 128], strides = [1, 1]} : vector<8x384xf32> to vector<8x128xf32>
    %285 = arith.addf %283, %284 : vector<8x128xf32>
    %286 = arith.negf %285 : vector<8x128xf32>
    %287 = math.exp %286 : vector<8x128xf32>
    %cst_105 = arith.constant 1.000000e+00 : f32
    %288 = vector.broadcast %cst_105 : f32 to vector<8x128xf32>
    %289 = arith.addf %288, %287 : vector<8x128xf32>
    %290 = arith.divf %288, %289 : vector<8x128xf32>
    %291 = vector.extract_strided_slice %273 {offsets = [0, 128], sizes = [8, 128], strides = [1, 1]} : vector<8x384xf32> to vector<8x128xf32>
    %292 = vector.extract_strided_slice %282 {offsets = [0, 128], sizes = [8, 128], strides = [1, 1]} : vector<8x384xf32> to vector<8x128xf32>
    %293 = arith.addf %291, %292 : vector<8x128xf32>
    %294 = arith.negf %293 : vector<8x128xf32>
    %295 = math.exp %294 : vector<8x128xf32>
    %cst_106 = arith.constant 1.000000e+00 : f32
    %296 = vector.broadcast %cst_106 : f32 to vector<8x128xf32>
    %297 = arith.addf %296, %295 : vector<8x128xf32>
    %298 = arith.divf %296, %297 : vector<8x128xf32>
    %299 = vector.extract_strided_slice %273 {offsets = [0, 256], sizes = [8, 128], strides = [1, 1]} : vector<8x384xf32> to vector<8x128xf32>
    %300 = vector.extract_strided_slice %282 {offsets = [0, 256], sizes = [8, 128], strides = [1, 1]} : vector<8x384xf32> to vector<8x128xf32>
    %301 = vector.broadcast %4 : vector<1x128xf32> to vector<8x128xf32>
    %302 = arith.addf %300, %301 : vector<8x128xf32>
    %303 = arith.mulf %290, %302 : vector<8x128xf32>
    %304 = arith.addf %299, %303 : vector<8x128xf32>
    %305 = math.tanh %304 : vector<8x128xf32>
    %cst_107 = arith.constant 1.000000e+00 : f32
    %306 = vector.broadcast %cst_107 : f32 to vector<8x128xf32>
    %307 = arith.subf %306, %298 : vector<8x128xf32>
    %308 = arith.mulf %307, %305 : vector<8x128xf32>
    %309 = arith.mulf %298, %279 : vector<8x128xf32>
    %310 = arith.addf %308, %309 : vector<8x128xf32>
    %311 = arith.truncf %310 : vector<8x128xf32> to vector<8x128xbf16>
    %cst_108 = arith.constant dense<0.000000e+00> : vector<8x128xf32>
    %312 = tpu.matmul %311, %5, %cst_108 {dimension_numbers = #tpu.dot_dimension_numbers<[1], [0], [0], [1], [0, 0, 1, 1], [], []>} : vector<8x128xbf16>, vector<128x128xbf16>, vector<8x128xf32> -> vector<8x128xf32>
    %313 = vector.broadcast %6 : vector<1x128xf32> to vector<8x128xf32>
    %314 = arith.addf %312, %313 : vector<8x128xf32>
    %315 = arith.truncf %314 : vector<8x128xf32> to vector<8x128xbf16>
    %316 = vector.shape_cast %315 : vector<8x128xbf16> to vector<8x1x128xbf16>
    %317 = vector.shape_cast %316 : vector<8x1x128xbf16> to vector<8x1x128xbf16>
    %318 = vector.broadcast %317 : vector<8x1x128xbf16> to vector<8x16x128xbf16>
    %319 = vector.shape_cast %318 : vector<8x16x128xbf16> to vector<128x128xbf16>
    %320 = arith.addf %7, %319 : vector<128x128xbf16>
    %321 = math.tanh %320 : vector<128x128xbf16>
    %322 = vector.broadcast %8 : vector<1x128xbf16> to vector<128x128xbf16>
    %323 = arith.mulf %321, %322 : vector<128x128xbf16>
    %324 = arith.extf %323 : vector<128x128xbf16> to vector<128x128xf32>
    %325 = vector.shape_cast %324 : vector<128x128xf32> to vector<8x16x128xf32>
    %cst_109 = arith.constant dense<0.000000e+00> : vector<8x16xf32>
    %326 = vector.multi_reduction <add>, %325, %cst_109 [2] : vector<8x16x128xf32> to vector<8x16xf32>
    %cst_110 = arith.constant dense<0xFF800000> : vector<8xf32>
    %327 = vector.multi_reduction <maximumf>, %326, %cst_110 [1] : vector<8x16xf32> to vector<8xf32>
    %328 = vector.shape_cast %327 : vector<8xf32> to vector<8x1xf32>
    %329 = vector.broadcast %328 : vector<8x1xf32> to vector<8x16xf32>
    %330 = arith.subf %326, %329 : vector<8x16xf32>
    %331 = math.exp %330 : vector<8x16xf32>
    %cst_111 = arith.constant dense<0.000000e+00> : vector<8xf32>
    %332 = vector.multi_reduction <add>, %331, %cst_111 [1] : vector<8x16xf32> to vector<8xf32>
    %333 = vector.shape_cast %332 : vector<8xf32> to vector<8x1xf32>
    %334 = tpu.reciprocal %333 {approx = true} : vector<8x1xf32> -> vector<8x1xf32>
    %335 = vector.broadcast %334 : vector<8x1xf32> to vector<8x16xf32>
    %336 = arith.mulf %331, %335 : vector<8x16xf32>
    %cst_112 = arith.constant dense<0.000000e+00> : vector<8x128xf32>
    %337 = tpu.matmul %336, %9, %cst_112 {dimension_numbers = #tpu.dot_dimension_numbers<[1], [0], [0], [1], [0, 0, 1, 1], [], []>} : vector<8x16xf32>, vector<16x128xf32>, vector<8x128xf32> -> vector<8x128xf32>
    %338 = math.tanh %280 : vector<8x128xf32>
    %cst_113 = arith.constant 1.000000e-01 : f32
    %339 = vector.broadcast %cst_113 : f32 to vector<8x128xf32>
    %340 = arith.mulf %338, %339 : vector<8x128xf32>
    %341 = arith.addf %340, %337 : vector<8x128xf32>
    %342 = vector.shape_cast %278 : vector<8x1xi1> to vector<8x1xi1>
    %343 = vector.broadcast %342 : vector<8x1xi1> to vector<8x128xi1>
    %344 = arith.select %343, %341, %338 : vector<8x128xi1>, vector<8x128xf32>
    %345 = vector.shape_cast %278 : vector<8x1xi1> to vector<8x1xi1>
    %346 = vector.broadcast %345 : vector<8x1xi1> to vector<8x128xi1>
    %347 = arith.select %346, %310, %279 : vector<8x128xi1>, vector<8x128xf32>
    %348 = arith.index_cast %c3_i32 : i32 to index
    %c0_114 = arith.constant 0 : index
    %c0_115 = arith.constant 0 : index
    %349 = vector.load %arg12[%348, %c0_114, %c0_115] : memref<4x8x128xf32, #tpu.memory_space<vmem>>, vector<1x8x128xf32>
    %350 = vector.shape_cast %349 : vector<1x8x128xf32> to vector<8x128xf32>
    %351 = vector.shape_cast %344 : vector<8x128xf32> to vector<1x8x128xf32>
    tpu.vector_store %arg12[%348, %c0_114, %c0_115], %351 {strides = array<i32>} : memref<4x8x128xf32, #tpu.memory_space<vmem>>, vector<1x8x128xf32>,
    %352 = arith.index_cast %c3_i32 : i32 to index
    %c0_116 = arith.constant 0 : index
    %c0_117 = arith.constant 0 : index
    %353 = vector.load %arg13[%352, %c0_116, %c0_117] : memref<4x8x128xf32, #tpu.memory_space<vmem>>, vector<1x8x128xf32>
    %354 = vector.shape_cast %353 : vector<1x8x128xf32> to vector<8x128xf32>
    %355 = vector.shape_cast %347 : vector<8x128xf32> to vector<1x8x128xf32>
    tpu.vector_store %arg13[%352, %c0_116, %c0_117], %355 {strides = array<i32>} : memref<4x8x128xf32, #tpu.memory_space<vmem>>, vector<1x8x128xf32>,
    %c0_118 = arith.constant 0 : index
    %c0_119 = arith.constant 0 : index
    %356 = vector.load %arg14[%c0_118, %c0_119] : memref<8x128xf32, #tpu.memory_space<vmem>>, vector<8x128xf32>
    tpu.vector_store %arg14[%c0_118, %c0_119], %347 {strides = array<i32>} : memref<8x128xf32, #tpu.memory_space<vmem>>, vector<8x128xf32>,
    %c0_120 = arith.constant 0 : index
    %c0_121 = arith.constant 0 : index
    %357 = vector.load %arg15[%c0_120, %c0_121] : memref<8x128xf32, #tpu.memory_space<vmem>>, vector<8x128xf32>
    tpu.vector_store %arg15[%c0_120, %c0_121], %344 {strides = array<i32>} : memref<8x128xf32, #tpu.memory_space<vmem>>, vector<8x128xf32>,
    %c4_i32 = arith.constant 4 : i32
    return
  }
  func.func @transform_0(%arg0: i32) -> (i32, i32, i32) {
    %c0_i32 = arith.constant 0 : i32
    %c0_i32_0 = arith.constant 0 : i32
    %c0_i32_1 = arith.constant 0 : i32
    return %arg0, %c0_i32, %c0_i32_0 : i32, i32, i32
  }
  func.func @transform_1(%arg0: i32) -> (i32, i32, i32) {
    %c0_i32 = arith.constant 0 : i32
    %c0_i32_0 = arith.constant 0 : i32
    %c0_i32_1 = arith.constant 0 : i32
    return %arg0, %c0_i32, %c0_i32_0 : i32, i32, i32
  }
  func.func @transform_2(%arg0: i32) -> (i32, i32) {
    %c0_i32 = arith.constant 0 : i32
    %c0_i32_0 = arith.constant 0 : i32
    %c0_i32_1 = arith.constant 0 : i32
    return %c0_i32, %c0_i32_0 : i32, i32
  }
  func.func @transform_3(%arg0: i32) -> (i32, i32) {
    %c0_i32 = arith.constant 0 : i32
    %c0_i32_0 = arith.constant 0 : i32
    %c0_i32_1 = arith.constant 0 : i32
    return %c0_i32, %c0_i32_0 : i32, i32
  }
  func.func @transform_4(%arg0: i32) -> (i32, i32) {
    %c0_i32 = arith.constant 0 : i32
    %c0_i32_0 = arith.constant 0 : i32
    %c0_i32_1 = arith.constant 0 : i32
    return %c0_i32, %c0_i32_0 : i32, i32
  }
  func.func @transform_5(%arg0: i32) -> (i32, i32) {
    %c0_i32 = arith.constant 0 : i32
    %c0_i32_0 = arith.constant 0 : i32
    %c0_i32_1 = arith.constant 0 : i32
    return %c0_i32, %c0_i32_0 : i32, i32
  }
  func.func @transform_6(%arg0: i32) -> (i32, i32) {
    %c0_i32 = arith.constant 0 : i32
    %c0_i32_0 = arith.constant 0 : i32
    %c0_i32_1 = arith.constant 0 : i32
    return %c0_i32, %c0_i32_0 : i32, i32
  }
  func.func @transform_7(%arg0: i32) -> (i32, i32) {
    %c0_i32 = arith.constant 0 : i32
    %c0_i32_0 = arith.constant 0 : i32
    %c0_i32_1 = arith.constant 0 : i32
    return %c0_i32, %c0_i32_0 : i32, i32
  }
  func.func @transform_8(%arg0: i32) -> (i32, i32) {
    %c0_i32 = arith.constant 0 : i32
    %c0_i32_0 = arith.constant 0 : i32
    %c0_i32_1 = arith.constant 0 : i32
    return %c0_i32, %c0_i32_0 : i32, i32
  }
  func.func @transform_9(%arg0: i32) -> (i32, i32) {
    %c0_i32 = arith.constant 0 : i32
    %c0_i32_0 = arith.constant 0 : i32
    %c0_i32_1 = arith.constant 0 : i32
    return %c0_i32, %c0_i32_0 : i32, i32
  }
  func.func @transform_10(%arg0: i32) -> (i32, i32) {
    %c0_i32 = arith.constant 0 : i32
    %c0_i32_0 = arith.constant 0 : i32
    %c0_i32_1 = arith.constant 0 : i32
    return %c0_i32, %c0_i32_0 : i32, i32
  }
  func.func @transform_11(%arg0: i32) -> (i32, i32, i32) {
    %c0_i32 = arith.constant 0 : i32
    %c0_i32_0 = arith.constant 0 : i32
    %c0_i32_1 = arith.constant 0 : i32
    return %arg0, %c0_i32, %c0_i32_0 : i32, i32, i32
  }
  func.func @transform_12(%arg0: i32) -> (i32, i32, i32) {
    %c0_i32 = arith.constant 0 : i32
    %c0_i32_0 = arith.constant 0 : i32
    %c0_i32_1 = arith.constant 0 : i32
    return %arg0, %c0_i32, %c0_i32_0 : i32, i32, i32
  }
}

</mosaic_0001>

<llo_original>
// kernel: tpu_custom_call.1
$region0: #{tpu_custom_call.1}
  #allocation0 [shape = 'u32[]', space=smem, size = 0x4, offset = 0x4, fixed_abs, tag = 'smem constant byte address 0x4 - core index']
  #allocation1 [shape = 'u32[144,128]{1,0:T(1,128)}', space=vmem, size = 0x12000, scoped, tag = 'internal scratch']
  #allocation2 [shape = 'f32[8,128]{1,0:T(8,128)}', space=vmem, size = 0x1000, scoped, tag = 'scratch operand']
  #allocation3 [shape = 'f32[8,128]{1,0:T(8,128)}', space=vmem, size = 0x1000, scoped, tag = 'scratch operand']
  %s0 = inlined_call_operand.hbm [shape: f32[4,8,384], index: 0, kind: input, shape index: {}]
  %s1 = inlined_call_operand.vmem [shape: f32[4,8,1], index: 1, kind: input, shape index: {}]
  %s2 = inlined_call_operand.hbm [shape: f32[8,128], index: 2, kind: input, shape index: {}]
  %s3 = inlined_call_operand.hbm [shape: f32[8,128], index: 3, kind: input, shape index: {}]
  %s4 = inlined_call_operand.hbm [shape: f32[16,128], index: 4, kind: input, shape index: {}]
  %s5 = inlined_call_operand.hbm [shape: bf16[128,128], index: 5, kind: input, shape index: {}]
  %s6 = inlined_call_operand.hbm [shape: bf16[128,384], index: 6, kind: input, shape index: {}]
  %s7 = inlined_call_operand.vmem [shape: f32[1,128], index: 7, kind: input, shape index: {}]
  %s8 = inlined_call_operand.vmem [shape: bf16[128,128], index: 8, kind: input, shape index: {}]
  %s9 = inlined_call_operand.vmem [shape: f32[1,128], index: 9, kind: input, shape index: {}]
  %s10 = inlined_call_operand.vmem [shape: bf16[1,128], index: 10, kind: input, shape index: {}]
  %s11 = inlined_call_operand.hbm [shape: f32[4,8,128], index: 11, kind: output, shape index: {0}]
  %s12 = inlined_call_operand.hbm [shape: f32[4,8,128], index: 12, kind: output, shape index: {1}]
  %13 = xla_tuple %s11, %s12
  %s14 = sld [smem:[#allocation0]]
  $region90: #{tpu_custom_call.1} parent=0
    _
  %s16 = ssub.s32 1, %s14
  %s17 = scalar_select 0, %s16, %s14
  $region1: #{tpu_custom_call.1} parent=0
    #allocation4 [shape = 'u8[49152]{0}', space=vmem, size = 0xc000, scoped, tag = 'input window, operand 0, single buffered']
    #allocation5 [shape = 's32[1]{0}', space=sflag, size = 0x4, scoped, tag = 'scoped memory for tpu_custom_call.1']
    #allocation6 [shape = 's32[1]{0}', space=sflag, size = 0x4, scoped, tag = 'scoped memory for tpu_custom_call.1']
    #allocation7 [shape = 'u8[4096]{0}', space=vmem, size = 0x1000, scoped, tag = 'input window, operand 2, single buffered']
    #allocation8 [shape = 's32[1]{0}', space=sflag, size = 0x4, scoped, tag = 'scoped memory for tpu_custom_call.1']
    #allocation9 [shape = 'u8[4096]{0}', space=vmem, size = 0x1000, scoped, tag = 'input window, operand 3, single buffered']
    #allocation10 [shape = 'u8[8192]{0}', space=vmem, size = 0x2000, scoped, tag = 'input window, operand 4, single buffered']
    #allocation11 [shape = 's32[1]{0}', space=sflag, size = 0x4, scoped, tag = 'scoped memory for tpu_custom_call.1']
    #allocation12 [shape = 'u8[32768]{0}', space=vmem, size = 0x8000, scoped, tag = 'input window, operand 5, single buffered']
    #allocation13 [shape = 'u8[98304]{0}', space=vmem, size = 0x18000, scoped, tag = 'input window, operand 6, single buffered']
    #allocation14 [shape = 's32[1]{0}', space=sflag, size = 0x4, scoped, tag = 'scoped memory for tpu_custom_call.1']
    #allocation15 [shape = 'u8[16384]{0}', space=vmem, size = 0x4000, scoped, tag = 'output window, operand 0, single buffered']
    #allocation16 [shape = 'u8[16384]{0}', space=vmem, size = 0x4000, scoped, tag = 'output window, operand 1, single buffered']
    #allocation17 [shape = 's32[1]{0}', space=sflag, size = 0x4, scoped, tag = 'scoped memory for tpu_custom_call.1']
    %18 = vsyncpa [#allocation5], 0
    %19 = vsyncpa [#allocation8], 0
    %20 = vsyncpa [#allocation11], 0
    %21 = vsyncpa [#allocation14], 0
    %22 = vsyncpa [#allocation6], 0
    %23 = vsyncpa [#allocation17], 0
    // Predicated region
    $region2: #{tpu_custom_call.1} parent=1 // pred_check
      _
    $region3: #{tpu_custom_call.1} parent=1 // pred_check_branch
      %25 = sbr.rel (0) target = $region5
    $region4: #{tpu_custom_call.1} parent=1 // pred_region
      %s27 = ssub.s32 1536, 1536
      %28 = vsyncadd [#allocation5], %s27
      %s29 = sshll.u32 [#allocation4], 4
      %s30 = int_to_ptr.vmem [resolvable:$true] %s29
      %35 = dma.hbm_to_vmem [thread:$0]  %s0, 1536, %s30, [#allocation5], 384, 384, 24
    $region5: #{tpu_custom_call.1} parent=1 // pred_fallthru
      _
    // Predicated region
    $region6: #{tpu_custom_call.1} parent=1 // pred_check
      _
    $region7: #{tpu_custom_call.1} parent=1 // pred_check_branch
      %37 = sbr.rel (0) target = $region9
    $region8: #{tpu_custom_call.1} parent=1 // pred_region
      _
    $region9: #{tpu_custom_call.1} parent=1 // pred_fallthru
      _
    // Predicated region
    $region10: #{tpu_custom_call.1} parent=1 // pred_check
      _
    $region11: #{tpu_custom_call.1} parent=1 // pred_check_branch
      %39 = sbr.rel (0) target = $region13
    $region12: #{tpu_custom_call.1} parent=1 // pred_region
      %s41 = ssub.s32 128, 128
      %42 = vsyncadd [#allocation8], %s41
      %s44 = sshll.u32 [#allocation7], 4
      %s45 = int_to_ptr.vmem [resolvable:$true] %s44
      %47 = dma.hbm_to_vmem [thread:$0]  %s2, 128, %s45, [#allocation8]
    $region13: #{tpu_custom_call.1} parent=1 // pred_fallthru
      _
    // Predicated region
    $region14: #{tpu_custom_call.1} parent=1 // pred_check
      _
    $region15: #{tpu_custom_call.1} parent=1 // pred_check_branch
      %49 = sbr.rel (0) target = $region17
    $region16: #{tpu_custom_call.1} parent=1 // pred_region
      %s51 = ssub.s32 128, 128
      %52 = vsyncadd [#allocation8], %s51
      %s54 = sshll.u32 [#allocation9], 4
      %s55 = int_to_ptr.vmem [resolvable:$true] %s54
      %57 = dma.hbm_to_vmem [thread:$0]  %s3, 128, %s55, [#allocation8]
    $region17: #{tpu_custom_call.1} parent=1 // pred_fallthru
      _
    // Predicated region
    $region18: #{tpu_custom_call.1} parent=1 // pred_check
      _
    $region19: #{tpu_custom_call.1} parent=1 // pred_check_branch
      %59 = sbr.rel (0) target = $region21
    $region20: #{tpu_custom_call.1} parent=1 // pred_region
      %s61 = ssub.s32 256, 256
      %62 = vsyncadd [#allocation11], %s61
      %s63 = sshll.u32 [#allocation10], 4
      %s64 = int_to_ptr.vmem [resolvable:$true] %s63
      %69 = dma.hbm_to_vmem [thread:$0]  %s4, 256, %s64, [#allocation11], 128, 128, 8
    $region21: #{tpu_custom_call.1} parent=1 // pred_fallthru
      _
    // Predicated region
    $region22: #{tpu_custom_call.1} parent=1 // pred_check
      _
    $region23: #{tpu_custom_call.1} parent=1 // pred_check_branch
      %71 = sbr.rel (0) target = $region25
    $region24: #{tpu_custom_call.1} parent=1 // pred_region
      %s73 = ssub.s32 1024, 1024
      %74 = vsyncadd [#allocation11], %s73
      %s75 = sshll.u32 [#allocation12], 4
      %s76 = int_to_ptr.vmem [resolvable:$true] %s75
      %81 = dma.hbm_to_vmem [thread:$0]  %s5, 1024, %s76, [#allocation11], 64, 64, 4
    $region25: #{tpu_custom_call.1} parent=1 // pred_fallthru
      _
    // Predicated region
    $region26: #{tpu_custom_call.1} parent=1 // pred_check
      _
    $region27: #{tpu_custom_call.1} parent=1 // pred_check_branch
      %83 = sbr.rel (0) target = $region29
    $region28: #{tpu_custom_call.1} parent=1 // pred_region
      %s85 = ssub.s32 3072, 3072
      %86 = vsyncadd [#allocation14], %s85
      %s87 = sshll.u32 [#allocation13], 4
      %s88 = int_to_ptr.vmem [resolvable:$true] %s87
      %93 = dma.hbm_to_vmem [thread:$0]  %s6, 3072, %s88, [#allocation14], 192, 192, 12
    $region29: #{tpu_custom_call.1} parent=1 // pred_fallthru
      _
    // Predicated region
    $region30: #{tpu_custom_call.1} parent=1 // pred_check
      _
    $region31: #{tpu_custom_call.1} parent=1 // pred_check_branch
      %95 = sbr.rel (0) target = $region33
    $region32: #{tpu_custom_call.1} parent=1 // pred_region
      _
    $region33: #{tpu_custom_call.1} parent=1 // pred_fallthru
      _
    // Predicated region
    $region34: #{tpu_custom_call.1} parent=1 // pred_check
      _
    $region35: #{tpu_custom_call.1} parent=1 // pred_check_branch
      %97 = sbr.rel (0) target = $region37
    $region36: #{tpu_custom_call.1} parent=1 // pred_region
      _
    $region37: #{tpu_custom_call.1} parent=1 // pred_fallthru
      _
    // Predicated region
    $region38: #{tpu_custom_call.1} parent=1 // pred_check
      _
    $region39: #{tpu_custom_call.1} parent=1 // pred_check_branch
      %99 = sbr.rel (0) target = $region41
    $region40: #{tpu_custom_call.1} parent=1 // pred_region
      _
    $region41: #{tpu_custom_call.1} parent=1 // pred_fallthru
      _
    // Predicated region
    $region42: #{tpu_custom_call.1} parent=1 // pred_check
      _
    $region43: #{tpu_custom_call.1} parent=1 // pred_check_branch
      %101 = sbr.rel (0) target = $region45
    $region44: #{tpu_custom_call.1} parent=1 // pred_region
      _
    $region45: #{tpu_custom_call.1} parent=1 // pred_fallthru
      _
    // Predicated region
    $region46: #{tpu_custom_call.1} parent=1 // pred_check
      _
    $region47: #{tpu_custom_call.1} parent=1 // pred_check_branch
      %103 = sbr.rel (0) target = $region49
    $region48: #{tpu_custom_call.1} parent=1 // pred_region
      %104 = dma.done [#allocation5], 1536
    $region49: #{tpu_custom_call.1} parent=1 // pred_fallthru
      _
    // Predicated region
    $region50: #{tpu_custom_call.1} parent=1 // pred_check
      _
    $region51: #{tpu_custom_call.1} parent=1 // pred_check_branch
      %106 = sbr.rel (0) target = $region53
    $region52: #{tpu_custom_call.1} parent=1 // pred_region
      %107 = dma.done [#allocation8], 128
    $region53: #{tpu_custom_call.1} parent=1 // pred_fallthru
      _
    // Predicated region
    $region54: #{tpu_custom_call.1} parent=1 // pred_check
      _
    $region55: #{tpu_custom_call.1} parent=1 // pred_check_branch
      %109 = sbr.rel (0) target = $region57
    $region56: #{tpu_custom_call.1} parent=1 // pred_region
      %110 = dma.done [#allocation8], 128
    $region57: #{tpu_custom_call.1} parent=1 // pred_fallthru
      _
    // Predicated region
    $region58: #{tpu_custom_call.1} parent=1 // pred_check
      _
    $region59: #{tpu_custom_call.1} parent=1 // pred_check_branch
      %112 = sbr.rel (0) target = $region61
    $region60: #{tpu_custom_call.1} parent=1 // pred_region
      %113 = dma.done [#allocation11], 256
    $region61: #{tpu_custom_call.1} parent=1 // pred_fallthru
      _
    // Predicated region
    $region62: #{tpu_custom_call.1} parent=1 // pred_check
      _
    $region63: #{tpu_custom_call.1} parent=1 // pred_check_branch
      %115 = sbr.rel (0) target = $region65
    $region64: #{tpu_custom_call.1} parent=1 // pred_region
      %116 = dma.done [#allocation11], 1024
    $region65: #{tpu_custom_call.1} parent=1 // pred_fallthru
      _
    // Predicated region
    $region66: #{tpu_custom_call.1} parent=1 // pred_check
      _
    $region67: #{tpu_custom_call.1} parent=1 // pred_check_branch
      %118 = sbr.rel (0) target = $region69
    $region68: #{tpu_custom_call.1} parent=1 // pred_region
      %119 = dma.done [#allocation14], 3072
    $region69: #{tpu_custom_call.1} parent=1 // pred_fallthru
      _
    %p121 = scmp.eq.s32.totalorder 0, 0
    // Predicated region
    $region70: #{tpu_custom_call.1} parent=1 // pred_check
      %p122 = pneg %p121
    $region71: #{tpu_custom_call.1} parent=1 // pred_check_branch
      %124 = sbr.rel (%p122) target = $region73
    $region72: #{tpu_custom_call.1} parent=1 // pred_region
      %v125 = vld [vmem:[#allocation7] sm:$0xff]
      %126 = vst [vmem:[#allocation2] sm:$0xff] %v125
      %v127 = vld [vmem:[#allocation9] sm:$0xff]
      %128 = vst [vmem:[#allocation3] sm:$0xff] %v127
    $region73: #{tpu_custom_call.1} parent=1 // pred_fallthru
      _
    %v129 = vld [vmem:[#allocation13] sm:$0xff]
    %v130 = vld [vmem:[#allocation13 + $0x8] sm:$0xf]
    %v131 = vld [vmem:[#allocation13 + $0xc] sm:$0xff]
    %v132 = vld [vmem:[#allocation13 + $0x14] sm:$0xf]
    %v133 = vld [vmem:[#allocation13 + $0x18] sm:$0xff]
    %v134 = vld [vmem:[#allocation13 + $0x20] sm:$0xf]
    %v135 = vld [vmem:[#allocation13 + $0x24] sm:$0xff]
    %v136 = vld [vmem:[#allocation13 + $0x2c] sm:$0xf]
    %v137 = vld [vmem:[#allocation13 + $0x30] sm:$0xff]
    %v138 = vld [vmem:[#allocation13 + $0x38] sm:$0xf]
    %v139 = vld [vmem:[#allocation13 + $0x3c] sm:$0xff]
    %v140 = vld [vmem:[#allocation13 + $0x44] sm:$0xf]
    %v141 = vld [vmem:[#allocation13 + $0x48] sm:$0xff]
    %v142 = vld [vmem:[#allocation13 + $0x50] sm:$0xf]
    %v143 = vld [vmem:[#allocation13 + $0x54] sm:$0xff]
    %v144 = vld [vmem:[#allocation13 + $0x5c] sm:$0xf]
    %v145 = vld [vmem:[#allocation13 + $0x60] sm:$0xff]
    %v146 = vld [vmem:[#allocation13 + $0x68] sm:$0xf]
    %v147 = vld [vmem:[#allocation13 + $0x6c] sm:$0xff]
    %v148 = vld [vmem:[#allocation13 + $0x74] sm:$0xf]
    %v149 = vld [vmem:[#allocation13 + $0x78] sm:$0xff]
    %v150 = vld [vmem:[#allocation13 + $0x80] sm:$0xf]
    %v151 = vld [vmem:[#allocation13 + $0x84] sm:$0xff]
    %v152 = vld [vmem:[#allocation13 + $0x8c] sm:$0xf]
    %v153 = vld [vmem:[#allocation13 + $0x90] sm:$0xff]
    %v154 = vld [vmem:[#allocation13 + $0x98] sm:$0xf]
    %v155 = vld [vmem:[#allocation13 + $0x9c] sm:$0xff]
    %v156 = vld [vmem:[#allocation13 + $0xa4] sm:$0xf]
    %v157 = vld [vmem:[#allocation13 + $0xa8] sm:$0xff]
    %v158 = vld [vmem:[#allocation13 + $0xb0] sm:$0xf]
    %v159 = vld [vmem:[#allocation13 + $0xb4] sm:$0xff]
    %v160 = vld [vmem:[#allocation13 + $0xbc] sm:$0xf]
    %v161 = vld [vmem:[%s7] sm:$0x1]
    %v162 = vld [vmem:[%s8] sm:$0xf]
    %v163 = vld [vmem:[%s8 + $0x4] sm:$0xf]
    %v164 = vld [vmem:[%s8 + $0x8] sm:$0xf]
    %v165 = vld [vmem:[%s8 + $0xc] sm:$0xf]
    %v166 = vld [vmem:[%s8 + $0x10] sm:$0xf]
    %v167 = vld [vmem:[%s8 + $0x14] sm:$0xf]
    %v168 = vld [vmem:[%s8 + $0x18] sm:$0xf]
    %v169 = vld [vmem:[%s8 + $0x1c] sm:$0xf]
    %v170 = vld [vmem:[%s8 + $0x20] sm:$0xf]
    %v171 = vld [vmem:[%s8 + $0x24] sm:$0xf]
    %v172 = vld [vmem:[%s8 + $0x28] sm:$0xf]
    %v173 = vld [vmem:[%s8 + $0x2c] sm:$0xf]
    %v174 = vld [vmem:[%s8 + $0x30] sm:$0xf]
    %v175 = vld [vmem:[%s8 + $0x34] sm:$0xf]
    %v176 = vld [vmem:[%s8 + $0x38] sm:$0xf]
    %v177 = vld [vmem:[%s8 + $0x3c] sm:$0xf]
    %v178 = vld [vmem:[%s9] sm:$0x1]
    %v179 = vld [vmem:[#allocation12] sm:$0xf]
    %v180 = vld [vmem:[#allocation12 + $0x4] sm:$0xf]
    %v181 = vld [vmem:[#allocation12 + $0x8] sm:$0xf]
    %v182 = vld [vmem:[#allocation12 + $0xc] sm:$0xf]
    %v183 = vld [vmem:[#allocation12 + $0x10] sm:$0xf]
    %v184 = vld [vmem:[#allocation12 + $0x14] sm:$0xf]
    %v185 = vld [vmem:[#allocation12 + $0x18] sm:$0xf]
    %v186 = vld [vmem:[#allocation12 + $0x1c] sm:$0xf]
    %v187 = vld [vmem:[#allocation12 + $0x20] sm:$0xf]
    %v188 = vld [vmem:[#allocation12 + $0x24] sm:$0xf]
    %v189 = vld [vmem:[#allocation12 + $0x28] sm:$0xf]
    %v190 = vld [vmem:[#allocation12 + $0x2c] sm:$0xf]
    %v191 = vld [vmem:[#allocation12 + $0x30] sm:$0xf]
    %v192 = vld [vmem:[#allocation12 + $0x34] sm:$0xf]
    %v193 = vld [vmem:[#allocation12 + $0x38] sm:$0xf]
    %v194 = vld [vmem:[#allocation12 + $0x3c] sm:$0xf]
    %v195 = vld [vmem:[%s10] sm:$0x1]
    %v196 = vld [vmem:[#allocation10] sm:$0xff]
    %v197 = vld [vmem:[#allocation10 + $0x8] sm:$0xff]
    %v198 = vld [vmem:[#allocation4] sm:$0xff]
    %v199 = vld [vmem:[#allocation4 + $0x8] sm:$0xff]
    %v200 = vld [vmem:[#allocation4 + $0x10] sm:$0xff]
    %v201 = vld [vmem:[%s1] sm:$0xff]
    %vm202 = vcmp.gt.f32.partialorder %v201, 0.0
    %v203 = vld [vmem:[#allocation2] sm:$0xff]
    %v204 = vld [vmem:[#allocation3] sm:$0xff]
    %v205 = vpack.c.bf16 %v203, %v203
    %v238 = vunpack.c.l.b16 %v129
    %v239 = vunpack.c.h.b16 %v129
    %v240 = vunpack.c.l.b16 %v130
    %v241 = vunpack.c.l.b16 %v131
    %v242 = vunpack.c.h.b16 %v131
    %v243 = vunpack.c.l.b16 %v132
    %v244 = vunpack.c.l.b16 %v133
    %v245 = vunpack.c.h.b16 %v133
    %v246 = vunpack.c.l.b16 %v134
    %v247 = vunpack.c.l.b16 %v135
    %v248 = vunpack.c.h.b16 %v135
    %v249 = vunpack.c.l.b16 %v136
    %v250 = vunpack.c.l.b16 %v137
    %v251 = vunpack.c.h.b16 %v137
    %v252 = vunpack.c.l.b16 %v138
    %v253 = vunpack.c.l.b16 %v139
    %v254 = vunpack.c.h.b16 %v139
    %v255 = vunpack.c.l.b16 %v140
    %v256 = vunpack.c.l.b16 %v141
    %v257 = vunpack.c.h.b16 %v141
    %v258 = vunpack.c.l.b16 %v142
    %v259 = vunpack.c.l.b16 %v143
    %v260 = vunpack.c.h.b16 %v143
    %v261 = vunpack.c.l.b16 %v144
    %v262 = vunpack.c.l.b16 %v145
    %v263 = vunpack.c.h.b16 %v145
    %v264 = vunpack.c.l.b16 %v146
    %v265 = vunpack.c.l.b16 %v147
    %v266 = vunpack.c.h.b16 %v147
    %v267 = vunpack.c.l.b16 %v148
    %v268 = vunpack.c.l.b16 %v149
    %v269 = vunpack.c.h.b16 %v149
    %v270 = vunpack.c.l.b16 %v150
    %v271 = vunpack.c.l.b16 %v151
    %v272 = vunpack.c.h.b16 %v151
    %v273 = vunpack.c.l.b16 %v152
    %v274 = vunpack.c.l.b16 %v153
    %v275 = vunpack.c.h.b16 %v153
    %v276 = vunpack.c.l.b16 %v154
    %v277 = vunpack.c.l.b16 %v155
    %v278 = vunpack.c.h.b16 %v155
    %v279 = vunpack.c.l.b16 %v156
    %v280 = vunpack.c.l.b16 %v157
    %v281 = vunpack.c.h.b16 %v157
    %v282 = vunpack.c.l.b16 %v158
    %v283 = vunpack.c.l.b16 %v159
    %v284 = vunpack.c.h.b16 %v159
    %v285 = vunpack.c.l.b16 %v160
    %v286 = vpack.c.b16 %v241, %v238
    %v287 = vpack.c.b16 %v242, %v239
    %v288 = vpack.c.b16 %v243, %v240
    %v289 = vpack.c.b16 %v247, %v244
    %v290 = vpack.c.b16 %v248, %v245
    %v291 = vpack.c.b16 %v249, %v246
    %v292 = vpack.c.b16 %v253, %v250
    %v293 = vpack.c.b16 %v254, %v251
    %v294 = vpack.c.b16 %v255, %v252
    %v295 = vpack.c.b16 %v259, %v256
    %v296 = vpack.c.b16 %v260, %v257
    %v297 = vpack.c.b16 %v261, %v258
    %v298 = vpack.c.b16 %v265, %v262
    %v299 = vpack.c.b16 %v266, %v263
    %v300 = vpack.c.b16 %v267, %v264
    %v301 = vpack.c.b16 %v271, %v268
    %v302 = vpack.c.b16 %v272, %v269
    %v303 = vpack.c.b16 %v273, %v270
    %v304 = vpack.c.b16 %v277, %v274
    %v305 = vpack.c.b16 %v278, %v275
    %v306 = vpack.c.b16 %v279, %v276
    %v307 = vpack.c.b16 %v283, %v280
    %v308 = vpack.c.b16 %v284, %v281
    %v309 = vpack.c.b16 %v285, %v282
    %334 = vmatprep.subr.bf16.mxu0 %v287
    %335 = vmatpush1.bf16.msra.mxu0 %v286
    %336 = vmatprep.subr.bf16.mxu0 %v290
    %337 = vmatpush1.bf16.msra.mxu0 %v289
    %338 = vmatprep.subr.bf16.mxu0 %v293
    %339 = vmatpush1.bf16.msra.mxu0 %v292
    %340 = vmatprep.subr.bf16.mxu0 %v296
    %341 = vmatpush1.bf16.msra.mxu0 %v295
    %342 = vmatprep.subr.bf16.mxu0 %v299
    %343 = vmatpush1.bf16.msra.mxu0 %v298
    %344 = vmatprep.subr.bf16.mxu0 %v302
    %345 = vmatpush1.bf16.msra.mxu0 %v301
    %346 = vmatprep.subr.bf16.mxu0 %v305
    %347 = vmatpush1.bf16.msra.mxu0 %v304
    %348 = vmatprep.subr.bf16.mxu0 %v308
    %349 = vmatpush1.bf16.msra.mxu0 %v307
    %350 = vmatprep.subr.bf16.mxu0 0
    %351 = vmatpush1.bf16.msra.mxu0 0
    %352 = vmatprep.subr.bf16.mxu0 0
    %353 = vmatpush1.bf16.msra.mxu0 0
    %354 = vmatprep.subr.bf16.mxu0 0
    %355 = vmatpush1.bf16.msra.mxu0 0
    %356 = vmatprep.subr.bf16.mxu0 0
    %357 = vmatpush1.bf16.msra.mxu0 0
    %358 = vmatprep.subr.bf16.mxu0 0
    %359 = vmatpush1.bf16.msra.mxu0 0
    %360 = vmatprep.subr.bf16.mxu0 0
    %361 = vmatpush1.bf16.msra.mxu0 0
    %362 = vmatprep.subr.bf16.mxu0 0
    %363 = vmatpush1.bf16.msra.mxu0 0
    %364 = vmatprep.subr.bf16.mxu0 0
    %365 = vmatpush1.bf16.msra.mxu0 0
    %366 = vmatprep.mubr.bf16.mxu0 0
    %367 = vmatmul.mubr.bf16.gmra.mrb[0].mxu0 %v205
    %v368 = vpop.f32.mrb[0].mxu0
    %v369 = vadd.f32 0.0, %v368
    %v370 = vpop.f32.mrb[0].mxu0
    %v371 = vadd.f32 0.0, %v370
    %v372 = vpop.f32.mrb[0].mxu0
    %v373 = vpop.f32.mrb[0].mxu0
    %374 = vdwg.mxu0
    %375 = vmatprep.subr.bf16.mxu0 0
    %376 = vmatpush1.bf16.msra.mxu0 %v288
    %377 = vmatprep.subr.bf16.mxu0 0
    %378 = vmatpush1.bf16.msra.mxu0 %v291
    %379 = vmatprep.subr.bf16.mxu0 0
    %380 = vmatpush1.bf16.msra.mxu0 %v294
    %381 = vmatprep.subr.bf16.mxu0 0
    %382 = vmatpush1.bf16.msra.mxu0 %v297
    %383 = vmatprep.subr.bf16.mxu0 0
    %384 = vmatpush1.bf16.msra.mxu0 %v300
    %385 = vmatprep.subr.bf16.mxu0 0
    %386 = vmatpush1.bf16.msra.mxu0 %v303
    %387 = vmatprep.subr.bf16.mxu0 0
    %388 = vmatpush1.bf16.msra.mxu0 %v306
    %389 = vmatprep.subr.bf16.mxu0 0
    %390 = vmatpush1.bf16.msra.mxu0 %v309
    %391 = vmatprep.subr.bf16.mxu0 0
    %392 = vmatpush1.bf16.msra.mxu0 0
    %393 = vmatprep.subr.bf16.mxu0 0
    %394 = vmatpush1.bf16.msra.mxu0 0
    %395 = vmatprep.subr.bf16.mxu0 0
    %396 = vmatpush1.bf16.msra.mxu0 0
    %397 = vmatprep.subr.bf16.mxu0 0
    %398 = vmatpush1.bf16.msra.mxu0 0
    %399 = vmatprep.subr.bf16.mxu0 0
    %400 = vmatpush1.bf16.msra.mxu0 0
    %401 = vmatprep.subr.bf16.mxu0 0
    %402 = vmatpush1.bf16.msra.mxu0 0
    %403 = vmatprep.subr.bf16.mxu0 0
    %404 = vmatpush1.bf16.msra.mxu0 0
    %405 = vmatprep.subr.bf16.mxu0 0
    %406 = vmatpush1.bf16.msra.mxu0 0
    %407 = vmatprep.mubr.bf16.mxu0 0
    %408 = vmatmul.mubr.bf16.gmra.mrb[0].mxu0 %v205
    %v409 = vpop.f32.mrb[0].mxu0
    %v410 = vadd.f32 0.0, %v409
    %v411 = vpop.f32.mrb[0].mxu0
    %v412 = vpop.f32.mrb[0].mxu0
    %v413 = vpop.f32.mrb[0].mxu0
    %414 = vdwg.mxu0
    %v415 = vadd.f32 %v198, %v369
    %v416 = vxor.u32 %v415, 2147483648
    %v417 = vmul.f32 %v416, 1.442695
    %v418 = vpow.pop %v417
    %v419 = vadd.f32 %v418, 1.0
    %v420 = vrcp.pop %v419
    %v421 = vmul.f32 1.0, %v420
    %v422 = vadd.f32 %v199, %v371
    %v423 = vxor.u32 %v422, 2147483648
    %v424 = vmul.f32 %v423, 1.442695
    %v425 = vpow.pop %v424
    %v426 = vadd.f32 %v425, 1.0
    %v427 = vrcp.pop %v426
    %v428 = vmul.f32 1.0, %v427
    %v430 = vlaneseq
    %v431 = vshrl.u32 %v430, 7
    %v432 = vsub.s32 0, %v431
    %v433 = vrot.slane %v161, %v432
    %v435 = vadd.f32 %v410, %v433
    %v436 = vmul.f32 %v421, %v435
    %v437 = vadd.f32 %v200, %v436
    %v438 = vtanh.pop %v437
    %v439 = vsub.f32 1.0, %v428
    %v440 = vmul.f32 %v439, %v438
    %v441 = vmul.f32 %v428, %v203
    %v442 = vadd.f32 %v440, %v441
    %v443 = vpack.c.bf16 %v442, %v442
    %v445 = vlaneseq
    %v446 = vshrl.u32 %v445, 7
    %v447 = vsub.s32 0, %v446
    %v448 = vrot.slane %v178, %v447
    %v466 = vunpack.c.l.b16 %v162
    %v467 = vunpack.c.l.b16 %v163
    %v468 = vunpack.c.l.b16 %v164
    %v469 = vunpack.c.l.b16 %v165
    %v470 = vunpack.c.l.b16 %v166
    %v471 = vunpack.c.l.b16 %v167
    %v472 = vunpack.c.l.b16 %v168
    %v473 = vunpack.c.l.b16 %v169
    %v474 = vunpack.c.l.b16 %v170
    %v475 = vunpack.c.l.b16 %v171
    %v476 = vunpack.c.l.b16 %v172
    %v477 = vunpack.c.l.b16 %v173
    %v478 = vunpack.c.l.b16 %v174
    %v479 = vunpack.c.l.b16 %v175
    %v480 = vunpack.c.l.b16 %v176
    %v481 = vunpack.c.l.b16 %v177
    %v482 = vpack.c.b16 %v467, %v466
    %v483 = vpack.c.b16 %v469, %v468
    %v484 = vpack.c.b16 %v471, %v470
    %v485 = vpack.c.b16 %v473, %v472
    %v486 = vpack.c.b16 %v475, %v474
    %v487 = vpack.c.b16 %v477, %v476
    %v488 = vpack.c.b16 %v479, %v478
    %v489 = vpack.c.b16 %v481, %v480
    %498 = vmatprep.subr.bf16.mxu0 0
    %499 = vmatpush1.bf16.msra.mxu0 %v482
    %500 = vmatprep.subr.bf16.mxu0 0
    %501 = vmatpush1.bf16.msra.mxu0 %v483
    %502 = vmatprep.subr.bf16.mxu0 0
    %503 = vmatpush1.bf16.msra.mxu0 %v484
    %504 = vmatprep.subr.bf16.mxu0 0
    %505 = vmatpush1.bf16.msra.mxu0 %v485
    %506 = vmatprep.subr.bf16.mxu0 0
    %507 = vmatpush1.bf16.msra.mxu0 %v486
    %508 = vmatprep.subr.bf16.mxu0 0
    %509 = vmatpush1.bf16.msra.mxu0 %v487
    %510 = vmatprep.subr.bf16.mxu0 0
    %511 = vmatpush1.bf16.msra.mxu0 %v488
    %512 = vmatprep.subr.bf16.mxu0 0
    %513 = vmatpush1.bf16.msra.mxu0 %v489
    %514 = vmatprep.subr.bf16.mxu0 0
    %515 = vmatpush1.bf16.msra.mxu0 0
    %516 = vmatprep.subr.bf16.mxu0 0
    %517 = vmatpush1.bf16.msra.mxu0 0
    %518 = vmatprep.subr.bf16.mxu0 0
    %519 = vmatpush1.bf16.msra.mxu0 0
    %520 = vmatprep.subr.bf16.mxu0 0
    %521 = vmatpush1.bf16.msra.mxu0 0
    %522 = vmatprep.subr.bf16.mxu0 0
    %523 = vmatpush1.bf16.msra.mxu0 0
    %524 = vmatprep.subr.bf16.mxu0 0
    %525 = vmatpush1.bf16.msra.mxu0 0
    %526 = vmatprep.subr.bf16.mxu0 0
    %527 = vmatpush1.bf16.msra.mxu0 0
    %528 = vmatprep.subr.bf16.mxu0 0
    %529 = vmatpush1.bf16.msra.mxu0 0
    %530 = vmatprep.mubr.bf16.mxu0 0
    %531 = vmatmul.mubr.bf16.gmra.mrb[0].mxu0 %v443
    %v532 = vpop.f32.mrb[0].mxu0
    %v533 = vadd.f32 %v448, %v532
    %v534 = vpop.f32.mrb[0].mxu0
    %v535 = vpop.f32.mrb[0].mxu0
    %v536 = vpop.f32.mrb[0].mxu0
    %537 = vdwg.mxu0
    %v538 = vpack.c.bf16 %v533, %v533
    %v541 = vunpack.c.l.s4 1966171168
    %v542 = vunpack.c.0.s8 %v541
    %v543 = vlaneseq
    %v544 = vshrl.u32 %v543, 7
    %v545 = vsub.s32 %v542, %v544
    %v546 = vrot.slane %v538, %v545
    %v547 = vcombine.high %v546, %v546
    %v549 = vunpack.c.l.s4 1966171168
    %v550 = vunpack.c.0.s8 %v549
    %v551 = vlaneseq
    %v552 = vshrl.u32 %v551, 7
    %v553 = vsub.s32 %v550, %v552
    %v554 = vrot.slane %v546, %v553
    %v556 = vunpack.c.l.s4 1966171168
    %v557 = vunpack.c.0.s8 %v556
    %v558 = vlaneseq
    %v559 = vshrl.u32 %v558, 7
    %v560 = vsub.s32 %v557, %v559
    %v561 = vrot.slane %v547, %v560
    %v562 = vcombine.high %v554, %v554
    %v563 = vcombine.high %v561, %v561
    %v564 = vunpack.i.l.s16 %v554
    %v565 = vunpack.i.h.s16 %v554
    %v566 = vunpack.i.l.s16 %v561
    %v567 = vunpack.i.h.s16 %v561
    %v568 = vunpack.i.l.s16 %v562
    %v569 = vunpack.i.h.s16 %v562
    %v570 = vunpack.i.l.s16 %v563
    %v571 = vunpack.i.h.s16 %v563
    %v572 = vpack.i.b16 %v564, %v564
    %v573 = vpack.i.b16 %v565, %v565
    %v574 = vpack.i.b16 %v566, %v566
    %v575 = vpack.i.b16 %v567, %v567
    %v576 = vpack.i.b16 %v568, %v568
    %v577 = vpack.i.b16 %v569, %v569
    %v578 = vpack.i.b16 %v570, %v570
    %v579 = vpack.i.b16 %v571, %v571
    %v580 = vlaneseq
    %v581 = vshrl.u32 %v580, 7
    %v582 = vsub.s32 0, %v581
    %v583 = vrot.slane %v572, %v582
    %v584 = vlaneseq
    %v585 = vshrl.u32 %v584, 7
    %v586 = vsub.s32 0, %v585
    %v587 = vrot.slane %v573, %v586
    %v588 = vlaneseq
    %v589 = vshrl.u32 %v588, 7
    %v590 = vsub.s32 0, %v589
    %v591 = vrot.slane %v574, %v590
    %v592 = vlaneseq
    %v593 = vshrl.u32 %v592, 7
    %v594 = vsub.s32 0, %v593
    %v595 = vrot.slane %v575, %v594
    %v596 = vlaneseq
    %v597 = vshrl.u32 %v596, 7
    %v598 = vsub.s32 0, %v597
    %v599 = vrot.slane %v576, %v598
    %v600 = vlaneseq
    %v601 = vshrl.u32 %v600, 7
    %v602 = vsub.s32 0, %v601
    %v603 = vrot.slane %v577, %v602
    %v604 = vlaneseq
    %v605 = vshrl.u32 %v604, 7
    %v606 = vsub.s32 0, %v605
    %v607 = vrot.slane %v578, %v606
    %v608 = vlaneseq
    %v609 = vshrl.u32 %v608, 7
    %v610 = vsub.s32 0, %v609
    %v611 = vrot.slane %v579, %v610
    %v613 = vpack.i.b16 %v583, %v583
    %v615 = vlaneseq
    %v616 = vshrl.u32 %v615, 7
    %v617 = vsub.s32 0, %v616
    %v618 = vrot.slane %v613, %v617
    %v620 = vpack.i.b16 %v587, %v587
    %v622 = vlaneseq
    %v623 = vshrl.u32 %v622, 7
    %v624 = vsub.s32 0, %v623
    %v625 = vrot.slane %v620, %v624
    %v627 = vpack.i.b16 %v591, %v591
    %v629 = vlaneseq
    %v630 = vshrl.u32 %v629, 7
    %v631 = vsub.s32 0, %v630
    %v632 = vrot.slane %v627, %v631
    %v634 = vpack.i.b16 %v595, %v595
    %v636 = vlaneseq
    %v637 = vshrl.u32 %v636, 7
    %v638 = vsub.s32 0, %v637
    %v639 = vrot.slane %v634, %v638
    %v641 = vpack.i.b16 %v599, %v599
    %v643 = vlaneseq
    %v644 = vshrl.u32 %v643, 7
    %v645 = vsub.s32 0, %v644
    %v646 = vrot.slane %v641, %v645
    %v648 = vpack.i.b16 %v603, %v603
    %v650 = vlaneseq
    %v651 = vshrl.u32 %v650, 7
    %v652 = vsub.s32 0, %v651
    %v653 = vrot.slane %v648, %v652
    %v655 = vpack.i.b16 %v607, %v607
    %v657 = vlaneseq
    %v658 = vshrl.u32 %v657, 7
    %v659 = vsub.s32 0, %v658
    %v660 = vrot.slane %v655, %v659
    %v662 = vpack.i.b16 %v611, %v611
    %v664 = vlaneseq
    %v665 = vshrl.u32 %v664, 7
    %v666 = vsub.s32 0, %v665
    %v667 = vrot.slane %v662, %v666
    %v676 = vunpack.c.l.b16 %v618
    %v677 = vunpack.c.h.b16 %v618
    %v678 = vunpack.c.l.b16 %v625
    %v679 = vunpack.c.h.b16 %v625
    %v680 = vunpack.c.l.b16 %v632
    %v681 = vunpack.c.h.b16 %v632
    %v682 = vunpack.c.l.b16 %v639
    %v683 = vunpack.c.h.b16 %v639
    %v684 = vunpack.c.l.b16 %v646
    %v685 = vunpack.c.h.b16 %v646
    %v686 = vunpack.c.l.b16 %v653
    %v687 = vunpack.c.h.b16 %v653
    %v688 = vunpack.c.l.b16 %v660
    %v689 = vunpack.c.h.b16 %v660
    %v690 = vunpack.c.l.b16 %v667
    %v691 = vunpack.c.h.b16 %v667
    %v692 = vpack.c.b16 %v676, %v676
    %v693 = vpack.c.b16 %v677, %v677
    %v694 = vpack.c.b16 %v678, %v678
    %v695 = vpack.c.b16 %v679, %v679
    %v696 = vpack.c.b16 %v680, %v680
    %v697 = vpack.c.b16 %v681, %v681
    %v698 = vpack.c.b16 %v682, %v682
    %v699 = vpack.c.b16 %v683, %v683
    %v700 = vpack.c.b16 %v684, %v684
    %v701 = vpack.c.b16 %v685, %v685
    %v702 = vpack.c.b16 %v686, %v686
    %v703 = vpack.c.b16 %v687, %v687
    %v704 = vpack.c.b16 %v688, %v688
    %v705 = vpack.c.b16 %v689, %v689
    %v706 = vpack.c.b16 %v690, %v690
    %v707 = vpack.c.b16 %v691, %v691
    %v724 = vadd.bf16 %v179, %v692
    %v725 = vadd.bf16 %v180, %v693
    %v726 = vadd.bf16 %v181, %v694
    %v727 = vadd.bf16 %v182, %v695
    %v728 = vadd.bf16 %v183, %v696
    %v729 = vadd.bf16 %v184, %v697
    %v730 = vadd.bf16 %v185, %v698
    %v731 = vadd.bf16 %v186, %v699
    %v732 = vadd.bf16 %v187, %v700
    %v733 = vadd.bf16 %v188, %v701
    %v734 = vadd.bf16 %v189, %v702
    %v735 = vadd.bf16 %v190, %v703
    %v736 = vadd.bf16 %v191, %v704
    %v737 = vadd.bf16 %v192, %v705
    %v738 = vadd.bf16 %v193, %v706
    %v739 = vadd.bf16 %v194, %v707
    %v740 = vtanh.bf16.pop %v724
    %v741 = vtanh.bf16.pop %v725
    %v742 = vtanh.bf16.pop %v726
    %v743 = vtanh.bf16.pop %v727
    %v744 = vtanh.bf16.pop %v728
    %v745 = vtanh.bf16.pop %v729
    %v746 = vtanh.bf16.pop %v730
    %v747 = vtanh.bf16.pop %v731
    %v748 = vtanh.bf16.pop %v732
    %v749 = vtanh.bf16.pop %v733
    %v750 = vtanh.bf16.pop %v734
    %v751 = vtanh.bf16.pop %v735
    %v752 = vtanh.bf16.pop %v736
    %v753 = vtanh.bf16.pop %v737
    %v754 = vtanh.bf16.pop %v738
    %v755 = vtanh.bf16.pop %v739
    %v757 = vpack.i.b16 %v195, %v195
    %v759 = vlaneseq
    %v760 = vshrl.u32 %v759, 7
    %v761 = vsub.s32 0, %v760
    %v762 = vrot.slane %v757, %v761
    %v764 = vunpack.c.l.b16 %v762
    %v765 = vpack.c.b16 %v764, %v764
    %v767 = vmul.bf16 %v740, %v765
    %v768 = vmul.bf16 %v741, %v765
    %v769 = vmul.bf16 %v742, %v765
    %v770 = vmul.bf16 %v743, %v765
    %v771 = vmul.bf16 %v744, %v765
    %v772 = vmul.bf16 %v745, %v765
    %v773 = vmul.bf16 %v746, %v765
    %v774 = vmul.bf16 %v747, %v765
    %v775 = vmul.bf16 %v748, %v765
    %v776 = vmul.bf16 %v749, %v765
    %v777 = vmul.bf16 %v750, %v765
    %v778 = vmul.bf16 %v751, %v765
    %v779 = vmul.bf16 %v752, %v765
    %v780 = vmul.bf16 %v753, %v765
    %v781 = vmul.bf16 %v754, %v765
    %v782 = vmul.bf16 %v755, %v765
    %v783 = vunpack.c.l.bf16 %v767
    %v784 = vunpack.c.l.bf16 %v768
    %v785 = vunpack.c.l.bf16 %v769
    %v786 = vunpack.c.l.bf16 %v770
    %v787 = vunpack.c.l.bf16 %v771
    %v788 = vunpack.c.l.bf16 %v772
    %v789 = vunpack.c.l.bf16 %v773
    %v790 = vunpack.c.l.bf16 %v774
    %v791 = vunpack.c.l.bf16 %v775
    %v792 = vunpack.c.l.bf16 %v776
    %v793 = vunpack.c.l.bf16 %v777
    %v794 = vunpack.c.l.bf16 %v778
    %v795 = vunpack.c.l.bf16 %v779
    %v796 = vunpack.c.l.bf16 %v780
    %v797 = vunpack.c.l.bf16 %v781
    %v798 = vunpack.c.l.bf16 %v782
    %799 = vadd.xlane.f32.xlu0 %v783
    %v800 = vpop.xlane.xlu0 %799
    %801 = vadd.xlane.f32.xlu0 %v784
    %v802 = vpop.xlane.xlu0 %801
    %803 = vadd.xlane.f32.xlu0 %v785
    %v804 = vpop.xlane.xlu0 %803
    %805 = vadd.xlane.f32.xlu0 %v786
    %v806 = vpop.xlane.xlu0 %805
    %807 = vadd.xlane.f32.xlu0 %v787
    %v808 = vpop.xlane.xlu0 %807
    %809 = vadd.xlane.f32.xlu0 %v788
    %v810 = vpop.xlane.xlu0 %809
    %811 = vadd.xlane.f32.xlu0 %v789
    %v812 = vpop.xlane.xlu0 %811
    %813 = vadd.xlane.f32.xlu0 %v790
    %v814 = vpop.xlane.xlu0 %813
    %815 = vadd.xlane.f32.xlu0 %v791
    %v816 = vpop.xlane.xlu0 %815
    %817 = vadd.xlane.f32.xlu0 %v792
    %v818 = vpop.xlane.xlu0 %817
    %819 = vadd.xlane.f32.xlu0 %v793
    %v820 = vpop.xlane.xlu0 %819
    %821 = vadd.xlane.f32.xlu0 %v794
    %v822 = vpop.xlane.xlu0 %821
    %823 = vadd.xlane.f32.xlu0 %v795
    %v824 = vpop.xlane.xlu0 %823
    %825 = vadd.xlane.f32.xlu0 %v796
    %v826 = vpop.xlane.xlu0 %825
    %827 = vadd.xlane.f32.xlu0 %v797
    %v828 = vpop.xlane.xlu0 %827
    %829 = vadd.xlane.f32.xlu0 %v798
    %v830 = vpop.xlane.xlu0 %829
    %v847 = vlaneseq
    %v848 = vand.u32 %v847, 127
    %v849 = vlaneseq
    %v850 = vshrl.u32 %v849, 7
    %v851 = vsub.s32 %v848, %v850
    %v852 = vrot.slane %v800, %v851
    %v853 = vadd.s32 %v848, 4294967288
    %v854 = vlaneseq
    %v855 = vshrl.u32 %v854, 7
    %v856 = vsub.s32 %v853, %v855
    %v857 = vrot.slane %v802, %v856
    %vm858 = vcmask 130112
    %v859 = vsel %vm858, %v857, %v852
    %v860 = vlaneseq
    %v861 = vshrl.u32 %v860, 7
    %v862 = vsub.s32 %v848, %v861
    %v863 = vrot.slane %v804, %v862
    %v864 = vlaneseq
    %v865 = vshrl.u32 %v864, 7
    %v866 = vsub.s32 %v853, %v865
    %v867 = vrot.slane %v806, %v866
    %v868 = vsel %vm858, %v867, %v863
    %v869 = vlaneseq
    %v870 = vshrl.u32 %v869, 7
    %v871 = vsub.s32 %v848, %v870
    %v872 = vrot.slane %v808, %v871
    %v873 = vlaneseq
    %v874 = vshrl.u32 %v873, 7
    %v875 = vsub.s32 %v853, %v874
    %v876 = vrot.slane %v810, %v875
    %v877 = vsel %vm858, %v876, %v872
    %v878 = vlaneseq
    %v879 = vshrl.u32 %v878, 7
    %v880 = vsub.s32 %v848, %v879
    %v881 = vrot.slane %v812, %v880
    %v882 = vlaneseq
    %v883 = vshrl.u32 %v882, 7
    %v884 = vsub.s32 %v853, %v883
    %v885 = vrot.slane %v814, %v884
    %v886 = vsel %vm858, %v885, %v881
    %v887 = vlaneseq
    %v888 = vshrl.u32 %v887, 7
    %v889 = vsub.s32 %v848, %v888
    %v890 = vrot.slane %v816, %v889
    %v891 = vlaneseq
    %v892 = vshrl.u32 %v891, 7
    %v893 = vsub.s32 %v853, %v892
    %v894 = vrot.slane %v818, %v893
    %v895 = vsel %vm858, %v894, %v890
    %v896 = vlaneseq
    %v897 = vshrl.u32 %v896, 7
    %v898 = vsub.s32 %v848, %v897
    %v899 = vrot.slane %v820, %v898
    %v900 = vlaneseq
    %v901 = vshrl.u32 %v900, 7
    %v902 = vsub.s32 %v853, %v901
    %v903 = vrot.slane %v822, %v902
    %v904 = vsel %vm858, %v903, %v899
    %v905 = vlaneseq
    %v906 = vshrl.u32 %v905, 7
    %v907 = vsub.s32 %v848, %v906
    %v908 = vrot.slane %v824, %v907
    %v909 = vlaneseq
    %v910 = vshrl.u32 %v909, 7
    %v911 = vsub.s32 %v853, %v910
    %v912 = vrot.slane %v826, %v911
    %v913 = vsel %vm858, %v912, %v908
    %v914 = vlaneseq
    %v915 = vshrl.u32 %v914, 7
    %v916 = vsub.s32 %v848, %v915
    %v917 = vrot.slane %v828, %v916
    %v918 = vlaneseq
    %v919 = vshrl.u32 %v918, 7
    %v920 = vsub.s32 %v853, %v919
    %v921 = vrot.slane %v830, %v920
    %v922 = vsel %vm858, %v921, %v917
    %vm923 = vcmask 1041409
    %v924 = vsel %vm923, %v868, %v859
    %vm925 = vcmask 1042434
    %v926 = vsel %vm925, %v877, %v924
    %vm927 = vcmask 1043459
    %v928 = vsel %vm927, %v886, %v926
    %vm929 = vcmask 1044484
    %v930 = vsel %vm929, %v895, %v928
    %vm931 = vcmask 1045509
    %v932 = vsel %vm931, %v904, %v930
    %vm933 = vcmask 1046534
    %v934 = vsel %vm933, %v913, %v932
    %vm935 = vcmask 1047559
    %v936 = vsel %vm935, %v922, %v934
    %vm938 = vcmask 130048
    %v939 = vsel %vm938, %v936, -inf
    %940 = vmax.xlane.f32.xlu0 %v939
    %v941 = vpop.xlane.xlu0 %940
    %v943 = vlaneseq
    %v944 = vshrl.u32 %v943, 7
    %v945 = vsub.s32 0, %v944
    %v946 = vrot.slane %v941, %v945
    %v947 = vlaneseq
    %v948 = vshrl.u32 %v947, 7
    %v949 = vsub.s32 1, %v948
    %v950 = vrot.slane %v941, %v949
    %v951 = vlaneseq
    %v952 = vshrl.u32 %v951, 7
    %v953 = vsub.s32 2, %v952
    %v954 = vrot.slane %v941, %v953
    %v955 = vlaneseq
    %v956 = vshrl.u32 %v955, 7
    %v957 = vsub.s32 3, %v956
    %v958 = vrot.slane %v941, %v957
    %v959 = vlaneseq
    %v960 = vshrl.u32 %v959, 7
    %v961 = vsub.s32 4, %v960
    %v962 = vrot.slane %v941, %v961
    %v963 = vlaneseq
    %v964 = vshrl.u32 %v963, 7
    %v965 = vsub.s32 5, %v964
    %v966 = vrot.slane %v941, %v965
    %v967 = vlaneseq
    %v968 = vshrl.u32 %v967, 7
    %v969 = vsub.s32 6, %v968
    %v970 = vrot.slane %v941, %v969
    %v971 = vlaneseq
    %v972 = vshrl.u32 %v971, 7
    %v973 = vsub.s32 7, %v972
    %v974 = vrot.slane %v941, %v973
    %v983 = vsub.f32 %v800, %v946
    %v984 = vsub.f32 %v802, %v946
    %v985 = vsub.f32 %v804, %v950
    %v986 = vsub.f32 %v806, %v950
    %v987 = vsub.f32 %v808, %v954
    %v988 = vsub.f32 %v810, %v954
    %v989 = vsub.f32 %v812, %v958
    %v990 = vsub.f32 %v814, %v958
    %v991 = vsub.f32 %v816, %v962
    %v992 = vsub.f32 %v818, %v962
    %v993 = vsub.f32 %v820, %v966
    %v994 = vsub.f32 %v822, %v966
    %v995 = vsub.f32 %v824, %v970
    %v996 = vsub.f32 %v826, %v970
    %v997 = vsub.f32 %v828, %v974
    %v998 = vsub.f32 %v830, %v974
    %v999 = vmul.f32 %v983, 1.442695
    %v1000 = vpow.pop %v999
    %v1001 = vmul.f32 %v984, 1.442695
    %v1002 = vpow.pop %v1001
    %v1003 = vmul.f32 %v985, 1.442695
    %v1004 = vpow.pop %v1003
    %v1005 = vmul.f32 %v986, 1.442695
    %v1006 = vpow.pop %v1005
    %v1007 = vmul.f32 %v987, 1.442695
    %v1008 = vpow.pop %v1007
    %v1009 = vmul.f32 %v988, 1.442695
    %v1010 = vpow.pop %v1009
    %v1011 = vmul.f32 %v989, 1.442695
    %v1012 = vpow.pop %v1011
    %v1013 = vmul.f32 %v990, 1.442695
    %v1014 = vpow.pop %v1013
    %v1015 = vmul.f32 %v991, 1.442695
    %v1016 = vpow.pop %v1015
    %v1017 = vmul.f32 %v992, 1.442695
    %v1018 = vpow.pop %v1017
    %v1019 = vmul.f32 %v993, 1.442695
    %v1020 = vpow.pop %v1019
    %v1021 = vmul.f32 %v994, 1.442695
    %v1022 = vpow.pop %v1021
    %v1023 = vmul.f32 %v995, 1.442695
    %v1024 = vpow.pop %v1023
    %v1025 = vmul.f32 %v996, 1.442695
    %v1026 = vpow.pop %v1025
    %v1027 = vmul.f32 %v997, 1.442695
    %v1028 = vpow.pop %v1027
    %v1029 = vmul.f32 %v998, 1.442695
    %v1030 = vpow.pop %v1029
    %1047 = vset.pattern.permute.xlu0 0
    %1048 = vperm.xlu0 %1047, %v1000
    %v1049 = vpop.permute.xlu0 %1048
    %1050 = vset.pattern.permute.xlu0 0
    %1051 = vperm.xlu0 %1050, %v1002
    %v1052 = vpop.permute.xlu0 %1051
    %1053 = vset.pattern.permute.xlu0 0
    %1054 = vperm.xlu0 %1053, %v1004
    %v1055 = vpop.permute.xlu0 %1054
    %1056 = vset.pattern.permute.xlu0 0
    %1057 = vperm.xlu0 %1056, %v1006
    %v1058 = vpop.permute.xlu0 %1057
    %1059 = vset.pattern.permute.xlu0 0
    %1060 = vperm.xlu0 %1059, %v1008
    %v1061 = vpop.permute.xlu0 %1060
    %1062 = vset.pattern.permute.xlu0 0
    %1063 = vperm.xlu0 %1062, %v1010
    %v1064 = vpop.permute.xlu0 %1063
    %1065 = vset.pattern.permute.xlu0 0
    %1066 = vperm.xlu0 %1065, %v1012
    %v1067 = vpop.permute.xlu0 %1066
    %1068 = vset.pattern.permute.xlu0 0
    %1069 = vperm.xlu0 %1068, %v1014
    %v1070 = vpop.permute.xlu0 %1069
    %1071 = vset.pattern.permute.xlu0 0
    %1072 = vperm.xlu0 %1071, %v1016
    %v1073 = vpop.permute.xlu0 %1072
    %1074 = vset.pattern.permute.xlu0 0
    %1075 = vperm.xlu0 %1074, %v1018
    %v1076 = vpop.permute.xlu0 %1075
    %1077 = vset.pattern.permute.xlu0 0
    %1078 = vperm.xlu0 %1077, %v1020
    %v1079 = vpop.permute.xlu0 %1078
    %1080 = vset.pattern.permute.xlu0 0
    %1081 = vperm.xlu0 %1080, %v1022
    %v1082 = vpop.permute.xlu0 %1081
    %1083 = vset.pattern.permute.xlu0 0
    %1084 = vperm.xlu0 %1083, %v1024
    %v1085 = vpop.permute.xlu0 %1084
    %1086 = vset.pattern.permute.xlu0 0
    %1087 = vperm.xlu0 %1086, %v1026
    %v1088 = vpop.permute.xlu0 %1087
    %1089 = vset.pattern.permute.xlu0 0
    %1090 = vperm.xlu0 %1089, %v1028
    %v1091 = vpop.permute.xlu0 %1090
    %1092 = vset.pattern.permute.xlu0 0
    %1093 = vperm.xlu0 %1092, %v1030
    %v1094 = vpop.permute.xlu0 %1093
    %v1095 = vlaneseq
    %v1096 = vshrl.u32 %v1095, 7
    %v1097 = vsub.s32 %v848, %v1096
    %v1098 = vrot.slane %v1049, %v1097
    %v1099 = vlaneseq
    %v1100 = vshrl.u32 %v1099, 7
    %v1101 = vsub.s32 %v853, %v1100
    %v1102 = vrot.slane %v1052, %v1101
    %v1103 = vsel %vm858, %v1102, %v1098
    %v1104 = vlaneseq
    %v1105 = vshrl.u32 %v1104, 7
    %v1106 = vsub.s32 %v848, %v1105
    %v1107 = vrot.slane %v1055, %v1106
    %v1108 = vlaneseq
    %v1109 = vshrl.u32 %v1108, 7
    %v1110 = vsub.s32 %v853, %v1109
    %v1111 = vrot.slane %v1058, %v1110
    %v1112 = vsel %vm858, %v1111, %v1107
    %v1113 = vlaneseq
    %v1114 = vshrl.u32 %v1113, 7
    %v1115 = vsub.s32 %v848, %v1114
    %v1116 = vrot.slane %v1061, %v1115
    %v1117 = vlaneseq
    %v1118 = vshrl.u32 %v1117, 7
    %v1119 = vsub.s32 %v853, %v1118
    %v1120 = vrot.slane %v1064, %v1119
    %v1121 = vsel %vm858, %v1120, %v1116
    %v1122 = vlaneseq
    %v1123 = vshrl.u32 %v1122, 7
    %v1124 = vsub.s32 %v848, %v1123
    %v1125 = vrot.slane %v1067, %v1124
    %v1126 = vlaneseq
    %v1127 = vshrl.u32 %v1126, 7
    %v1128 = vsub.s32 %v853, %v1127
    %v1129 = vrot.slane %v1070, %v1128
    %v1130 = vsel %vm858, %v1129, %v1125
    %v1131 = vlaneseq
    %v1132 = vshrl.u32 %v1131, 7
    %v1133 = vsub.s32 %v848, %v1132
    %v1134 = vrot.slane %v1073, %v1133
    %v1135 = vlaneseq
    %v1136 = vshrl.u32 %v1135, 7
    %v1137 = vsub.s32 %v853, %v1136
    %v1138 = vrot.slane %v1076, %v1137
    %v1139 = vsel %vm858, %v1138, %v1134
    %v1140 = vlaneseq
    %v1141 = vshrl.u32 %v1140, 7
    %v1142 = vsub.s32 %v848, %v1141
    %v1143 = vrot.slane %v1079, %v1142
    %v1144 = vlaneseq
    %v1145 = vshrl.u32 %v1144, 7
    %v1146 = vsub.s32 %v853, %v1145
    %v1147 = vrot.slane %v1082, %v1146
    %v1148 = vsel %vm858, %v1147, %v1143
    %v1149 = vlaneseq
    %v1150 = vshrl.u32 %v1149, 7
    %v1151 = vsub.s32 %v848, %v1150
    %v1152 = vrot.slane %v1085, %v1151
    %v1153 = vlaneseq
    %v1154 = vshrl.u32 %v1153, 7
    %v1155 = vsub.s32 %v853, %v1154
    %v1156 = vrot.slane %v1088, %v1155
    %v1157 = vsel %vm858, %v1156, %v1152
    %v1158 = vlaneseq
    %v1159 = vshrl.u32 %v1158, 7
    %v1160 = vsub.s32 %v848, %v1159
    %v1161 = vrot.slane %v1091, %v1160
    %v1162 = vlaneseq
    %v1163 = vshrl.u32 %v1162, 7
    %v1164 = vsub.s32 %v853, %v1163
    %v1165 = vrot.slane %v1094, %v1164
    %v1166 = vsel %vm858, %v1165, %v1161
    %v1167 = vsel %vm923, %v1112, %v1103
    %v1168 = vsel %vm925, %v1121, %v1167
    %v1169 = vsel %vm927, %v1130, %v1168
    %v1170 = vsel %vm929, %v1139, %v1169
    %v1171 = vsel %vm931, %v1148, %v1170
    %v1172 = vsel %vm933, %v1157, %v1171
    %v1173 = vsel %vm935, %v1166, %v1172
    %v1175 = vsel %vm938, %v1173, 0.0
    %1176 = vadd.xlane.f32.xlu0 %v1175
    %v1177 = vpop.xlane.xlu0 %1176
    %v1178 = vrcp.pop %v1177
    %v1180 = vlaneseq
    %v1181 = vshrl.u32 %v1180, 7
    %v1182 = vsub.s32 0, %v1181
    %v1183 = vrot.slane %v1178, %v1182
    %v1184 = vlaneseq
    %v1185 = vshrl.u32 %v1184, 7
    %v1186 = vsub.s32 1, %v1185
    %v1187 = vrot.slane %v1178, %v1186
    %v1188 = vlaneseq
    %v1189 = vshrl.u32 %v1188, 7
    %v1190 = vsub.s32 2, %v1189
    %v1191 = vrot.slane %v1178, %v1190
    %v1192 = vlaneseq
    %v1193 = vshrl.u32 %v1192, 7
    %v1194 = vsub.s32 3, %v1193
    %v1195 = vrot.slane %v1178, %v1194
    %v1196 = vlaneseq
    %v1197 = vshrl.u32 %v1196, 7
    %v1198 = vsub.s32 4, %v1197
    %v1199 = vrot.slane %v1178, %v1198
    %v1200 = vlaneseq
    %v1201 = vshrl.u32 %v1200, 7
    %v1202 = vsub.s32 5, %v1201
    %v1203 = vrot.slane %v1178, %v1202
    %v1204 = vlaneseq
    %v1205 = vshrl.u32 %v1204, 7
    %v1206 = vsub.s32 6, %v1205
    %v1207 = vrot.slane %v1178, %v1206
    %v1208 = vlaneseq
    %v1209 = vshrl.u32 %v1208, 7
    %v1210 = vsub.s32 7, %v1209
    %v1211 = vrot.slane %v1178, %v1210
    %v1220 = vmul.f32 %v1000, %v1183
    %v1221 = vmul.f32 %v1002, %v1183
    %v1222 = vmul.f32 %v1004, %v1187
    %v1223 = vmul.f32 %v1006, %v1187
    %v1224 = vmul.f32 %v1008, %v1191
    %v1225 = vmul.f32 %v1010, %v1191
    %v1226 = vmul.f32 %v1012, %v1195
    %v1227 = vmul.f32 %v1014, %v1195
    %v1228 = vmul.f32 %v1016, %v1199
    %v1229 = vmul.f32 %v1018, %v1199
    %v1230 = vmul.f32 %v1020, %v1203
    %v1231 = vmul.f32 %v1022, %v1203
    %v1232 = vmul.f32 %v1024, %v1207
    %v1233 = vmul.f32 %v1026, %v1207
    %v1234 = vmul.f32 %v1028, %v1211
    %v1235 = vmul.f32 %v1030, %v1211
    %1252 = vset.pattern.permute.xlu0 0
    %1253 = vperm.xlu0 %1252, %v1220
    %v1254 = vpop.permute.xlu0 %1253
    %1255 = vset.pattern.permute.xlu0 0
    %1256 = vperm.xlu0 %1255, %v1221
    %v1257 = vpop.permute.xlu0 %1256
    %1258 = vset.pattern.permute.xlu0 0
    %1259 = vperm.xlu0 %1258, %v1222
    %v1260 = vpop.permute.xlu0 %1259
    %1261 = vset.pattern.permute.xlu0 0
    %1262 = vperm.xlu0 %1261, %v1223
    %v1263 = vpop.permute.xlu0 %1262
    %1264 = vset.pattern.permute.xlu0 0
    %1265 = vperm.xlu0 %1264, %v1224
    %v1266 = vpop.permute.xlu0 %1265
    %1267 = vset.pattern.permute.xlu0 0
    %1268 = vperm.xlu0 %1267, %v1225
    %v1269 = vpop.permute.xlu0 %1268
    %1270 = vset.pattern.permute.xlu0 0
    %1271 = vperm.xlu0 %1270, %v1226
    %v1272 = vpop.permute.xlu0 %1271
    %1273 = vset.pattern.permute.xlu0 0
    %1274 = vperm.xlu0 %1273, %v1227
    %v1275 = vpop.permute.xlu0 %1274
    %1276 = vset.pattern.permute.xlu0 0
    %1277 = vperm.xlu0 %1276, %v1228
    %v1278 = vpop.permute.xlu0 %1277
    %1279 = vset.pattern.permute.xlu0 0
    %1280 = vperm.xlu0 %1279, %v1229
    %v1281 = vpop.permute.xlu0 %1280
    %1282 = vset.pattern.permute.xlu0 0
    %1283 = vperm.xlu0 %1282, %v1230
    %v1284 = vpop.permute.xlu0 %1283
    %1285 = vset.pattern.permute.xlu0 0
    %1286 = vperm.xlu0 %1285, %v1231
    %v1287 = vpop.permute.xlu0 %1286
    %1288 = vset.pattern.permute.xlu0 0
    %1289 = vperm.xlu0 %1288, %v1232
    %v1290 = vpop.permute.xlu0 %1289
    %1291 = vset.pattern.permute.xlu0 0
    %1292 = vperm.xlu0 %1291, %v1233
    %v1293 = vpop.permute.xlu0 %1292
    %1294 = vset.pattern.permute.xlu0 0
    %1295 = vperm.xlu0 %1294, %v1234
    %v1296 = vpop.permute.xlu0 %1295
    %1297 = vset.pattern.permute.xlu0 0
    %1298 = vperm.xlu0 %1297, %v1235
    %v1299 = vpop.permute.xlu0 %1298
    %v1300 = vlaneseq
    %v1301 = vshrl.u32 %v1300, 7
    %v1302 = vsub.s32 %v848, %v1301
    %v1303 = vrot.slane %v1254, %v1302
    %v1304 = vlaneseq
    %v1305 = vshrl.u32 %v1304, 7
    %v1306 = vsub.s32 %v853, %v1305
    %v1307 = vrot.slane %v1257, %v1306
    %v1308 = vsel %vm858, %v1307, %v1303
    %v1309 = vlaneseq
    %v1310 = vshrl.u32 %v1309, 7
    %v1311 = vsub.s32 %v848, %v1310
    %v1312 = vrot.slane %v1260, %v1311
    %v1313 = vlaneseq
    %v1314 = vshrl.u32 %v1313, 7
    %v1315 = vsub.s32 %v853, %v1314
    %v1316 = vrot.slane %v1263, %v1315
    %v1317 = vsel %vm858, %v1316, %v1312
    %v1318 = vlaneseq
    %v1319 = vshrl.u32 %v1318, 7
    %v1320 = vsub.s32 %v848, %v1319
    %v1321 = vrot.slane %v1266, %v1320
    %v1322 = vlaneseq
    %v1323 = vshrl.u32 %v1322, 7
    %v1324 = vsub.s32 %v853, %v1323
    %v1325 = vrot.slane %v1269, %v1324
    %v1326 = vsel %vm858, %v1325, %v1321
    %v1327 = vlaneseq
    %v1328 = vshrl.u32 %v1327, 7
    %v1329 = vsub.s32 %v848, %v1328
    %v1330 = vrot.slane %v1272, %v1329
    %v1331 = vlaneseq
    %v1332 = vshrl.u32 %v1331, 7
    %v1333 = vsub.s32 %v853, %v1332
    %v1334 = vrot.slane %v1275, %v1333
    %v1335 = vsel %vm858, %v1334, %v1330
    %v1336 = vlaneseq
    %v1337 = vshrl.u32 %v1336, 7
    %v1338 = vsub.s32 %v848, %v1337
    %v1339 = vrot.slane %v1278, %v1338
    %v1340 = vlaneseq
    %v1341 = vshrl.u32 %v1340, 7
    %v1342 = vsub.s32 %v853, %v1341
    %v1343 = vrot.slane %v1281, %v1342
    %v1344 = vsel %vm858, %v1343, %v1339
    %v1345 = vlaneseq
    %v1346 = vshrl.u32 %v1345, 7
    %v1347 = vsub.s32 %v848, %v1346
    %v1348 = vrot.slane %v1284, %v1347
    %v1349 = vlaneseq
    %v1350 = vshrl.u32 %v1349, 7
    %v1351 = vsub.s32 %v853, %v1350
    %v1352 = vrot.slane %v1287, %v1351
    %v1353 = vsel %vm858, %v1352, %v1348
    %v1354 = vlaneseq
    %v1355 = vshrl.u32 %v1354, 7
    %v1356 = vsub.s32 %v848, %v1355
    %v1357 = vrot.slane %v1290, %v1356
    %v1358 = vlaneseq
    %v1359 = vshrl.u32 %v1358, 7
    %v1360 = vsub.s32 %v853, %v1359
    %v1361 = vrot.slane %v1293, %v1360
    %v1362 = vsel %vm858, %v1361, %v1357
    %v1363 = vlaneseq
    %v1364 = vshrl.u32 %v1363, 7
    %v1365 = vsub.s32 %v848, %v1364
    %v1366 = vrot.slane %v1296, %v1365
    %v1367 = vlaneseq
    %v1368 = vshrl.u32 %v1367, 7
    %v1369 = vsub.s32 %v853, %v1368
    %v1370 = vrot.slane %v1299, %v1369
    %v1371 = vsel %vm858, %v1370, %v1366
    %v1372 = vsel %vm923, %v1317, %v1308
    %v1373 = vsel %vm925, %v1326, %v1372
    %v1374 = vsel %vm927, %v1335, %v1373
    %v1375 = vsel %vm929, %v1344, %v1374
    %v1376 = vsel %vm931, %v1353, %v1375
    %v1377 = vsel %vm933, %v1362, %v1376
    %v1378 = vsel %vm935, %v1371, %v1377
    %v1379 = vsel %vm938, %v1378, 0
    %1381 = vmatprep.subr.mxu0 0.0
    %1382 = vmatpush1.msra.mxu0 %v196
    %1383 = vmatprep.subr.mxu0 0.0
    %1384 = vmatpush1.msra.mxu0 %v197
    %1385 = vmatprep.subr.mxu0 0.0
    %1386 = vmatpush1.msra.mxu0 0.0
    %1387 = vmatprep.subr.mxu0 0.0
    %1388 = vmatpush1.msra.mxu0 0.0
    %1389 = vmatprep.subr.mxu0 0.0
    %1390 = vmatpush1.msra.mxu0 0.0
    %1391 = vmatprep.subr.mxu0 0.0
    %1392 = vmatpush1.msra.mxu0 0.0
    %1393 = vmatprep.subr.mxu0 0.0
    %1394 = vmatpush1.msra.mxu0 0.0
    %1395 = vmatprep.subr.mxu0 0.0
    %1396 = vmatpush1.msra.mxu0 0.0
    %1397 = vmatprep.subr.mxu0 0.0
    %1398 = vmatpush1.msra.mxu0 0.0
    %1399 = vmatprep.subr.mxu0 0.0
    %1400 = vmatpush1.msra.mxu0 0.0
    %1401 = vmatprep.subr.mxu0 0.0
    %1402 = vmatpush1.msra.mxu0 0.0
    %1403 = vmatprep.subr.mxu0 0.0
    %1404 = vmatpush1.msra.mxu0 0.0
    %1405 = vmatprep.subr.mxu0 0.0
    %1406 = vmatpush1.msra.mxu0 0.0
    %1407 = vmatprep.subr.mxu0 0.0
    %1408 = vmatpush1.msra.mxu0 0.0
    %1409 = vmatprep.subr.mxu0 0.0
    %1410 = vmatpush1.msra.mxu0 0.0
    %1411 = vmatprep.subr.mxu0 0.0
    %1412 = vmatpush1.msra.mxu0 0.0
    %1413 = vmatprep.subr.mxu0 0.0
    %1414 = vmatpush1.msra.mxu0 0.0
    %1415 = vmatprep.subr.mxu0 0.0
    %1416 = vmatpush1.msra.mxu0 0.0
    %1417 = vmatprep.subr.mxu0 0.0
    %1418 = vmatpush1.msra.mxu0 0.0
    %1419 = vmatprep.subr.mxu0 0.0
    %1420 = vmatpush1.msra.mxu0 0.0
    %1421 = vmatprep.subr.mxu0 0.0
    %1422 = vmatpush1.msra.mxu0 0.0
    %1423 = vmatprep.subr.mxu0 0.0
    %1424 = vmatpush1.msra.mxu0 0.0
    %1425 = vmatprep.subr.mxu0 0.0
    %1426 = vmatpush1.msra.mxu0 0.0
    %1427 = vmatprep.subr.mxu0 0.0
    %1428 = vmatpush1.msra.mxu0 0.0
    %1429 = vmatprep.subr.mxu0 0.0
    %1430 = vmatpush1.msra.mxu0 0.0
    %1431 = vmatprep.subr.mxu0 0.0
    %1432 = vmatpush1.msra.mxu0 0.0
    %1433 = vmatprep.subr.mxu0 0.0
    %1434 = vmatpush1.msra.mxu0 0.0
    %1435 = vmatprep.subr.mxu0 0.0
    %1436 = vmatpush1.msra.mxu0 0.0
    %1437 = vmatprep.subr.mxu0 0.0
    %1438 = vmatpush1.msra.mxu0 0.0
    %1439 = vmatprep.subr.mxu0 0.0
    %1440 = vmatpush1.msra.mxu0 0.0
    %1441 = vmatprep.subr.mxu0 0.0
    %1442 = vmatpush1.msra.mxu0 0.0
    %1443 = vmatprep.subr.mxu0 0.0
    %1444 = vmatpush1.msra.mxu0 0.0
    %1445 = vmatprep.mubr.f32.mxu0 0.0
    %1446 = vmatmul.mubr.f32.gmra.mrb[0].mxu0 %v1379
    %v1447 = vpop.f32.mrb[0].mxu0
    %v1448 = vadd.f32 0.0, %v1447
    %v1449 = vpop.f32.mrb[0].mxu0
    %1450 = vdwg.mxu0
    %v1451 = vtanh.pop %v204
    %v1452 = vmul.f32 %v1451, 0.1
    %v1453 = vadd.f32 %v1452, %v1448
    %v1454 = vsel %vm202, 1, 0
    %1455 = vset.pattern.permute.xlu0 0
    %1456 = vperm.xlu0 %1455, %v1454
    %v1457 = vpop.permute.xlu0 %1456
    %vm1458 = vcmp.eq.s32.totalorder %v1457, 1
    %v1459 = vsel %vm1458, %v1453, %v1451
    %v1460 = vsel %vm1458, %v442, %v203
    %1461 = vst [vmem:[#allocation15] sm:$0xff] %v1459
    %1462 = vst [vmem:[#allocation16] sm:$0xff] %v1460
    %1463 = vst [vmem:[#allocation2] sm:$0xff] %v1460
    %1464 = vst [vmem:[#allocation3] sm:$0xff] %v1459
    %s1465 = scalar_lea.vmem [#allocation4], 24
    %v1466 = vld [vmem:[%s1465] sm:$0xff]
    %v1467 = vld [vmem:[%s1465 + $0x8] sm:$0xff]
    %v1468 = vld [vmem:[%s1465 + $0x10] sm:$0xff]
    %s1469 = scalar_lea.vmem %s1, 8
    %v1470 = vld [vmem:[%s1469] sm:$0xff]
    %vm1471 = vcmp.gt.f32.partialorder %v1470, 0.0
    %v1472 = vld [vmem:[#allocation2] sm:$0xff]
    %v1473 = vld [vmem:[#allocation3] sm:$0xff]
    %v1474 = vpack.c.bf16 %v1472, %v1472
    %1475 = vmatprep.subr.bf16.mxu0 %v287
    %1476 = vmatpush1.bf16.msra.mxu0 %v286
    %1477 = vmatprep.subr.bf16.mxu0 %v290
    %1478 = vmatpush1.bf16.msra.mxu0 %v289
    %1479 = vmatprep.subr.bf16.mxu0 %v293
    %1480 = vmatpush1.bf16.msra.mxu0 %v292
    %1481 = vmatprep.subr.bf16.mxu0 %v296
    %1482 = vmatpush1.bf16.msra.mxu0 %v295
    %1483 = vmatprep.subr.bf16.mxu0 %v299
    %1484 = vmatpush1.bf16.msra.mxu0 %v298
    %1485 = vmatprep.subr.bf16.mxu0 %v302
    %1486 = vmatpush1.bf16.msra.mxu0 %v301
    %1487 = vmatprep.subr.bf16.mxu0 %v305
    %1488 = vmatpush1.bf16.msra.mxu0 %v304
    %1489 = vmatprep.subr.bf16.mxu0 %v308
    %1490 = vmatpush1.bf16.msra.mxu0 %v307
    %1491 = vmatprep.subr.bf16.mxu0 0
    %1492 = vmatpush1.bf16.msra.mxu0 0
    %1493 = vmatprep.subr.bf16.mxu0 0
    %1494 = vmatpush1.bf16.msra.mxu0 0
    %1495 = vmatprep.subr.bf16.mxu0 0
    %1496 = vmatpush1.bf16.msra.mxu0 0
    %1497 = vmatprep.subr.bf16.mxu0 0
    %1498 = vmatpush1.bf16.msra.mxu0 0
    %1499 = vmatprep.subr.bf16.mxu0 0
    %1500 = vmatpush1.bf16.msra.mxu0 0
    %1501 = vmatprep.subr.bf16.mxu0 0
    %1502 = vmatpush1.bf16.msra.mxu0 0
    %1503 = vmatprep.subr.bf16.mxu0 0
    %1504 = vmatpush1.bf16.msra.mxu0 0
    %1505 = vmatprep.subr.bf16.mxu0 0
    %1506 = vmatpush1.bf16.msra.mxu0 0
    %1507 = vmatprep.mubr.bf16.mxu0 0
    %1508 = vmatmul.mubr.bf16.gmra.mrb[0].mxu0 %v1474
    %v1509 = vpop.f32.mrb[0].mxu0
    %v1510 = vadd.f32 0.0, %v1509
    %v1511 = vpop.f32.mrb[0].mxu0
    %v1512 = vadd.f32 0.0, %v1511
    %v1513 = vpop.f32.mrb[0].mxu0
    %v1514 = vpop.f32.mrb[0].mxu0
    %1515 = vdwg.mxu0
    %1516 = vmatprep.subr.bf16.mxu0 0
    %1517 = vmatpush1.bf16.msra.mxu0 %v288
    %1518 = vmatprep.subr.bf16.mxu0 0
    %1519 = vmatpush1.bf16.msra.mxu0 %v291
    %1520 = vmatprep.subr.bf16.mxu0 0
    %1521 = vmatpush1.bf16.msra.mxu0 %v294
    %1522 = vmatprep.subr.bf16.mxu0 0
    %1523 = vmatpush1.bf16.msra.mxu0 %v297
    %1524 = vmatprep.subr.bf16.mxu0 0
    %1525 = vmatpush1.bf16.msra.mxu0 %v300
    %1526 = vmatprep.subr.bf16.mxu0 0
    %1527 = vmatpush1.bf16.msra.mxu0 %v303
    %1528 = vmatprep.subr.bf16.mxu0 0
    %1529 = vmatpush1.bf16.msra.mxu0 %v306
    %1530 = vmatprep.subr.bf16.mxu0 0
    %1531 = vmatpush1.bf16.msra.mxu0 %v309
    %1532 = vmatprep.subr.bf16.mxu0 0
    %1533 = vmatpush1.bf16.msra.mxu0 0
    %1534 = vmatprep.subr.bf16.mxu0 0
    %1535 = vmatpush1.bf16.msra.mxu0 0
    %1536 = vmatprep.subr.bf16.mxu0 0
    %1537 = vmatpush1.bf16.msra.mxu0 0
    %1538 = vmatprep.subr.bf16.mxu0 0
    %1539 = vmatpush1.bf16.msra.mxu0 0
    %1540 = vmatprep.subr.bf16.mxu0 0
    %1541 = vmatpush1.bf16.msra.mxu0 0
    %1542 = vmatprep.subr.bf16.mxu0 0
    %1543 = vmatpush1.bf16.msra.mxu0 0
    %1544 = vmatprep.subr.bf16.mxu0 0
    %1545 = vmatpush1.bf16.msra.mxu0 0
    %1546 = vmatprep.subr.bf16.mxu0 0
    %1547 = vmatpush1.bf16.msra.mxu0 0
    %1548 = vmatprep.mubr.bf16.mxu0 0
    %1549 = vmatmul.mubr.bf16.gmra.mrb[0].mxu0 %v1474
    %v1550 = vpop.f32.mrb[0].mxu0
    %v1551 = vadd.f32 0.0, %v1550
    %v1552 = vpop.f32.mrb[0].mxu0
    %v1553 = vpop.f32.mrb[0].mxu0
    %v1554 = vpop.f32.mrb[0].mxu0
    %1555 = vdwg.mxu0
    %v1556 = vadd.f32 %v1466, %v1510
    %v1557 = vxor.u32 %v1556, 2147483648
    %v1558 = vmul.f32 %v1557, 1.442695
    %v1559 = vpow.pop %v1558
    %v1560 = vadd.f32 %v1559, 1.0
    %v1561 = vrcp.pop %v1560
    %v1562 = vmul.f32 1.0, %v1561
    %v1563 = vadd.f32 %v1467, %v1512
    %v1564 = vxor.u32 %v1563, 2147483648
    %v1565 = vmul.f32 %v1564, 1.442695
    %v1566 = vpow.pop %v1565
    %v1567 = vadd.f32 %v1566, 1.0
    %v1568 = vrcp.pop %v1567
    %v1569 = vmul.f32 1.0, %v1568
    %v1570 = vadd.f32 %v1551, %v433
    %v1571 = vmul.f32 %v1562, %v1570
    %v1572 = vadd.f32 %v1468, %v1571
    %v1573 = vtanh.pop %v1572
    %v1574 = vsub.f32 1.0, %v1569
    %v1575 = vmul.f32 %v1574, %v1573
    %v1576 = vmul.f32 %v1569, %v1472
    %v1577 = vadd.f32 %v1575, %v1576
    %v1578 = vpack.c.bf16 %v1577, %v1577
    %1579 = vmatprep.subr.bf16.mxu0 0
    %1580 = vmatpush1.bf16.msra.mxu0 %v482
    %1581 = vmatprep.subr.bf16.mxu0 0
    %1582 = vmatpush1.bf16.msra.mxu0 %v483
    %1583 = vmatprep.subr.bf16.mxu0 0
    %1584 = vmatpush1.bf16.msra.mxu0 %v484
    %1585 = vmatprep.subr.bf16.mxu0 0
    %1586 = vmatpush1.bf16.msra.mxu0 %v485
    %1587 = vmatprep.subr.bf16.mxu0 0
    %1588 = vmatpush1.bf16.msra.mxu0 %v486
    %1589 = vmatprep.subr.bf16.mxu0 0
    %1590 = vmatpush1.bf16.msra.mxu0 %v487
    %1591 = vmatprep.subr.bf16.mxu0 0
    %1592 = vmatpush1.bf16.msra.mxu0 %v488
    %1593 = vmatprep.subr.bf16.mxu0 0
    %1594 = vmatpush1.bf16.msra.mxu0 %v489
    %1595 = vmatprep.subr.bf16.mxu0 0
    %1596 = vmatpush1.bf16.msra.mxu0 0
    %1597 = vmatprep.subr.bf16.mxu0 0
    %1598 = vmatpush1.bf16.msra.mxu0 0
    %1599 = vmatprep.subr.bf16.mxu0 0
    %1600 = vmatpush1.bf16.msra.mxu0 0
    %1601 = vmatprep.subr.bf16.mxu0 0
    %1602 = vmatpush1.bf16.msra.mxu0 0
    %1603 = vmatprep.subr.bf16.mxu0 0
    %1604 = vmatpush1.bf16.msra.mxu0 0
    %1605 = vmatprep.subr.bf16.mxu0 0
    %1606 = vmatpush1.bf16.msra.mxu0 0
    %1607 = vmatprep.subr.bf16.mxu0 0
    %1608 = vmatpush1.bf16.msra.mxu0 0
    %1609 = vmatprep.subr.bf16.mxu0 0
    %1610 = vmatpush1.bf16.msra.mxu0 0
    %1611 = vmatprep.mubr.bf16.mxu0 0
    %1612 = vmatmul.mubr.bf16.gmra.mrb[0].mxu0 %v1578
    %v1613 = vpop.f32.mrb[0].mxu0
    %v1614 = vadd.f32 %v448, %v1613
    %v1615 = vpop.f32.mrb[0].mxu0
    %v1616 = vpop.f32.mrb[0].mxu0
    %v1617 = vpop.f32.mrb[0].mxu0
    %1618 = vdwg.mxu0
    %v1619 = vpack.c.bf16 %v1614, %v1614
    %v1622 = vunpack.c.l.s4 1966171168
    %v1623 = vunpack.c.0.s8 %v1622
    %v1624 = vlaneseq
    %v1625 = vshrl.u32 %v1624, 7
    %v1626 = vsub.s32 %v1623, %v1625
    %v1627 = vrot.slane %v1619, %v1626
    %v1628 = vcombine.high %v1627, %v1627
    %v1630 = vunpack.c.l.s4 1966171168
    %v1631 = vunpack.c.0.s8 %v1630
    %v1632 = vlaneseq
    %v1633 = vshrl.u32 %v1632, 7
    %v1634 = vsub.s32 %v1631, %v1633
    %v1635 = vrot.slane %v1627, %v1634
    %v1637 = vunpack.c.l.s4 1966171168
    %v1638 = vunpack.c.0.s8 %v1637
    %v1639 = vlaneseq
    %v1640 = vshrl.u32 %v1639, 7
    %v1641 = vsub.s32 %v1638, %v1640
    %v1642 = vrot.slane %v1628, %v1641
    %v1643 = vcombine.high %v1635, %v1635
    %v1644 = vcombine.high %v1642, %v1642
    %v1645 = vunpack.i.l.s16 %v1635
    %v1646 = vunpack.i.h.s16 %v1635
    %v1647 = vunpack.i.l.s16 %v1642
    %v1648 = vunpack.i.h.s16 %v1642
    %v1649 = vunpack.i.l.s16 %v1643
    %v1650 = vunpack.i.h.s16 %v1643
    %v1651 = vunpack.i.l.s16 %v1644
    %v1652 = vunpack.i.h.s16 %v1644
    %v1653 = vpack.i.b16 %v1645, %v1645
    %v1654 = vpack.i.b16 %v1646, %v1646
    %v1655 = vpack.i.b16 %v1647, %v1647
    %v1656 = vpack.i.b16 %v1648, %v1648
    %v1657 = vpack.i.b16 %v1649, %v1649
    %v1658 = vpack.i.b16 %v1650, %v1650
    %v1659 = vpack.i.b16 %v1651, %v1651
    %v1660 = vpack.i.b16 %v1652, %v1652
    %v1661 = vlaneseq
    %v1662 = vshrl.u32 %v1661, 7
    %v1663 = vsub.s32 0, %v1662
    %v1664 = vrot.slane %v1653, %v1663
    %v1665 = vlaneseq
    %v1666 = vshrl.u32 %v1665, 7
    %v1667 = vsub.s32 0, %v1666
    %v1668 = vrot.slane %v1654, %v1667
    %v1669 = vlaneseq
    %v1670 = vshrl.u32 %v1669, 7
    %v1671 = vsub.s32 0, %v1670
    %v1672 = vrot.slane %v1655, %v1671
    %v1673 = vlaneseq
    %v1674 = vshrl.u32 %v1673, 7
    %v1675 = vsub.s32 0, %v1674
    %v1676 = vrot.slane %v1656, %v1675
    %v1677 = vlaneseq
    %v1678 = vshrl.u32 %v1677, 7
    %v1679 = vsub.s32 0, %v1678
    %v1680 = vrot.slane %v1657, %v1679
    %v1681 = vlaneseq
    %v1682 = vshrl.u32 %v1681, 7
    %v1683 = vsub.s32 0, %v1682
    %v1684 = vrot.slane %v1658, %v1683
    %v1685 = vlaneseq
    %v1686 = vshrl.u32 %v1685, 7
    %v1687 = vsub.s32 0, %v1686
    %v1688 = vrot.slane %v1659, %v1687
    %v1689 = vlaneseq
    %v1690 = vshrl.u32 %v1689, 7
    %v1691 = vsub.s32 0, %v1690
    %v1692 = vrot.slane %v1660, %v1691
    %v1694 = vpack.i.b16 %v1664, %v1664
    %v1696 = vlaneseq
    %v1697 = vshrl.u32 %v1696, 7
    %v1698 = vsub.s32 0, %v1697
    %v1699 = vrot.slane %v1694, %v1698
    %v1701 = vpack.i.b16 %v1668, %v1668
    %v1703 = vlaneseq
    %v1704 = vshrl.u32 %v1703, 7
    %v1705 = vsub.s32 0, %v1704
    %v1706 = vrot.slane %v1701, %v1705
    %v1708 = vpack.i.b16 %v1672, %v1672
    %v1710 = vlaneseq
    %v1711 = vshrl.u32 %v1710, 7
    %v1712 = vsub.s32 0, %v1711
    %v1713 = vrot.slane %v1708, %v1712
    %v1715 = vpack.i.b16 %v1676, %v1676
    %v1717 = vlaneseq
    %v1718 = vshrl.u32 %v1717, 7
    %v1719 = vsub.s32 0, %v1718
    %v1720 = vrot.slane %v1715, %v1719
    %v1722 = vpack.i.b16 %v1680, %v1680
    %v1724 = vlaneseq
    %v1725 = vshrl.u32 %v1724, 7
    %v1726 = vsub.s32 0, %v1725
    %v1727 = vrot.slane %v1722, %v1726
    %v1729 = vpack.i.b16 %v1684, %v1684
    %v1731 = vlaneseq
    %v1732 = vshrl.u32 %v1731, 7
    %v1733 = vsub.s32 0, %v1732
    %v1734 = vrot.slane %v1729, %v1733
    %v1736 = vpack.i.b16 %v1688, %v1688
    %v1738 = vlaneseq
    %v1739 = vshrl.u32 %v1738, 7
    %v1740 = vsub.s32 0, %v1739
    %v1741 = vrot.slane %v1736, %v1740
    %v1743 = vpack.i.b16 %v1692, %v1692
    %v1745 = vlaneseq
    %v1746 = vshrl.u32 %v1745, 7
    %v1747 = vsub.s32 0, %v1746
    %v1748 = vrot.slane %v1743, %v1747
    %v1757 = vunpack.c.l.b16 %v1699
    %v1758 = vunpack.c.h.b16 %v1699
    %v1759 = vunpack.c.l.b16 %v1706
    %v1760 = vunpack.c.h.b16 %v1706
    %v1761 = vunpack.c.l.b16 %v1713
    %v1762 = vunpack.c.h.b16 %v1713
    %v1763 = vunpack.c.l.b16 %v1720
    %v1764 = vunpack.c.h.b16 %v1720
    %v1765 = vunpack.c.l.b16 %v1727
    %v1766 = vunpack.c.h.b16 %v1727
    %v1767 = vunpack.c.l.b16 %v1734
    %v1768 = vunpack.c.h.b16 %v1734
    %v1769 = vunpack.c.l.b16 %v1741
    %v1770 = vunpack.c.h.b16 %v1741
    %v1771 = vunpack.c.l.b16 %v1748
    %v1772 = vunpack.c.h.b16 %v1748
    %v1773 = vpack.c.b16 %v1757, %v1757
    %v1774 = vpack.c.b16 %v1758, %v1758
    %v1775 = vpack.c.b16 %v1759, %v1759
    %v1776 = vpack.c.b16 %v1760, %v1760
    %v1777 = vpack.c.b16 %v1761, %v1761
    %v1778 = vpack.c.b16 %v1762, %v1762
    %v1779 = vpack.c.b16 %v1763, %v1763
    %v1780 = vpack.c.b16 %v1764, %v1764
    %v1781 = vpack.c.b16 %v1765, %v1765
    %v1782 = vpack.c.b16 %v1766, %v1766
    %v1783 = vpack.c.b16 %v1767, %v1767
    %v1784 = vpack.c.b16 %v1768, %v1768
    %v1785 = vpack.c.b16 %v1769, %v1769
    %v1786 = vpack.c.b16 %v1770, %v1770
    %v1787 = vpack.c.b16 %v1771, %v1771
    %v1788 = vpack.c.b16 %v1772, %v1772
    %v1805 = vadd.bf16 %v179, %v1773
    %v1806 = vadd.bf16 %v180, %v1774
    %v1807 = vadd.bf16 %v181, %v1775
    %v1808 = vadd.bf16 %v182, %v1776
    %v1809 = vadd.bf16 %v183, %v1777
    %v1810 = vadd.bf16 %v184, %v1778
    %v1811 = vadd.bf16 %v185, %v1779
    %v1812 = vadd.bf16 %v186, %v1780
    %v1813 = vadd.bf16 %v187, %v1781
    %v1814 = vadd.bf16 %v188, %v1782
    %v1815 = vadd.bf16 %v189, %v1783
    %v1816 = vadd.bf16 %v190, %v1784
    %v1817 = vadd.bf16 %v191, %v1785
    %v1818 = vadd.bf16 %v192, %v1786
    %v1819 = vadd.bf16 %v193, %v1787
    %v1820 = vadd.bf16 %v194, %v1788
    %v1821 = vtanh.bf16.pop %v1805
    %v1822 = vtanh.bf16.pop %v1806
    %v1823 = vtanh.bf16.pop %v1807
    %v1824 = vtanh.bf16.pop %v1808
    %v1825 = vtanh.bf16.pop %v1809
    %v1826 = vtanh.bf16.pop %v1810
    %v1827 = vtanh.bf16.pop %v1811
    %v1828 = vtanh.bf16.pop %v1812
    %v1829 = vtanh.bf16.pop %v1813
    %v1830 = vtanh.bf16.pop %v1814
    %v1831 = vtanh.bf16.pop %v1815
    %v1832 = vtanh.bf16.pop %v1816
    %v1833 = vtanh.bf16.pop %v1817
    %v1834 = vtanh.bf16.pop %v1818
    %v1835 = vtanh.bf16.pop %v1819
    %v1836 = vtanh.bf16.pop %v1820
    %v1837 = vmul.bf16 %v1821, %v765
    %v1838 = vmul.bf16 %v1822, %v765
    %v1839 = vmul.bf16 %v1823, %v765
    %v1840 = vmul.bf16 %v1824, %v765
    %v1841 = vmul.bf16 %v1825, %v765
    %v1842 = vmul.bf16 %v1826, %v765
    %v1843 = vmul.bf16 %v1827, %v765
    %v1844 = vmul.bf16 %v1828, %v765
    %v1845 = vmul.bf16 %v1829, %v765
    %v1846 = vmul.bf16 %v1830, %v765
    %v1847 = vmul.bf16 %v1831, %v765
    %v1848 = vmul.bf16 %v1832, %v765
    %v1849 = vmul.bf16 %v1833, %v765
    %v1850 = vmul.bf16 %v1834, %v765
    %v1851 = vmul.bf16 %v1835, %v765
    %v1852 = vmul.bf16 %v1836, %v765
    %v1853 = vunpack.c.l.bf16 %v1837
    %v1854 = vunpack.c.l.bf16 %v1838
    %v1855 = vunpack.c.l.bf16 %v1839
    %v1856 = vunpack.c.l.bf16 %v1840
    %v1857 = vunpack.c.l.bf16 %v1841
    %v1858 = vunpack.c.l.bf16 %v1842
    %v1859 = vunpack.c.l.bf16 %v1843
    %v1860 = vunpack.c.l.bf16 %v1844
    %v1861 = vunpack.c.l.bf16 %v1845
    %v1862 = vunpack.c.l.bf16 %v1846
    %v1863 = vunpack.c.l.bf16 %v1847
    %v1864 = vunpack.c.l.bf16 %v1848
    %v1865 = vunpack.c.l.bf16 %v1849
    %v1866 = vunpack.c.l.bf16 %v1850
    %v1867 = vunpack.c.l.bf16 %v1851
    %v1868 = vunpack.c.l.bf16 %v1852
    %1869 = vadd.xlane.f32.xlu0 %v1853
    %v1870 = vpop.xlane.xlu0 %1869
    %1871 = vadd.xlane.f32.xlu0 %v1854
    %v1872 = vpop.xlane.xlu0 %1871
    %1873 = vadd.xlane.f32.xlu0 %v1855
    %v1874 = vpop.xlane.xlu0 %1873
    %1875 = vadd.xlane.f32.xlu0 %v1856
    %v1876 = vpop.xlane.xlu0 %1875
    %1877 = vadd.xlane.f32.xlu0 %v1857
    %v1878 = vpop.xlane.xlu0 %1877
    %1879 = vadd.xlane.f32.xlu0 %v1858
    %v1880 = vpop.xlane.xlu0 %1879
    %1881 = vadd.xlane.f32.xlu0 %v1859
    %v1882 = vpop.xlane.xlu0 %1881
    %1883 = vadd.xlane.f32.xlu0 %v1860
    %v1884 = vpop.xlane.xlu0 %1883
    %1885 = vadd.xlane.f32.xlu0 %v1861
    %v1886 = vpop.xlane.xlu0 %1885
    %1887 = vadd.xlane.f32.xlu0 %v1862
    %v1888 = vpop.xlane.xlu0 %1887
    %1889 = vadd.xlane.f32.xlu0 %v1863
    %v1890 = vpop.xlane.xlu0 %1889
    %1891 = vadd.xlane.f32.xlu0 %v1864
    %v1892 = vpop.xlane.xlu0 %1891
    %1893 = vadd.xlane.f32.xlu0 %v1865
    %v1894 = vpop.xlane.xlu0 %1893
    %1895 = vadd.xlane.f32.xlu0 %v1866
    %v1896 = vpop.xlane.xlu0 %1895
    %1897 = vadd.xlane.f32.xlu0 %v1867
    %v1898 = vpop.xlane.xlu0 %1897
    %1899 = vadd.xlane.f32.xlu0 %v1868
    %v1900 = vpop.xlane.xlu0 %1899
    %v1917 = vlaneseq
    %v1918 = vshrl.u32 %v1917, 7
    %v1919 = vsub.s32 %v848, %v1918
    %v1920 = vrot.slane %v1870, %v1919
    %v1921 = vlaneseq
    %v1922 = vshrl.u32 %v1921, 7
    %v1923 = vsub.s32 %v853, %v1922
    %v1924 = vrot.slane %v1872, %v1923
    %v1925 = vsel %vm858, %v1924, %v1920
    %v1926 = vlaneseq
    %v1927 = vshrl.u32 %v1926, 7
    %v1928 = vsub.s32 %v848, %v1927
    %v1929 = vrot.slane %v1874, %v1928
    %v1930 = vlaneseq
    %v1931 = vshrl.u32 %v1930, 7
    %v1932 = vsub.s32 %v853, %v1931
    %v1933 = vrot.slane %v1876, %v1932
    %v1934 = vsel %vm858, %v1933, %v1929
    %v1935 = vlaneseq
    %v1936 = vshrl.u32 %v1935, 7
    %v1937 = vsub.s32 %v848, %v1936
    %v1938 = vrot.slane %v1878, %v1937
    %v1939 = vlaneseq
    %v1940 = vshrl.u32 %v1939, 7
    %v1941 = vsub.s32 %v853, %v1940
    %v1942 = vrot.slane %v1880, %v1941
    %v1943 = vsel %vm858, %v1942, %v1938
    %v1944 = vlaneseq
    %v1945 = vshrl.u32 %v1944, 7
    %v1946 = vsub.s32 %v848, %v1945
    %v1947 = vrot.slane %v1882, %v1946
    %v1948 = vlaneseq
    %v1949 = vshrl.u32 %v1948, 7
    %v1950 = vsub.s32 %v853, %v1949
    %v1951 = vrot.slane %v1884, %v1950
    %v1952 = vsel %vm858, %v1951, %v1947
    %v1953 = vlaneseq
    %v1954 = vshrl.u32 %v1953, 7
    %v1955 = vsub.s32 %v848, %v1954
    %v1956 = vrot.slane %v1886, %v1955
    %v1957 = vlaneseq
    %v1958 = vshrl.u32 %v1957, 7
    %v1959 = vsub.s32 %v853, %v1958
    %v1960 = vrot.slane %v1888, %v1959
    %v1961 = vsel %vm858, %v1960, %v1956
    %v1962 = vlaneseq
    %v1963 = vshrl.u32 %v1962, 7
    %v1964 = vsub.s32 %v848, %v1963
    %v1965 = vrot.slane %v1890, %v1964
    %v1966 = vlaneseq
    %v1967 = vshrl.u32 %v1966, 7
    %v1968 = vsub.s32 %v853, %v1967
    %v1969 = vrot.slane %v1892, %v1968
    %v1970 = vsel %vm858, %v1969, %v1965
    %v1971 = vlaneseq
    %v1972 = vshrl.u32 %v1971, 7
    %v1973 = vsub.s32 %v848, %v1972
    %v1974 = vrot.slane %v1894, %v1973
    %v1975 = vlaneseq
    %v1976 = vshrl.u32 %v1975, 7
    %v1977 = vsub.s32 %v853, %v1976
    %v1978 = vrot.slane %v1896, %v1977
    %v1979 = vsel %vm858, %v1978, %v1974
    %v1980 = vlaneseq
    %v1981 = vshrl.u32 %v1980, 7
    %v1982 = vsub.s32 %v848, %v1981
    %v1983 = vrot.slane %v1898, %v1982
    %v1984 = vlaneseq
    %v1985 = vshrl.u32 %v1984, 7
    %v1986 = vsub.s32 %v853, %v1985
    %v1987 = vrot.slane %v1900, %v1986
    %v1988 = vsel %vm858, %v1987, %v1983
    %v1989 = vsel %vm923, %v1934, %v1925
    %v1990 = vsel %vm925, %v1943, %v1989
    %v1991 = vsel %vm927, %v1952, %v1990
    %v1992 = vsel %vm929, %v1961, %v1991
    %v1993 = vsel %vm931, %v1970, %v1992
    %v1994 = vsel %vm933, %v1979, %v1993
    %v1995 = vsel %vm935, %v1988, %v1994
    %v1997 = vsel %vm938, %v1995, -inf
    %1998 = vmax.xlane.f32.xlu0 %v1997
    %v1999 = vpop.xlane.xlu0 %1998
    %v2001 = vlaneseq
    %v2002 = vshrl.u32 %v2001, 7
    %v2003 = vsub.s32 0, %v2002
    %v2004 = vrot.slane %v1999, %v2003
    %v2005 = vlaneseq
    %v2006 = vshrl.u32 %v2005, 7
    %v2007 = vsub.s32 1, %v2006
    %v2008 = vrot.slane %v1999, %v2007
    %v2009 = vlaneseq
    %v2010 = vshrl.u32 %v2009, 7
    %v2011 = vsub.s32 2, %v2010
    %v2012 = vrot.slane %v1999, %v2011
    %v2013 = vlaneseq
    %v2014 = vshrl.u32 %v2013, 7
    %v2015 = vsub.s32 3, %v2014
    %v2016 = vrot.slane %v1999, %v2015
    %v2017 = vlaneseq
    %v2018 = vshrl.u32 %v2017, 7
    %v2019 = vsub.s32 4, %v2018
    %v2020 = vrot.slane %v1999, %v2019
    %v2021 = vlaneseq
    %v2022 = vshrl.u32 %v2021, 7
    %v2023 = vsub.s32 5, %v2022
    %v2024 = vrot.slane %v1999, %v2023
    %v2025 = vlaneseq
    %v2026 = vshrl.u32 %v2025, 7
    %v2027 = vsub.s32 6, %v2026
    %v2028 = vrot.slane %v1999, %v2027
    %v2029 = vlaneseq
    %v2030 = vshrl.u32 %v2029, 7
    %v2031 = vsub.s32 7, %v2030
    %v2032 = vrot.slane %v1999, %v2031
    %v2041 = vsub.f32 %v1870, %v2004
    %v2042 = vsub.f32 %v1872, %v2004
    %v2043 = vsub.f32 %v1874, %v2008
    %v2044 = vsub.f32 %v1876, %v2008
    %v2045 = vsub.f32 %v1878, %v2012
    %v2046 = vsub.f32 %v1880, %v2012
    %v2047 = vsub.f32 %v1882, %v2016
    %v2048 = vsub.f32 %v1884, %v2016
    %v2049 = vsub.f32 %v1886, %v2020
    %v2050 = vsub.f32 %v1888, %v2020
    %v2051 = vsub.f32 %v1890, %v2024
    %v2052 = vsub.f32 %v1892, %v2024
    %v2053 = vsub.f32 %v1894, %v2028
    %v2054 = vsub.f32 %v1896, %v2028
    %v2055 = vsub.f32 %v1898, %v2032
    %v2056 = vsub.f32 %v1900, %v2032
    %v2057 = vmul.f32 %v2041, 1.442695
    %v2058 = vpow.pop %v2057
    %v2059 = vmul.f32 %v2042, 1.442695
    %v2060 = vpow.pop %v2059
    %v2061 = vmul.f32 %v2043, 1.442695
    %v2062 = vpow.pop %v2061
    %v2063 = vmul.f32 %v2044, 1.442695
    %v2064 = vpow.pop %v2063
    %v2065 = vmul.f32 %v2045, 1.442695
    %v2066 = vpow.pop %v2065
    %v2067 = vmul.f32 %v2046, 1.442695
    %v2068 = vpow.pop %v2067
    %v2069 = vmul.f32 %v2047, 1.442695
    %v2070 = vpow.pop %v2069
    %v2071 = vmul.f32 %v2048, 1.442695
    %v2072 = vpow.pop %v2071
    %v2073 = vmul.f32 %v2049, 1.442695
    %v2074 = vpow.pop %v2073
    %v2075 = vmul.f32 %v2050, 1.442695
    %v2076 = vpow.pop %v2075
    %v2077 = vmul.f32 %v2051, 1.442695
    %v2078 = vpow.pop %v2077
    %v2079 = vmul.f32 %v2052, 1.442695
    %v2080 = vpow.pop %v2079
    %v2081 = vmul.f32 %v2053, 1.442695
    %v2082 = vpow.pop %v2081
    %v2083 = vmul.f32 %v2054, 1.442695
    %v2084 = vpow.pop %v2083
    %v2085 = vmul.f32 %v2055, 1.442695
    %v2086 = vpow.pop %v2085
    %v2087 = vmul.f32 %v2056, 1.442695
    %v2088 = vpow.pop %v2087
    %2105 = vset.pattern.permute.xlu0 0
    %2106 = vperm.xlu0 %2105, %v2058
    %v2107 = vpop.permute.xlu0 %2106
    %2108 = vset.pattern.permute.xlu0 0
    %2109 = vperm.xlu0 %2108, %v2060
    %v2110 = vpop.permute.xlu0 %2109
    %2111 = vset.pattern.permute.xlu0 0
    %2112 = vperm.xlu0 %2111, %v2062
    %v2113 = vpop.permute.xlu0 %2112
    %2114 = vset.pattern.permute.xlu0 0
    %2115 = vperm.xlu0 %2114, %v2064
    %v2116 = vpop.permute.xlu0 %2115
    %2117 = vset.pattern.permute.xlu0 0
    %2118 = vperm.xlu0 %2117, %v2066
    %v2119 = vpop.permute.xlu0 %2118
    %2120 = vset.pattern.permute.xlu0 0
    %2121 = vperm.xlu0 %2120, %v2068
    %v2122 = vpop.permute.xlu0 %2121
    %2123 = vset.pattern.permute.xlu0 0
    %2124 = vperm.xlu0 %2123, %v2070
    %v2125 = vpop.permute.xlu0 %2124
    %2126 = vset.pattern.permute.xlu0 0
    %2127 = vperm.xlu0 %2126, %v2072
    %v2128 = vpop.permute.xlu0 %2127
    %2129 = vset.pattern.permute.xlu0 0
    %2130 = vperm.xlu0 %2129, %v2074
    %v2131 = vpop.permute.xlu0 %2130
    %2132 = vset.pattern.permute.xlu0 0
    %2133 = vperm.xlu0 %2132, %v2076
    %v2134 = vpop.permute.xlu0 %2133
    %2135 = vset.pattern.permute.xlu0 0
    %2136 = vperm.xlu0 %2135, %v2078
    %v2137 = vpop.permute.xlu0 %2136
    %2138 = vset.pattern.permute.xlu0 0
    %2139 = vperm.xlu0 %2138, %v2080
    %v2140 = vpop.permute.xlu0 %2139
    %2141 = vset.pattern.permute.xlu0 0
    %2142 = vperm.xlu0 %2141, %v2082
    %v2143 = vpop.permute.xlu0 %2142
    %2144 = vset.pattern.permute.xlu0 0
    %2145 = vperm.xlu0 %2144, %v2084
    %v2146 = vpop.permute.xlu0 %2145
    %2147 = vset.pattern.permute.xlu0 0
    %2148 = vperm.xlu0 %2147, %v2086
    %v2149 = vpop.permute.xlu0 %2148
    %2150 = vset.pattern.permute.xlu0 0
    %2151 = vperm.xlu0 %2150, %v2088
    %v2152 = vpop.permute.xlu0 %2151
    %v2153 = vlaneseq
    %v2154 = vshrl.u32 %v2153, 7
    %v2155 = vsub.s32 %v848, %v2154
    %v2156 = vrot.slane %v2107, %v2155
    %v2157 = vlaneseq
    %v2158 = vshrl.u32 %v2157, 7
    %v2159 = vsub.s32 %v853, %v2158
    %v2160 = vrot.slane %v2110, %v2159
    %v2161 = vsel %vm858, %v2160, %v2156
    %v2162 = vlaneseq
    %v2163 = vshrl.u32 %v2162, 7
    %v2164 = vsub.s32 %v848, %v2163
    %v2165 = vrot.slane %v2113, %v2164
    %v2166 = vlaneseq
    %v2167 = vshrl.u32 %v2166, 7
    %v2168 = vsub.s32 %v853, %v2167
    %v2169 = vrot.slane %v2116, %v2168
    %v2170 = vsel %vm858, %v2169, %v2165
    %v2171 = vlaneseq
    %v2172 = vshrl.u32 %v2171, 7
    %v2173 = vsub.s32 %v848, %v2172
    %v2174 = vrot.slane %v2119, %v2173
    %v2175 = vlaneseq
    %v2176 = vshrl.u32 %v2175, 7
    %v2177 = vsub.s32 %v853, %v2176
    %v2178 = vrot.slane %v2122, %v2177
    %v2179 = vsel %vm858, %v2178, %v2174
    %v2180 = vlaneseq
    %v2181 = vshrl.u32 %v2180, 7
    %v2182 = vsub.s32 %v848, %v2181
    %v2183 = vrot.slane %v2125, %v2182
    %v2184 = vlaneseq
    %v2185 = vshrl.u32 %v2184, 7
    %v2186 = vsub.s32 %v853, %v2185
    %v2187 = vrot.slane %v2128, %v2186
    %v2188 = vsel %vm858, %v2187, %v2183
    %v2189 = vlaneseq
    %v2190 = vshrl.u32 %v2189, 7
    %v2191 = vsub.s32 %v848, %v2190
    %v2192 = vrot.slane %v2131, %v2191
    %v2193 = vlaneseq
    %v2194 = vshrl.u32 %v2193, 7
    %v2195 = vsub.s32 %v853, %v2194
    %v2196 = vrot.slane %v2134, %v2195
    %v2197 = vsel %vm858, %v2196, %v2192
    %v2198 = vlaneseq
    %v2199 = vshrl.u32 %v2198, 7
    %v2200 = vsub.s32 %v848, %v2199
    %v2201 = vrot.slane %v2137, %v2200
    %v2202 = vlaneseq
    %v2203 = vshrl.u32 %v2202, 7
    %v2204 = vsub.s32 %v853, %v2203
    %v2205 = vrot.slane %v2140, %v2204
    %v2206 = vsel %vm858, %v2205, %v2201
    %v2207 = vlaneseq
    %v2208 = vshrl.u32 %v2207, 7
    %v2209 = vsub.s32 %v848, %v2208
    %v2210 = vrot.slane %v2143, %v2209
    %v2211 = vlaneseq
    %v2212 = vshrl.u32 %v2211, 7
    %v2213 = vsub.s32 %v853, %v2212
    %v2214 = vrot.slane %v2146, %v2213
    %v2215 = vsel %vm858, %v2214, %v2210
    %v2216 = vlaneseq
    %v2217 = vshrl.u32 %v2216, 7
    %v2218 = vsub.s32 %v848, %v2217
    %v2219 = vrot.slane %v2149, %v2218
    %v2220 = vlaneseq
    %v2221 = vshrl.u32 %v2220, 7
    %v2222 = vsub.s32 %v853, %v2221
    %v2223 = vrot.slane %v2152, %v2222
    %v2224 = vsel %vm858, %v2223, %v2219
    %v2225 = vsel %vm923, %v2170, %v2161
    %v2226 = vsel %vm925, %v2179, %v2225
    %v2227 = vsel %vm927, %v2188, %v2226
    %v2228 = vsel %vm929, %v2197, %v2227
    %v2229 = vsel %vm931, %v2206, %v2228
    %v2230 = vsel %vm933, %v2215, %v2229
    %v2231 = vsel %vm935, %v2224, %v2230
    %v2233 = vsel %vm938, %v2231, 0.0
    %2234 = vadd.xlane.f32.xlu0 %v2233
    %v2235 = vpop.xlane.xlu0 %2234
    %v2236 = vrcp.pop %v2235
    %v2238 = vlaneseq
    %v2239 = vshrl.u32 %v2238, 7
    %v2240 = vsub.s32 0, %v2239
    %v2241 = vrot.slane %v2236, %v2240
    %v2242 = vlaneseq
    %v2243 = vshrl.u32 %v2242, 7
    %v2244 = vsub.s32 1, %v2243
    %v2245 = vrot.slane %v2236, %v2244
    %v2246 = vlaneseq
    %v2247 = vshrl.u32 %v2246, 7
    %v2248 = vsub.s32 2, %v2247
    %v2249 = vrot.slane %v2236, %v2248
    %v2250 = vlaneseq
    %v2251 = vshrl.u32 %v2250, 7
    %v2252 = vsub.s32 3, %v2251
    %v2253 = vrot.slane %v2236, %v2252
    %v2254 = vlaneseq
    %v2255 = vshrl.u32 %v2254, 7
    %v2256 = vsub.s32 4, %v2255
    %v2257 = vrot.slane %v2236, %v2256
    %v2258 = vlaneseq
    %v2259 = vshrl.u32 %v2258, 7
    %v2260 = vsub.s32 5, %v2259
    %v2261 = vrot.slane %v2236, %v2260
    %v2262 = vlaneseq
    %v2263 = vshrl.u32 %v2262, 7
    %v2264 = vsub.s32 6, %v2263
    %v2265 = vrot.slane %v2236, %v2264
    %v2266 = vlaneseq
    %v2267 = vshrl.u32 %v2266, 7
    %v2268 = vsub.s32 7, %v2267
    %v2269 = vrot.slane %v2236, %v2268
    %v2278 = vmul.f32 %v2058, %v2241
    %v2279 = vmul.f32 %v2060, %v2241
    %v2280 = vmul.f32 %v2062, %v2245
    %v2281 = vmul.f32 %v2064, %v2245
    %v2282 = vmul.f32 %v2066, %v2249
    %v2283 = vmul.f32 %v2068, %v2249
    %v2284 = vmul.f32 %v2070, %v2253
    %v2285 = vmul.f32 %v2072, %v2253
    %v2286 = vmul.f32 %v2074, %v2257
    %v2287 = vmul.f32 %v2076, %v2257
    %v2288 = vmul.f32 %v2078, %v2261
    %v2289 = vmul.f32 %v2080, %v2261
    %v2290 = vmul.f32 %v2082, %v2265
    %v2291 = vmul.f32 %v2084, %v2265
    %v2292 = vmul.f32 %v2086, %v2269
    %v2293 = vmul.f32 %v2088, %v2269
    %2310 = vset.pattern.permute.xlu0 0
    %2311 = vperm.xlu0 %2310, %v2278
    %v2312 = vpop.permute.xlu0 %2311
    %2313 = vset.pattern.permute.xlu0 0
    %2314 = vperm.xlu0 %2313, %v2279
    %v2315 = vpop.permute.xlu0 %2314
    %2316 = vset.pattern.permute.xlu0 0
    %2317 = vperm.xlu0 %2316, %v2280
    %v2318 = vpop.permute.xlu0 %2317
    %2319 = vset.pattern.permute.xlu0 0
    %2320 = vperm.xlu0 %2319, %v2281
    %v2321 = vpop.permute.xlu0 %2320
    %2322 = vset.pattern.permute.xlu0 0
    %2323 = vperm.xlu0 %2322, %v2282
    %v2324 = vpop.permute.xlu0 %2323
    %2325 = vset.pattern.permute.xlu0 0
    %2326 = vperm.xlu0 %2325, %v2283
    %v2327 = vpop.permute.xlu0 %2326
    %2328 = vset.pattern.permute.xlu0 0
    %2329 = vperm.xlu0 %2328, %v2284
    %v2330 = vpop.permute.xlu0 %2329
    %2331 = vset.pattern.permute.xlu0 0
    %2332 = vperm.xlu0 %2331, %v2285
    %v2333 = vpop.permute.xlu0 %2332
    %2334 = vset.pattern.permute.xlu0 0
    %2335 = vperm.xlu0 %2334, %v2286
    %v2336 = vpop.permute.xlu0 %2335
    %2337 = vset.pattern.permute.xlu0 0
    %2338 = vperm.xlu0 %2337, %v2287
    %v2339 = vpop.permute.xlu0 %2338
    %2340 = vset.pattern.permute.xlu0 0
    %2341 = vperm.xlu0 %2340, %v2288
    %v2342 = vpop.permute.xlu0 %2341
    %2343 = vset.pattern.permute.xlu0 0
    %2344 = vperm.xlu0 %2343, %v2289
    %v2345 = vpop.permute.xlu0 %2344
    %2346 = vset.pattern.permute.xlu0 0
    %2347 = vperm.xlu0 %2346, %v2290
    %v2348 = vpop.permute.xlu0 %2347
    %2349 = vset.pattern.permute.xlu0 0
    %2350 = vperm.xlu0 %2349, %v2291
    %v2351 = vpop.permute.xlu0 %2350
    %2352 = vset.pattern.permute.xlu0 0
    %2353 = vperm.xlu0 %2352, %v2292
    %v2354 = vpop.permute.xlu0 %2353
    %2355 = vset.pattern.permute.xlu0 0
    %2356 = vperm.xlu0 %2355, %v2293
    %v2357 = vpop.permute.xlu0 %2356
    %v2358 = vlaneseq
    %v2359 = vshrl.u32 %v2358, 7
    %v2360 = vsub.s32 %v848, %v2359
    %v2361 = vrot.slane %v2312, %v2360
    %v2362 = vlaneseq
    %v2363 = vshrl.u32 %v2362, 7
    %v2364 = vsub.s32 %v853, %v2363
    %v2365 = vrot.slane %v2315, %v2364
    %v2366 = vsel %vm858, %v2365, %v2361
    %v2367 = vlaneseq
    %v2368 = vshrl.u32 %v2367, 7
    %v2369 = vsub.s32 %v848, %v2368
    %v2370 = vrot.slane %v2318, %v2369
    %v2371 = vlaneseq
    %v2372 = vshrl.u32 %v2371, 7
    %v2373 = vsub.s32 %v853, %v2372
    %v2374 = vrot.slane %v2321, %v2373
    %v2375 = vsel %vm858, %v2374, %v2370
    %v2376 = vlaneseq
    %v2377 = vshrl.u32 %v2376, 7
    %v2378 = vsub.s32 %v848, %v2377
    %v2379 = vrot.slane %v2324, %v2378
    %v2380 = vlaneseq
    %v2381 = vshrl.u32 %v2380, 7
    %v2382 = vsub.s32 %v853, %v2381
    %v2383 = vrot.slane %v2327, %v2382
    %v2384 = vsel %vm858, %v2383, %v2379
    %v2385 = vlaneseq
    %v2386 = vshrl.u32 %v2385, 7
    %v2387 = vsub.s32 %v848, %v2386
    %v2388 = vrot.slane %v2330, %v2387
    %v2389 = vlaneseq
    %v2390 = vshrl.u32 %v2389, 7
    %v2391 = vsub.s32 %v853, %v2390
    %v2392 = vrot.slane %v2333, %v2391
    %v2393 = vsel %vm858, %v2392, %v2388
    %v2394 = vlaneseq
    %v2395 = vshrl.u32 %v2394, 7
    %v2396 = vsub.s32 %v848, %v2395
    %v2397 = vrot.slane %v2336, %v2396
    %v2398 = vlaneseq
    %v2399 = vshrl.u32 %v2398, 7
    %v2400 = vsub.s32 %v853, %v2399
    %v2401 = vrot.slane %v2339, %v2400
    %v2402 = vsel %vm858, %v2401, %v2397
    %v2403 = vlaneseq
    %v2404 = vshrl.u32 %v2403, 7
    %v2405 = vsub.s32 %v848, %v2404
    %v2406 = vrot.slane %v2342, %v2405
    %v2407 = vlaneseq
    %v2408 = vshrl.u32 %v2407, 7
    %v2409 = vsub.s32 %v853, %v2408
    %v2410 = vrot.slane %v2345, %v2409
    %v2411 = vsel %vm858, %v2410, %v2406
    %v2412 = vlaneseq
    %v2413 = vshrl.u32 %v2412, 7
    %v2414 = vsub.s32 %v848, %v2413
    %v2415 = vrot.slane %v2348, %v2414
    %v2416 = vlaneseq
    %v2417 = vshrl.u32 %v2416, 7
    %v2418 = vsub.s32 %v853, %v2417
    %v2419 = vrot.slane %v2351, %v2418
    %v2420 = vsel %vm858, %v2419, %v2415
    %v2421 = vlaneseq
    %v2422 = vshrl.u32 %v2421, 7
    %v2423 = vsub.s32 %v848, %v2422
    %v2424 = vrot.slane %v2354, %v2423
    %v2425 = vlaneseq
    %v2426 = vshrl.u32 %v2425, 7
    %v2427 = vsub.s32 %v853, %v2426
    %v2428 = vrot.slane %v2357, %v2427
    %v2429 = vsel %vm858, %v2428, %v2424
    %v2430 = vsel %vm923, %v2375, %v2366
    %v2431 = vsel %vm925, %v2384, %v2430
    %v2432 = vsel %vm927, %v2393, %v2431
    %v2433 = vsel %vm929, %v2402, %v2432
    %v2434 = vsel %vm931, %v2411, %v2433
    %v2435 = vsel %vm933, %v2420, %v2434
    %v2436 = vsel %vm935, %v2429, %v2435
    %v2437 = vsel %vm938, %v2436, 0
    %2439 = vmatprep.subr.mxu0 0.0
    %2440 = vmatpush1.msra.mxu0 %v196
    %2441 = vmatprep.subr.mxu0 0.0
    %2442 = vmatpush1.msra.mxu0 %v197
    %2443 = vmatprep.subr.mxu0 0.0
    %2444 = vmatpush1.msra.mxu0 0.0
    %2445 = vmatprep.subr.mxu0 0.0
    %2446 = vmatpush1.msra.mxu0 0.0
    %2447 = vmatprep.subr.mxu0 0.0
    %2448 = vmatpush1.msra.mxu0 0.0
    %2449 = vmatprep.subr.mxu0 0.0
    %2450 = vmatpush1.msra.mxu0 0.0
    %2451 = vmatprep.subr.mxu0 0.0
    %2452 = vmatpush1.msra.mxu0 0.0
    %2453 = vmatprep.subr.mxu0 0.0
    %2454 = vmatpush1.msra.mxu0 0.0
    %2455 = vmatprep.subr.mxu0 0.0
    %2456 = vmatpush1.msra.mxu0 0.0
    %2457 = vmatprep.subr.mxu0 0.0
    %2458 = vmatpush1.msra.mxu0 0.0
    %2459 = vmatprep.subr.mxu0 0.0
    %2460 = vmatpush1.msra.mxu0 0.0
    %2461 = vmatprep.subr.mxu0 0.0
    %2462 = vmatpush1.msra.mxu0 0.0
    %2463 = vmatprep.subr.mxu0 0.0
    %2464 = vmatpush1.msra.mxu0 0.0
    %2465 = vmatprep.subr.mxu0 0.0
    %2466 = vmatpush1.msra.mxu0 0.0
    %2467 = vmatprep.subr.mxu0 0.0
    %2468 = vmatpush1.msra.mxu0 0.0
    %2469 = vmatprep.subr.mxu0 0.0
    %2470 = vmatpush1.msra.mxu0 0.0
    %2471 = vmatprep.subr.mxu0 0.0
    %2472 = vmatpush1.msra.mxu0 0.0
    %2473 = vmatprep.subr.mxu0 0.0
    %2474 = vmatpush1.msra.mxu0 0.0
    %2475 = vmatprep.subr.mxu0 0.0
    %2476 = vmatpush1.msra.mxu0 0.0
    %2477 = vmatprep.subr.mxu0 0.0
    %2478 = vmatpush1.msra.mxu0 0.0
    %2479 = vmatprep.subr.mxu0 0.0
    %2480 = vmatpush1.msra.mxu0 0.0
    %2481 = vmatprep.subr.mxu0 0.0
    %2482 = vmatpush1.msra.mxu0 0.0
    %2483 = vmatprep.subr.mxu0 0.0
    %2484 = vmatpush1.msra.mxu0 0.0
    %2485 = vmatprep.subr.mxu0 0.0
    %2486 = vmatpush1.msra.mxu0 0.0
    %2487 = vmatprep.subr.mxu0 0.0
    %2488 = vmatpush1.msra.mxu0 0.0
    %2489 = vmatprep.subr.mxu0 0.0
    %2490 = vmatpush1.msra.mxu0 0.0
    %2491 = vmatprep.subr.mxu0 0.0
    %2492 = vmatpush1.msra.mxu0 0.0
    %2493 = vmatprep.subr.mxu0 0.0
    %2494 = vmatpush1.msra.mxu0 0.0
    %2495 = vmatprep.subr.mxu0 0.0
    %2496 = vmatpush1.msra.mxu0 0.0
    %2497 = vmatprep.subr.mxu0 0.0
    %2498 = vmatpush1.msra.mxu0 0.0
    %2499 = vmatprep.subr.mxu0 0.0
    %2500 = vmatpush1.msra.mxu0 0.0
    %2501 = vmatprep.subr.mxu0 0.0
    %2502 = vmatpush1.msra.mxu0 0.0
    %2503 = vmatprep.mubr.f32.mxu0 0.0
    %2504 = vmatmul.mubr.f32.gmra.mrb[0].mxu0 %v2437
    %v2505 = vpop.f32.mrb[0].mxu0
    %v2506 = vadd.f32 0.0, %v2505
    %v2507 = vpop.f32.mrb[0].mxu0
    %2508 = vdwg.mxu0
    %v2509 = vtanh.pop %v1473
    %v2510 = vmul.f32 %v2509, 0.1
    %v2511 = vadd.f32 %v2510, %v2506
    %v2512 = vsel %vm1471, 1, 0
    %2513 = vset.pattern.permute.xlu0 0
    %2514 = vperm.xlu0 %2513, %v2512
    %v2515 = vpop.permute.xlu0 %2514
    %vm2516 = vcmp.eq.s32.totalorder %v2515, 1
    %v2517 = vsel %vm2516, %v2511, %v2509
    %v2518 = vsel %vm2516, %v1577, %v1472
    %s2519 = scalar_lea.vmem [#allocation15], 8
    %2520 = vst [vmem:[%s2519] sm:$0xff] %v2517
    %s2521 = scalar_lea.vmem [#allocation16], 8
    %2522 = vst [vmem:[%s2521] sm:$0xff] %v2518
    %2523 = vst [vmem:[#allocation2] sm:$0xff] %v2518
    %2524 = vst [vmem:[#allocation3] sm:$0xff] %v2517
    %s2525 = scalar_lea.vmem [#allocation4], 48
    %v2526 = vld [vmem:[%s2525] sm:$0xff]
    %v2527 = vld [vmem:[%s2525 + $0x8] sm:$0xff]
    %v2528 = vld [vmem:[%s2525 + $0x10] sm:$0xff]
    %s2529 = scalar_lea.vmem %s1, 16
    %v2530 = vld [vmem:[%s2529] sm:$0xff]
    %vm2531 = vcmp.gt.f32.partialorder %v2530, 0.0
    %v2532 = vld [vmem:[#allocation2] sm:$0xff]
    %v2533 = vld [vmem:[#allocation3] sm:$0xff]
    %v2534 = vpack.c.bf16 %v2532, %v2532
    %2535 = vmatprep.subr.bf16.mxu0 %v287
    %2536 = vmatpush1.bf16.msra.mxu0 %v286
    %2537 = vmatprep.subr.bf16.mxu0 %v290
    %2538 = vmatpush1.bf16.msra.mxu0 %v289
    %2539 = vmatprep.subr.bf16.mxu0 %v293
    %2540 = vmatpush1.bf16.msra.mxu0 %v292
    %2541 = vmatprep.subr.bf16.mxu0 %v296
    %2542 = vmatpush1.bf16.msra.mxu0 %v295
    %2543 = vmatprep.subr.bf16.mxu0 %v299
    %2544 = vmatpush1.bf16.msra.mxu0 %v298
    %2545 = vmatprep.subr.bf16.mxu0 %v302
    %2546 = vmatpush1.bf16.msra.mxu0 %v301
    %2547 = vmatprep.subr.bf16.mxu0 %v305
    %2548 = vmatpush1.bf16.msra.mxu0 %v304
    %2549 = vmatprep.subr.bf16.mxu0 %v308
    %2550 = vmatpush1.bf16.msra.mxu0 %v307
    %2551 = vmatprep.subr.bf16.mxu0 0
    %2552 = vmatpush1.bf16.msra.mxu0 0
    %2553 = vmatprep.subr.bf16.mxu0 0
    %2554 = vmatpush1.bf16.msra.mxu0 0
    %2555 = vmatprep.subr.bf16.mxu0 0
    %2556 = vmatpush1.bf16.msra.mxu0 0
    %2557 = vmatprep.subr.bf16.mxu0 0
    %2558 = vmatpush1.bf16.msra.mxu0 0
    %2559 = vmatprep.subr.bf16.mxu0 0
    %2560 = vmatpush1.bf16.msra.mxu0 0
    %2561 = vmatprep.subr.bf16.mxu0 0
    %2562 = vmatpush1.bf16.msra.mxu0 0
    %2563 = vmatprep.subr.bf16.mxu0 0
    %2564 = vmatpush1.bf16.msra.mxu0 0
    %2565 = vmatprep.subr.bf16.mxu0 0
    %2566 = vmatpush1.bf16.msra.mxu0 0
    %2567 = vmatprep.mubr.bf16.mxu0 0
    %2568 = vmatmul.mubr.bf16.gmra.mrb[0].mxu0 %v2534
    %v2569 = vpop.f32.mrb[0].mxu0
    %v2570 = vadd.f32 0.0, %v2569
    %v2571 = vpop.f32.mrb[0].mxu0
    %v2572 = vadd.f32 0.0, %v2571
    %v2573 = vpop.f32.mrb[0].mxu0
    %v2574 = vpop.f32.mrb[0].mxu0
    %2575 = vdwg.mxu0
    %2576 = vmatprep.subr.bf16.mxu0 0
    %2577 = vmatpush1.bf16.msra.mxu0 %v288
    %2578 = vmatprep.subr.bf16.mxu0 0
    %2579 = vmatpush1.bf16.msra.mxu0 %v291
    %2580 = vmatprep.subr.bf16.mxu0 0
    %2581 = vmatpush1.bf16.msra.mxu0 %v294
    %2582 = vmatprep.subr.bf16.mxu0 0
    %2583 = vmatpush1.bf16.msra.mxu0 %v297
    %2584 = vmatprep.subr.bf16.mxu0 0
    %2585 = vmatpush1.bf16.msra.mxu0 %v300
    %2586 = vmatprep.subr.bf16.mxu0 0
    %2587 = vmatpush1.bf16.msra.mxu0 %v303
    %2588 = vmatprep.subr.bf16.mxu0 0
    %2589 = vmatpush1.bf16.msra.mxu0 %v306
    %2590 = vmatprep.subr.bf16.mxu0 0
    %2591 = vmatpush1.bf16.msra.mxu0 %v309
    %2592 = vmatprep.subr.bf16.mxu0 0
    %2593 = vmatpush1.bf16.msra.mxu0 0
    %2594 = vmatprep.subr.bf16.mxu0 0
    %2595 = vmatpush1.bf16.msra.mxu0 0
    %2596 = vmatprep.subr.bf16.mxu0 0
    %2597 = vmatpush1.bf16.msra.mxu0 0
    %2598 = vmatprep.subr.bf16.mxu0 0
    %2599 = vmatpush1.bf16.msra.mxu0 0
    %2600 = vmatprep.subr.bf16.mxu0 0
    %2601 = vmatpush1.bf16.msra.mxu0 0
    %2602 = vmatprep.subr.bf16.mxu0 0
    %2603 = vmatpush1.bf16.msra.mxu0 0
    %2604 = vmatprep.subr.bf16.mxu0 0
    %2605 = vmatpush1.bf16.msra.mxu0 0
    %2606 = vmatprep.subr.bf16.mxu0 0
    %2607 = vmatpush1.bf16.msra.mxu0 0
    %2608 = vmatprep.mubr.bf16.mxu0 0
    %2609 = vmatmul.mubr.bf16.gmra.mrb[0].mxu0 %v2534
    %v2610 = vpop.f32.mrb[0].mxu0
    %v2611 = vadd.f32 0.0, %v2610
    %v2612 = vpop.f32.mrb[0].mxu0
    %v2613 = vpop.f32.mrb[0].mxu0
    %v2614 = vpop.f32.mrb[0].mxu0
    %2615 = vdwg.mxu0
    %v2616 = vadd.f32 %v2526, %v2570
    %v2617 = vxor.u32 %v2616, 2147483648
    %v2618 = vmul.f32 %v2617, 1.442695
    %v2619 = vpow.pop %v2618
    %v2620 = vadd.f32 %v2619, 1.0
    %v2621 = vrcp.pop %v2620
    %v2622 = vmul.f32 1.0, %v2621
    %v2623 = vadd.f32 %v2527, %v2572
    %v2624 = vxor.u32 %v2623, 2147483648
    %v2625 = vmul.f32 %v2624, 1.442695
    %v2626 = vpow.pop %v2625
    %v2627 = vadd.f32 %v2626, 1.0
    %v2628 = vrcp.pop %v2627
    %v2629 = vmul.f32 1.0, %v2628
    %v2630 = vadd.f32 %v2611, %v433
    %v2631 = vmul.f32 %v2622, %v2630
    %v2632 = vadd.f32 %v2528, %v2631
    %v2633 = vtanh.pop %v2632
    %v2634 = vsub.f32 1.0, %v2629
    %v2635 = vmul.f32 %v2634, %v2633
    %v2636 = vmul.f32 %v2629, %v2532
    %v2637 = vadd.f32 %v2635, %v2636
    %v2638 = vpack.c.bf16 %v2637, %v2637
    %2639 = vmatprep.subr.bf16.mxu0 0
    %2640 = vmatpush1.bf16.msra.mxu0 %v482
    %2641 = vmatprep.subr.bf16.mxu0 0
    %2642 = vmatpush1.bf16.msra.mxu0 %v483
    %2643 = vmatprep.subr.bf16.mxu0 0
    %2644 = vmatpush1.bf16.msra.mxu0 %v484
    %2645 = vmatprep.subr.bf16.mxu0 0
    %2646 = vmatpush1.bf16.msra.mxu0 %v485
    %2647 = vmatprep.subr.bf16.mxu0 0
    %2648 = vmatpush1.bf16.msra.mxu0 %v486
    %2649 = vmatprep.subr.bf16.mxu0 0
    %2650 = vmatpush1.bf16.msra.mxu0 %v487
    %2651 = vmatprep.subr.bf16.mxu0 0
    %2652 = vmatpush1.bf16.msra.mxu0 %v488
    %2653 = vmatprep.subr.bf16.mxu0 0
    %2654 = vmatpush1.bf16.msra.mxu0 %v489
    %2655 = vmatprep.subr.bf16.mxu0 0
    %2656 = vmatpush1.bf16.msra.mxu0 0
    %2657 = vmatprep.subr.bf16.mxu0 0
    %2658 = vmatpush1.bf16.msra.mxu0 0
    %2659 = vmatprep.subr.bf16.mxu0 0
    %2660 = vmatpush1.bf16.msra.mxu0 0
    %2661 = vmatprep.subr.bf16.mxu0 0
    %2662 = vmatpush1.bf16.msra.mxu0 0
    %2663 = vmatprep.subr.bf16.mxu0 0
    %2664 = vmatpush1.bf16.msra.mxu0 0
    %2665 = vmatprep.subr.bf16.mxu0 0
    %2666 = vmatpush1.bf16.msra.mxu0 0
    %2667 = vmatprep.subr.bf16.mxu0 0
    %2668 = vmatpush1.bf16.msra.mxu0 0
    %2669 = vmatprep.subr.bf16.mxu0 0
    %2670 = vmatpush1.bf16.msra.mxu0 0
    %2671 = vmatprep.mubr.bf16.mxu0 0
    %2672 = vmatmul.mubr.bf16.gmra.mrb[0].mxu0 %v2638
    %v2673 = vpop.f32.mrb[0].mxu0
    %v2674 = vadd.f32 %v448, %v2673
    %v2675 = vpop.f32.mrb[0].mxu0
    %v2676 = vpop.f32.mrb[0].mxu0
    %v2677 = vpop.f32.mrb[0].mxu0
    %2678 = vdwg.mxu0
    %v2679 = vpack.c.bf16 %v2674, %v2674
    %v2682 = vunpack.c.l.s4 1966171168
    %v2683 = vunpack.c.0.s8 %v2682
    %v2684 = vlaneseq
    %v2685 = vshrl.u32 %v2684, 7
    %v2686 = vsub.s32 %v2683, %v2685
    %v2687 = vrot.slane %v2679, %v2686
    %v2688 = vcombine.high %v2687, %v2687
    %v2690 = vunpack.c.l.s4 1966171168
    %v2691 = vunpack.c.0.s8 %v2690
    %v2692 = vlaneseq
    %v2693 = vshrl.u32 %v2692, 7
    %v2694 = vsub.s32 %v2691, %v2693
    %v2695 = vrot.slane %v2687, %v2694
    %v2697 = vunpack.c.l.s4 1966171168
    %v2698 = vunpack.c.0.s8 %v2697
    %v2699 = vlaneseq
    %v2700 = vshrl.u32 %v2699, 7
    %v2701 = vsub.s32 %v2698, %v2700
    %v2702 = vrot.slane %v2688, %v2701
    %v2703 = vcombine.high %v2695, %v2695
    %v2704 = vcombine.high %v2702, %v2702
    %v2705 = vunpack.i.l.s16 %v2695
    %v2706 = vunpack.i.h.s16 %v2695
    %v2707 = vunpack.i.l.s16 %v2702
    %v2708 = vunpack.i.h.s16 %v2702
    %v2709 = vunpack.i.l.s16 %v2703
    %v2710 = vunpack.i.h.s16 %v2703
    %v2711 = vunpack.i.l.s16 %v2704
    %v2712 = vunpack.i.h.s16 %v2704
    %v2713 = vpack.i.b16 %v2705, %v2705
    %v2714 = vpack.i.b16 %v2706, %v2706
    %v2715 = vpack.i.b16 %v2707, %v2707
    %v2716 = vpack.i.b16 %v2708, %v2708
    %v2717 = vpack.i.b16 %v2709, %v2709
    %v2718 = vpack.i.b16 %v2710, %v2710
    %v2719 = vpack.i.b16 %v2711, %v2711
    %v2720 = vpack.i.b16 %v2712, %v2712
    %v2721 = vlaneseq
    %v2722 = vshrl.u32 %v2721, 7
    %v2723 = vsub.s32 0, %v2722
    %v2724 = vrot.slane %v2713, %v2723
    %v2725 = vlaneseq
    %v2726 = vshrl.u32 %v2725, 7
    %v2727 = vsub.s32 0, %v2726
    %v2728 = vrot.slane %v2714, %v2727
    %v2729 = vlaneseq
    %v2730 = vshrl.u32 %v2729, 7
    %v2731 = vsub.s32 0, %v2730
    %v2732 = vrot.slane %v2715, %v2731
    %v2733 = vlaneseq
    %v2734 = vshrl.u32 %v2733, 7
    %v2735 = vsub.s32 0, %v2734
    %v2736 = vrot.slane %v2716, %v2735
    %v2737 = vlaneseq
    %v2738 = vshrl.u32 %v2737, 7
    %v2739 = vsub.s32 0, %v2738
    %v2740 = vrot.slane %v2717, %v2739
    %v2741 = vlaneseq
    %v2742 = vshrl.u32 %v2741, 7
    %v2743 = vsub.s32 0, %v2742
    %v2744 = vrot.slane %v2718, %v2743
    %v2745 = vlaneseq
    %v2746 = vshrl.u32 %v2745, 7
    %v2747 = vsub.s32 0, %v2746
    %v2748 = vrot.slane %v2719, %v2747
    %v2749 = vlaneseq
    %v2750 = vshrl.u32 %v2749, 7
    %v2751 = vsub.s32 0, %v2750
    %v2752 = vrot.slane %v2720, %v2751
    %v2754 = vpack.i.b16 %v2724, %v2724
    %v2756 = vlaneseq
    %v2757 = vshrl.u32 %v2756, 7
    %v2758 = vsub.s32 0, %v2757
    %v2759 = vrot.slane %v2754, %v2758
    %v2761 = vpack.i.b16 %v2728, %v2728
    %v2763 = vlaneseq
    %v2764 = vshrl.u32 %v2763, 7
    %v2765 = vsub.s32 0, %v2764
    %v2766 = vrot.slane %v2761, %v2765
    %v2768 = vpack.i.b16 %v2732, %v2732
    %v2770 = vlaneseq
    %v2771 = vshrl.u32 %v2770, 7
    %v2772 = vsub.s32 0, %v2771
    %v2773 = vrot.slane %v2768, %v2772
    %v2775 = vpack.i.b16 %v2736, %v2736
    %v2777 = vlaneseq
    %v2778 = vshrl.u32 %v2777, 7
    %v2779 = vsub.s32 0, %v2778
    %v2780 = vrot.slane %v2775, %v2779
    %v2782 = vpack.i.b16 %v2740, %v2740
    %v2784 = vlaneseq
    %v2785 = vshrl.u32 %v2784, 7
    %v2786 = vsub.s32 0, %v2785
    %v2787 = vrot.slane %v2782, %v2786
    %v2789 = vpack.i.b16 %v2744, %v2744
    %v2791 = vlaneseq
    %v2792 = vshrl.u32 %v2791, 7
    %v2793 = vsub.s32 0, %v2792
    %v2794 = vrot.slane %v2789, %v2793
    %v2796 = vpack.i.b16 %v2748, %v2748
    %v2798 = vlaneseq
    %v2799 = vshrl.u32 %v2798, 7
    %v2800 = vsub.s32 0, %v2799
    %v2801 = vrot.slane %v2796, %v2800
    %v2803 = vpack.i.b16 %v2752, %v2752
    %v2805 = vlaneseq
    %v2806 = vshrl.u32 %v2805, 7
    %v2807 = vsub.s32 0, %v2806
    %v2808 = vrot.slane %v2803, %v2807
    %v2817 = vunpack.c.l.b16 %v2759
    %v2818 = vunpack.c.h.b16 %v2759
    %v2819 = vunpack.c.l.b16 %v2766
    %v2820 = vunpack.c.h.b16 %v2766
    %v2821 = vunpack.c.l.b16 %v2773
    %v2822 = vunpack.c.h.b16 %v2773
    %v2823 = vunpack.c.l.b16 %v2780
    %v2824 = vunpack.c.h.b16 %v2780
    %v2825 = vunpack.c.l.b16 %v2787
    %v2826 = vunpack.c.h.b16 %v2787
    %v2827 = vunpack.c.l.b16 %v2794
    %v2828 = vunpack.c.h.b16 %v2794
    %v2829 = vunpack.c.l.b16 %v2801
    %v2830 = vunpack.c.h.b16 %v2801
    %v2831 = vunpack.c.l.b16 %v2808
    %v2832 = vunpack.c.h.b16 %v2808
    %v2833 = vpack.c.b16 %v2817, %v2817
    %v2834 = vpack.c.b16 %v2818, %v2818
    %v2835 = vpack.c.b16 %v2819, %v2819
    %v2836 = vpack.c.b16 %v2820, %v2820
    %v2837 = vpack.c.b16 %v2821, %v2821
    %v2838 = vpack.c.b16 %v2822, %v2822
    %v2839 = vpack.c.b16 %v2823, %v2823
    %v2840 = vpack.c.b16 %v2824, %v2824
    %v2841 = vpack.c.b16 %v2825, %v2825
    %v2842 = vpack.c.b16 %v2826, %v2826
    %v2843 = vpack.c.b16 %v2827, %v2827
    %v2844 = vpack.c.b16 %v2828, %v2828
    %v2845 = vpack.c.b16 %v2829, %v2829
    %v2846 = vpack.c.b16 %v2830, %v2830
    %v2847 = vpack.c.b16 %v2831, %v2831
    %v2848 = vpack.c.b16 %v2832, %v2832
    %v2865 = vadd.bf16 %v179, %v2833
    %v2866 = vadd.bf16 %v180, %v2834
    %v2867 = vadd.bf16 %v181, %v2835
    %v2868 = vadd.bf16 %v182, %v2836
    %v2869 = vadd.bf16 %v183, %v2837
    %v2870 = vadd.bf16 %v184, %v2838
    %v2871 = vadd.bf16 %v185, %v2839
    %v2872 = vadd.bf16 %v186, %v2840
    %v2873 = vadd.bf16 %v187, %v2841
    %v2874 = vadd.bf16 %v188, %v2842
    %v2875 = vadd.bf16 %v189, %v2843
    %v2876 = vadd.bf16 %v190, %v2844
    %v2877 = vadd.bf16 %v191, %v2845
    %v2878 = vadd.bf16 %v192, %v2846
    %v2879 = vadd.bf16 %v193, %v2847
    %v2880 = vadd.bf16 %v194, %v2848
    %v2881 = vtanh.bf16.pop %v2865
    %v2882 = vtanh.bf16.pop %v2866
    %v2883 = vtanh.bf16.pop %v2867
    %v2884 = vtanh.bf16.pop %v2868
    %v2885 = vtanh.bf16.pop %v2869
    %v2886 = vtanh.bf16.pop %v2870
    %v2887 = vtanh.bf16.pop %v2871
    %v2888 = vtanh.bf16.pop %v2872
    %v2889 = vtanh.bf16.pop %v2873
    %v2890 = vtanh.bf16.pop %v2874
    %v2891 = vtanh.bf16.pop %v2875
    %v2892 = vtanh.bf16.pop %v2876
    %v2893 = vtanh.bf16.pop %v2877
    %v2894 = vtanh.bf16.pop %v2878
    %v2895 = vtanh.bf16.pop %v2879
    %v2896 = vtanh.bf16.pop %v2880
    %v2897 = vmul.bf16 %v2881, %v765
    %v2898 = vmul.bf16 %v2882, %v765
    %v2899 = vmul.bf16 %v2883, %v765
    %v2900 = vmul.bf16 %v2884, %v765
    %v2901 = vmul.bf16 %v2885, %v765
    %v2902 = vmul.bf16 %v2886, %v765
    %v2903 = vmul.bf16 %v2887, %v765
    %v2904 = vmul.bf16 %v2888, %v765
    %v2905 = vmul.bf16 %v2889, %v765
    %v2906 = vmul.bf16 %v2890, %v765
    %v2907 = vmul.bf16 %v2891, %v765
    %v2908 = vmul.bf16 %v2892, %v765
    %v2909 = vmul.bf16 %v2893, %v765
    %v2910 = vmul.bf16 %v2894, %v765
    %v2911 = vmul.bf16 %v2895, %v765
    %v2912 = vmul.bf16 %v2896, %v765
    %v2913 = vunpack.c.l.bf16 %v2897
    %v2914 = vunpack.c.l.bf16 %v2898
    %v2915 = vunpack.c.l.bf16 %v2899
    %v2916 = vunpack.c.l.bf16 %v2900
    %v2917 = vunpack.c.l.bf16 %v2901
    %v2918 = vunpack.c.l.bf16 %v2902
    %v2919 = vunpack.c.l.bf16 %v2903
    %v2920 = vunpack.c.l.bf16 %v2904
    %v2921 = vunpack.c.l.bf16 %v2905
    %v2922 = vunpack.c.l.bf16 %v2906
    %v2923 = vunpack.c.l.bf16 %v2907
    %v2924 = vunpack.c.l.bf16 %v2908
    %v2925 = vunpack.c.l.bf16 %v2909
    %v2926 = vunpack.c.l.bf16 %v2910
    %v2927 = vunpack.c.l.bf16 %v2911
    %v2928 = vunpack.c.l.bf16 %v2912
    %2929 = vadd.xlane.f32.xlu0 %v2913
    %v2930 = vpop.xlane.xlu0 %2929
    %2931 = vadd.xlane.f32.xlu0 %v2914
    %v2932 = vpop.xlane.xlu0 %2931
    %2933 = vadd.xlane.f32.xlu0 %v2915
    %v2934 = vpop.xlane.xlu0 %2933
    %2935 = vadd.xlane.f32.xlu0 %v2916
    %v2936 = vpop.xlane.xlu0 %2935
    %2937 = vadd.xlane.f32.xlu0 %v2917
    %v2938 = vpop.xlane.xlu0 %2937
    %2939 = vadd.xlane.f32.xlu0 %v2918
    %v2940 = vpop.xlane.xlu0 %2939
    %2941 = vadd.xlane.f32.xlu0 %v2919
    %v2942 = vpop.xlane.xlu0 %2941
    %2943 = vadd.xlane.f32.xlu0 %v2920
    %v2944 = vpop.xlane.xlu0 %2943
    %2945 = vadd.xlane.f32.xlu0 %v2921
    %v2946 = vpop.xlane.xlu0 %2945
    %2947 = vadd.xlane.f32.xlu0 %v2922
    %v2948 = vpop.xlane.xlu0 %2947
    %2949 = vadd.xlane.f32.xlu0 %v2923
    %v2950 = vpop.xlane.xlu0 %2949
    %2951 = vadd.xlane.f32.xlu0 %v2924
    %v2952 = vpop.xlane.xlu0 %2951
    %2953 = vadd.xlane.f32.xlu0 %v2925
    %v2954 = vpop.xlane.xlu0 %2953
    %2955 = vadd.xlane.f32.xlu0 %v2926
    %v2956 = vpop.xlane.xlu0 %2955
    %2957 = vadd.xlane.f32.xlu0 %v2927
    %v2958 = vpop.xlane.xlu0 %2957
    %2959 = vadd.xlane.f32.xlu0 %v2928
    %v2960 = vpop.xlane.xlu0 %2959
    %v2977 = vlaneseq
    %v2978 = vshrl.u32 %v2977, 7
    %v2979 = vsub.s32 %v848, %v2978
    %v2980 = vrot.slane %v2930, %v2979
    %v2981 = vlaneseq
    %v2982 = vshrl.u32 %v2981, 7
    %v2983 = vsub.s32 %v853, %v2982
    %v2984 = vrot.slane %v2932, %v2983
    %v2985 = vsel %vm858, %v2984, %v2980
    %v2986 = vlaneseq
    %v2987 = vshrl.u32 %v2986, 7
    %v2988 = vsub.s32 %v848, %v2987
    %v2989 = vrot.slane %v2934, %v2988
    %v2990 = vlaneseq
    %v2991 = vshrl.u32 %v2990, 7
    %v2992 = vsub.s32 %v853, %v2991
    %v2993 = vrot.slane %v2936, %v2992
    %v2994 = vsel %vm858, %v2993, %v2989
    %v2995 = vlaneseq
    %v2996 = vshrl.u32 %v2995, 7
    %v2997 = vsub.s32 %v848, %v2996
    %v2998 = vrot.slane %v2938, %v2997
    %v2999 = vlaneseq
    %v3000 = vshrl.u32 %v2999, 7
    %v3001 = vsub.s32 %v853, %v3000
    %v3002 = vrot.slane %v2940, %v3001
    %v3003 = vsel %vm858, %v3002, %v2998
    %v3004 = vlaneseq
    %v3005 = vshrl.u32 %v3004, 7
    %v3006 = vsub.s32 %v848, %v3005
    %v3007 = vrot.slane %v2942, %v3006
    %v3008 = vlaneseq
    %v3009 = vshrl.u32 %v3008, 7
    %v3010 = vsub.s32 %v853, %v3009
    %v3011 = vrot.slane %v2944, %v3010
    %v3012 = vsel %vm858, %v3011, %v3007
    %v3013 = vlaneseq
    %v3014 = vshrl.u32 %v3013, 7
    %v3015 = vsub.s32 %v848, %v3014
    %v3016 = vrot.slane %v2946, %v3015
    %v3017 = vlaneseq
    %v3018 = vshrl.u32 %v3017, 7
    %v3019 = vsub.s32 %v853, %v3018
    %v3020 = vrot.slane %v2948, %v3019
    %v3021 = vsel %vm858, %v3020, %v3016
    %v3022 = vlaneseq
    %v3023 = vshrl.u32 %v3022, 7
    %v3024 = vsub.s32 %v848, %v3023
    %v3025 = vrot.slane %v2950, %v3024
    %v3026 = vlaneseq
    %v3027 = vshrl.u32 %v3026, 7
    %v3028 = vsub.s32 %v853, %v3027
    %v3029 = vrot.slane %v2952, %v3028
    %v3030 = vsel %vm858, %v3029, %v3025
    %v3031 = vlaneseq
    %v3032 = vshrl.u32 %v3031, 7
    %v3033 = vsub.s32 %v848, %v3032
    %v3034 = vrot.slane %v2954, %v3033
    %v3035 = vlaneseq
    %v3036 = vshrl.u32 %v3035, 7
    %v3037 = vsub.s32 %v853, %v3036
    %v3038 = vrot.slane %v2956, %v3037
    %v3039 = vsel %vm858, %v3038, %v3034
    %v3040 = vlaneseq
    %v3041 = vshrl.u32 %v3040, 7
    %v3042 = vsub.s32 %v848, %v3041
    %v3043 = vrot.slane %v2958, %v3042
    %v3044 = vlaneseq
    %v3045 = vshrl.u32 %v3044, 7
    %v3046 = vsub.s32 %v853, %v3045
    %v3047 = vrot.slane %v2960, %v3046
    %v3048 = vsel %vm858, %v3047, %v3043
    %v3049 = vsel %vm923, %v2994, %v2985
    %v3050 = vsel %vm925, %v3003, %v3049
    %v3051 = vsel %vm927, %v3012, %v3050
    %v3052 = vsel %vm929, %v3021, %v3051
    %v3053 = vsel %vm931, %v3030, %v3052
    %v3054 = vsel %vm933, %v3039, %v3053
    %v3055 = vsel %vm935, %v3048, %v3054
    %v3057 = vsel %vm938, %v3055, -inf
    %3058 = vmax.xlane.f32.xlu0 %v3057
    %v3059 = vpop.xlane.xlu0 %3058
    %v3061 = vlaneseq
    %v3062 = vshrl.u32 %v3061, 7
    %v3063 = vsub.s32 0, %v3062
    %v3064 = vrot.slane %v3059, %v3063
    %v3065 = vlaneseq
    %v3066 = vshrl.u32 %v3065, 7
    %v3067 = vsub.s32 1, %v3066
    %v3068 = vrot.slane %v3059, %v3067
    %v3069 = vlaneseq
    %v3070 = vshrl.u32 %v3069, 7
    %v3071 = vsub.s32 2, %v3070
    %v3072 = vrot.slane %v3059, %v3071
    %v3073 = vlaneseq
    %v3074 = vshrl.u32 %v3073, 7
    %v3075 = vsub.s32 3, %v3074
    %v3076 = vrot.slane %v3059, %v3075
    %v3077 = vlaneseq
    %v3078 = vshrl.u32 %v3077, 7
    %v3079 = vsub.s32 4, %v3078
    %v3080 = vrot.slane %v3059, %v3079
    %v3081 = vlaneseq
    %v3082 = vshrl.u32 %v3081, 7
    %v3083 = vsub.s32 5, %v3082
    %v3084 = vrot.slane %v3059, %v3083
    %v3085 = vlaneseq
    %v3086 = vshrl.u32 %v3085, 7
    %v3087 = vsub.s32 6, %v3086
    %v3088 = vrot.slane %v3059, %v3087
    %v3089 = vlaneseq
    %v3090 = vshrl.u32 %v3089, 7
    %v3091 = vsub.s32 7, %v3090
    %v3092 = vrot.slane %v3059, %v3091
    %v3101 = vsub.f32 %v2930, %v3064
    %v3102 = vsub.f32 %v2932, %v3064
    %v3103 = vsub.f32 %v2934, %v3068
    %v3104 = vsub.f32 %v2936, %v3068
    %v3105 = vsub.f32 %v2938, %v3072
    %v3106 = vsub.f32 %v2940, %v3072
    %v3107 = vsub.f32 %v2942, %v3076
    %v3108 = vsub.f32 %v2944, %v3076
    %v3109 = vsub.f32 %v2946, %v3080
    %v3110 = vsub.f32 %v2948, %v3080
    %v3111 = vsub.f32 %v2950, %v3084
    %v3112 = vsub.f32 %v2952, %v3084
    %v3113 = vsub.f32 %v2954, %v3088
    %v3114 = vsub.f32 %v2956, %v3088
    %v3115 = vsub.f32 %v2958, %v3092
    %v3116 = vsub.f32 %v2960, %v3092
    %v3117 = vmul.f32 %v3101, 1.442695
    %v3118 = vpow.pop %v3117
    %v3119 = vmul.f32 %v3102, 1.442695
    %v3120 = vpow.pop %v3119
    %v3121 = vmul.f32 %v3103, 1.442695
    %v3122 = vpow.pop %v3121
    %v3123 = vmul.f32 %v3104, 1.442695
    %v3124 = vpow.pop %v3123
    %v3125 = vmul.f32 %v3105, 1.442695
    %v3126 = vpow.pop %v3125
    %v3127 = vmul.f32 %v3106, 1.442695
    %v3128 = vpow.pop %v3127
    %v3129 = vmul.f32 %v3107, 1.442695
    %v3130 = vpow.pop %v3129
    %v3131 = vmul.f32 %v3108, 1.442695
    %v3132 = vpow.pop %v3131
    %v3133 = vmul.f32 %v3109, 1.442695
    %v3134 = vpow.pop %v3133
    %v3135 = vmul.f32 %v3110, 1.442695
    %v3136 = vpow.pop %v3135
    %v3137 = vmul.f32 %v3111, 1.442695
    %v3138 = vpow.pop %v3137
    %v3139 = vmul.f32 %v3112, 1.442695
    %v3140 = vpow.pop %v3139
    %v3141 = vmul.f32 %v3113, 1.442695
    %v3142 = vpow.pop %v3141
    %v3143 = vmul.f32 %v3114, 1.442695
    %v3144 = vpow.pop %v3143
    %v3145 = vmul.f32 %v3115, 1.442695
    %v3146 = vpow.pop %v3145
    %v3147 = vmul.f32 %v3116, 1.442695
    %v3148 = vpow.pop %v3147
    %3165 = vset.pattern.permute.xlu0 0
    %3166 = vperm.xlu0 %3165, %v3118
    %v3167 = vpop.permute.xlu0 %3166
    %3168 = vset.pattern.permute.xlu0 0
    %3169 = vperm.xlu0 %3168, %v3120
    %v3170 = vpop.permute.xlu0 %3169
    %3171 = vset.pattern.permute.xlu0 0
    %3172 = vperm.xlu0 %3171, %v3122
    %v3173 = vpop.permute.xlu0 %3172
    %3174 = vset.pattern.permute.xlu0 0
    %3175 = vperm.xlu0 %3174, %v3124
    %v3176 = vpop.permute.xlu0 %3175
    %3177 = vset.pattern.permute.xlu0 0
    %3178 = vperm.xlu0 %3177, %v3126
    %v3179 = vpop.permute.xlu0 %3178
    %3180 = vset.pattern.permute.xlu0 0
    %3181 = vperm.xlu0 %3180, %v3128
    %v3182 = vpop.permute.xlu0 %3181
    %3183 = vset.pattern.permute.xlu0 0
    %3184 = vperm.xlu0 %3183, %v3130
    %v3185 = vpop.permute.xlu0 %3184
    %3186 = vset.pattern.permute.xlu0 0
    %3187 = vperm.xlu0 %3186, %v3132
    %v3188 = vpop.permute.xlu0 %3187
    %3189 = vset.pattern.permute.xlu0 0
    %3190 = vperm.xlu0 %3189, %v3134
    %v3191 = vpop.permute.xlu0 %3190
    %3192 = vset.pattern.permute.xlu0 0
    %3193 = vperm.xlu0 %3192, %v3136
    %v3194 = vpop.permute.xlu0 %3193
    %3195 = vset.pattern.permute.xlu0 0
    %3196 = vperm.xlu0 %3195, %v3138
    %v3197 = vpop.permute.xlu0 %3196
    %3198 = vset.pattern.permute.xlu0 0
    %3199 = vperm.xlu0 %3198, %v3140
    %v3200 = vpop.permute.xlu0 %3199
    %3201 = vset.pattern.permute.xlu0 0
    %3202 = vperm.xlu0 %3201, %v3142
    %v3203 = vpop.permute.xlu0 %3202
    %3204 = vset.pattern.permute.xlu0 0
    %3205 = vperm.xlu0 %3204, %v3144
    %v3206 = vpop.permute.xlu0 %3205
    %3207 = vset.pattern.permute.xlu0 0
    %3208 = vperm.xlu0 %3207, %v3146
    %v3209 = vpop.permute.xlu0 %3208
    %3210 = vset.pattern.permute.xlu0 0
    %3211 = vperm.xlu0 %3210, %v3148
    %v3212 = vpop.permute.xlu0 %3211
    %v3213 = vlaneseq
    %v3214 = vshrl.u32 %v3213, 7
    %v3215 = vsub.s32 %v848, %v3214
    %v3216 = vrot.slane %v3167, %v3215
    %v3217 = vlaneseq
    %v3218 = vshrl.u32 %v3217, 7
    %v3219 = vsub.s32 %v853, %v3218
    %v3220 = vrot.slane %v3170, %v3219
    %v3221 = vsel %vm858, %v3220, %v3216
    %v3222 = vlaneseq
    %v3223 = vshrl.u32 %v3222, 7
    %v3224 = vsub.s32 %v848, %v3223
    %v3225 = vrot.slane %v3173, %v3224
    %v3226 = vlaneseq
    %v3227 = vshrl.u32 %v3226, 7
    %v3228 = vsub.s32 %v853, %v3227
    %v3229 = vrot.slane %v3176, %v3228
    %v3230 = vsel %vm858, %v3229, %v3225
    %v3231 = vlaneseq
    %v3232 = vshrl.u32 %v3231, 7
    %v3233 = vsub.s32 %v848, %v3232
    %v3234 = vrot.slane %v3179, %v3233
    %v3235 = vlaneseq
    %v3236 = vshrl.u32 %v3235, 7
    %v3237 = vsub.s32 %v853, %v3236
    %v3238 = vrot.slane %v3182, %v3237
    %v3239 = vsel %vm858, %v3238, %v3234
    %v3240 = vlaneseq
    %v3241 = vshrl.u32 %v3240, 7
    %v3242 = vsub.s32 %v848, %v3241
    %v3243 = vrot.slane %v3185, %v3242
    %v3244 = vlaneseq
    %v3245 = vshrl.u32 %v3244, 7
    %v3246 = vsub.s32 %v853, %v3245
    %v3247 = vrot.slane %v3188, %v3246
    %v3248 = vsel %vm858, %v3247, %v3243
    %v3249 = vlaneseq
    %v3250 = vshrl.u32 %v3249, 7
    %v3251 = vsub.s32 %v848, %v3250
    %v3252 = vrot.slane %v3191, %v3251
    %v3253 = vlaneseq
    %v3254 = vshrl.u32 %v3253, 7
    %v3255 = vsub.s32 %v853, %v3254
    %v3256 = vrot.slane %v3194, %v3255
    %v3257 = vsel %vm858, %v3256, %v3252
    %v3258 = vlaneseq
    %v3259 = vshrl.u32 %v3258, 7
    %v3260 = vsub.s32 %v848, %v3259
    %v3261 = vrot.slane %v3197, %v3260
    %v3262 = vlaneseq
    %v3263 = vshrl.u32 %v3262, 7
    %v3264 = vsub.s32 %v853, %v3263
    %v3265 = vrot.slane %v3200, %v3264
    %v3266 = vsel %vm858, %v3265, %v3261
    %v3267 = vlaneseq
    %v3268 = vshrl.u32 %v3267, 7
    %v3269 = vsub.s32 %v848, %v3268
    %v3270 = vrot.slane %v3203, %v3269
    %v3271 = vlaneseq
    %v3272 = vshrl.u32 %v3271, 7
    %v3273 = vsub.s32 %v853, %v3272
    %v3274 = vrot.slane %v3206, %v3273
    %v3275 = vsel %vm858, %v3274, %v3270
    %v3276 = vlaneseq
    %v3277 = vshrl.u32 %v3276, 7
    %v3278 = vsub.s32 %v848, %v3277
    %v3279 = vrot.slane %v3209, %v3278
    %v3280 = vlaneseq
    %v3281 = vshrl.u32 %v3280, 7
    %v3282 = vsub.s32 %v853, %v3281
    %v3283 = vrot.slane %v3212, %v3282
    %v3284 = vsel %vm858, %v3283, %v3279
    %v3285 = vsel %vm923, %v3230, %v3221
    %v3286 = vsel %vm925, %v3239, %v3285
    %v3287 = vsel %vm927, %v3248, %v3286
    %v3288 = vsel %vm929, %v3257, %v3287
    %v3289 = vsel %vm931, %v3266, %v3288
    %v3290 = vsel %vm933, %v3275, %v3289
    %v3291 = vsel %vm935, %v3284, %v3290
    %v3293 = vsel %vm938, %v3291, 0.0
    %3294 = vadd.xlane.f32.xlu0 %v3293
    %v3295 = vpop.xlane.xlu0 %3294
    %v3296 = vrcp.pop %v3295
    %v3298 = vlaneseq
    %v3299 = vshrl.u32 %v3298, 7
    %v3300 = vsub.s32 0, %v3299
    %v3301 = vrot.slane %v3296, %v3300
    %v3302 = vlaneseq
    %v3303 = vshrl.u32 %v3302, 7
    %v3304 = vsub.s32 1, %v3303
    %v3305 = vrot.slane %v3296, %v3304
    %v3306 = vlaneseq
    %v3307 = vshrl.u32 %v3306, 7
    %v3308 = vsub.s32 2, %v3307
    %v3309 = vrot.slane %v3296, %v3308
    %v3310 = vlaneseq
    %v3311 = vshrl.u32 %v3310, 7
    %v3312 = vsub.s32 3, %v3311
    %v3313 = vrot.slane %v3296, %v3312
    %v3314 = vlaneseq
    %v3315 = vshrl.u32 %v3314, 7
    %v3316 = vsub.s32 4, %v3315
    %v3317 = vrot.slane %v3296, %v3316
    %v3318 = vlaneseq
    %v3319 = vshrl.u32 %v3318, 7
    %v3320 = vsub.s32 5, %v3319
    %v3321 = vrot.slane %v3296, %v3320
    %v3322 = vlaneseq
    %v3323 = vshrl.u32 %v3322, 7
    %v3324 = vsub.s32 6, %v3323
    %v3325 = vrot.slane %v3296, %v3324
    %v3326 = vlaneseq
    %v3327 = vshrl.u32 %v3326, 7
    %v3328 = vsub.s32 7, %v3327
    %v3329 = vrot.slane %v3296, %v3328
    %v3338 = vmul.f32 %v3118, %v3301
    %v3339 = vmul.f32 %v3120, %v3301
    %v3340 = vmul.f32 %v3122, %v3305
    %v3341 = vmul.f32 %v3124, %v3305
    %v3342 = vmul.f32 %v3126, %v3309
    %v3343 = vmul.f32 %v3128, %v3309
    %v3344 = vmul.f32 %v3130, %v3313
    %v3345 = vmul.f32 %v3132, %v3313
    %v3346 = vmul.f32 %v3134, %v3317
    %v3347 = vmul.f32 %v3136, %v3317
    %v3348 = vmul.f32 %v3138, %v3321
    %v3349 = vmul.f32 %v3140, %v3321
    %v3350 = vmul.f32 %v3142, %v3325
    %v3351 = vmul.f32 %v3144, %v3325
    %v3352 = vmul.f32 %v3146, %v3329
    %v3353 = vmul.f32 %v3148, %v3329
    %3370 = vset.pattern.permute.xlu0 0
    %3371 = vperm.xlu0 %3370, %v3338
    %v3372 = vpop.permute.xlu0 %3371
    %3373 = vset.pattern.permute.xlu0 0
    %3374 = vperm.xlu0 %3373, %v3339
    %v3375 = vpop.permute.xlu0 %3374
    %3376 = vset.pattern.permute.xlu0 0
    %3377 = vperm.xlu0 %3376, %v3340
    %v3378 = vpop.permute.xlu0 %3377
    %3379 = vset.pattern.permute.xlu0 0
    %3380 = vperm.xlu0 %3379, %v3341
    %v3381 = vpop.permute.xlu0 %3380
    %3382 = vset.pattern.permute.xlu0 0
    %3383 = vperm.xlu0 %3382, %v3342
    %v3384 = vpop.permute.xlu0 %3383
    %3385 = vset.pattern.permute.xlu0 0
    %3386 = vperm.xlu0 %3385, %v3343
    %v3387 = vpop.permute.xlu0 %3386
    %3388 = vset.pattern.permute.xlu0 0
    %3389 = vperm.xlu0 %3388, %v3344
    %v3390 = vpop.permute.xlu0 %3389
    %3391 = vset.pattern.permute.xlu0 0
    %3392 = vperm.xlu0 %3391, %v3345
    %v3393 = vpop.permute.xlu0 %3392
    %3394 = vset.pattern.permute.xlu0 0
    %3395 = vperm.xlu0 %3394, %v3346
    %v3396 = vpop.permute.xlu0 %3395
    %3397 = vset.pattern.permute.xlu0 0
    %3398 = vperm.xlu0 %3397, %v3347
    %v3399 = vpop.permute.xlu0 %3398
    %3400 = vset.pattern.permute.xlu0 0
    %3401 = vperm.xlu0 %3400, %v3348
    %v3402 = vpop.permute.xlu0 %3401
    %3403 = vset.pattern.permute.xlu0 0
    %3404 = vperm.xlu0 %3403, %v3349
    %v3405 = vpop.permute.xlu0 %3404
    %3406 = vset.pattern.permute.xlu0 0
    %3407 = vperm.xlu0 %3406, %v3350
    %v3408 = vpop.permute.xlu0 %3407
    %3409 = vset.pattern.permute.xlu0 0
    %3410 = vperm.xlu0 %3409, %v3351
    %v3411 = vpop.permute.xlu0 %3410
    %3412 = vset.pattern.permute.xlu0 0
    %3413 = vperm.xlu0 %3412, %v3352
    %v3414 = vpop.permute.xlu0 %3413
    %3415 = vset.pattern.permute.xlu0 0
    %3416 = vperm.xlu0 %3415, %v3353
    %v3417 = vpop.permute.xlu0 %3416
    %v3418 = vlaneseq
    %v3419 = vshrl.u32 %v3418, 7
    %v3420 = vsub.s32 %v848, %v3419
    %v3421 = vrot.slane %v3372, %v3420
    %v3422 = vlaneseq
    %v3423 = vshrl.u32 %v3422, 7
    %v3424 = vsub.s32 %v853, %v3423
    %v3425 = vrot.slane %v3375, %v3424
    %v3426 = vsel %vm858, %v3425, %v3421
    %v3427 = vlaneseq
    %v3428 = vshrl.u32 %v3427, 7
    %v3429 = vsub.s32 %v848, %v3428
    %v3430 = vrot.slane %v3378, %v3429
    %v3431 = vlaneseq
    %v3432 = vshrl.u32 %v3431, 7
    %v3433 = vsub.s32 %v853, %v3432
    %v3434 = vrot.slane %v3381, %v3433
    %v3435 = vsel %vm858, %v3434, %v3430
    %v3436 = vlaneseq
    %v3437 = vshrl.u32 %v3436, 7
    %v3438 = vsub.s32 %v848, %v3437
    %v3439 = vrot.slane %v3384, %v3438
    %v3440 = vlaneseq
    %v3441 = vshrl.u32 %v3440, 7
    %v3442 = vsub.s32 %v853, %v3441
    %v3443 = vrot.slane %v3387, %v3442
    %v3444 = vsel %vm858, %v3443, %v3439
    %v3445 = vlaneseq
    %v3446 = vshrl.u32 %v3445, 7
    %v3447 = vsub.s32 %v848, %v3446
    %v3448 = vrot.slane %v3390, %v3447
    %v3449 = vlaneseq
    %v3450 = vshrl.u32 %v3449, 7
    %v3451 = vsub.s32 %v853, %v3450
    %v3452 = vrot.slane %v3393, %v3451
    %v3453 = vsel %vm858, %v3452, %v3448
    %v3454 = vlaneseq
    %v3455 = vshrl.u32 %v3454, 7
    %v3456 = vsub.s32 %v848, %v3455
    %v3457 = vrot.slane %v3396, %v3456
    %v3458 = vlaneseq
    %v3459 = vshrl.u32 %v3458, 7
    %v3460 = vsub.s32 %v853, %v3459
    %v3461 = vrot.slane %v3399, %v3460
    %v3462 = vsel %vm858, %v3461, %v3457
    %v3463 = vlaneseq
    %v3464 = vshrl.u32 %v3463, 7
    %v3465 = vsub.s32 %v848, %v3464
    %v3466 = vrot.slane %v3402, %v3465
    %v3467 = vlaneseq
    %v3468 = vshrl.u32 %v3467, 7
    %v3469 = vsub.s32 %v853, %v3468
    %v3470 = vrot.slane %v3405, %v3469
    %v3471 = vsel %vm858, %v3470, %v3466
    %v3472 = vlaneseq
    %v3473 = vshrl.u32 %v3472, 7
    %v3474 = vsub.s32 %v848, %v3473
    %v3475 = vrot.slane %v3408, %v3474
    %v3476 = vlaneseq
    %v3477 = vshrl.u32 %v3476, 7
    %v3478 = vsub.s32 %v853, %v3477
    %v3479 = vrot.slane %v3411, %v3478
    %v3480 = vsel %vm858, %v3479, %v3475
    %v3481 = vlaneseq
    %v3482 = vshrl.u32 %v3481, 7
    %v3483 = vsub.s32 %v848, %v3482
    %v3484 = vrot.slane %v3414, %v3483
    %v3485 = vlaneseq
    %v3486 = vshrl.u32 %v3485, 7
    %v3487 = vsub.s32 %v853, %v3486
    %v3488 = vrot.slane %v3417, %v3487
    %v3489 = vsel %vm858, %v3488, %v3484
    %v3490 = vsel %vm923, %v3435, %v3426
    %v3491 = vsel %vm925, %v3444, %v3490
    %v3492 = vsel %vm927, %v3453, %v3491
    %v3493 = vsel %vm929, %v3462, %v3492
    %v3494 = vsel %vm931, %v3471, %v3493
    %v3495 = vsel %vm933, %v3480, %v3494
    %v3496 = vsel %vm935, %v3489, %v3495
    %v3497 = vsel %vm938, %v3496, 0
    %3499 = vmatprep.subr.mxu0 0.0
    %3500 = vmatpush1.msra.mxu0 %v196
    %3501 = vmatprep.subr.mxu0 0.0
    %3502 = vmatpush1.msra.mxu0 %v197
    %3503 = vmatprep.subr.mxu0 0.0
    %3504 = vmatpush1.msra.mxu0 0.0
    %3505 = vmatprep.subr.mxu0 0.0
    %3506 = vmatpush1.msra.mxu0 0.0
    %3507 = vmatprep.subr.mxu0 0.0
    %3508 = vmatpush1.msra.mxu0 0.0
    %3509 = vmatprep.subr.mxu0 0.0
    %3510 = vmatpush1.msra.mxu0 0.0
    %3511 = vmatprep.subr.mxu0 0.0
    %3512 = vmatpush1.msra.mxu0 0.0
    %3513 = vmatprep.subr.mxu0 0.0
    %3514 = vmatpush1.msra.mxu0 0.0
    %3515 = vmatprep.subr.mxu0 0.0
    %3516 = vmatpush1.msra.mxu0 0.0
    %3517 = vmatprep.subr.mxu0 0.0
    %3518 = vmatpush1.msra.mxu0 0.0
    %3519 = vmatprep.subr.mxu0 0.0
    %3520 = vmatpush1.msra.mxu0 0.0
    %3521 = vmatprep.subr.mxu0 0.0
    %3522 = vmatpush1.msra.mxu0 0.0
    %3523 = vmatprep.subr.mxu0 0.0
    %3524 = vmatpush1.msra.mxu0 0.0
    %3525 = vmatprep.subr.mxu0 0.0
    %3526 = vmatpush1.msra.mxu0 0.0
    %3527 = vmatprep.subr.mxu0 0.0
    %3528 = vmatpush1.msra.mxu0 0.0
    %3529 = vmatprep.subr.mxu0 0.0
    %3530 = vmatpush1.msra.mxu0 0.0
    %3531 = vmatprep.subr.mxu0 0.0
    %3532 = vmatpush1.msra.mxu0 0.0
    %3533 = vmatprep.subr.mxu0 0.0
    %3534 = vmatpush1.msra.mxu0 0.0
    %3535 = vmatprep.subr.mxu0 0.0
    %3536 = vmatpush1.msra.mxu0 0.0
    %3537 = vmatprep.subr.mxu0 0.0
    %3538 = vmatpush1.msra.mxu0 0.0
    %3539 = vmatprep.subr.mxu0 0.0
    %3540 = vmatpush1.msra.mxu0 0.0
    %3541 = vmatprep.subr.mxu0 0.0
    %3542 = vmatpush1.msra.mxu0 0.0
    %3543 = vmatprep.subr.mxu0 0.0
    %3544 = vmatpush1.msra.mxu0 0.0
    %3545 = vmatprep.subr.mxu0 0.0
    %3546 = vmatpush1.msra.mxu0 0.0
    %3547 = vmatprep.subr.mxu0 0.0
    %3548 = vmatpush1.msra.mxu0 0.0
    %3549 = vmatprep.subr.mxu0 0.0
    %3550 = vmatpush1.msra.mxu0 0.0
    %3551 = vmatprep.subr.mxu0 0.0
    %3552 = vmatpush1.msra.mxu0 0.0
    %3553 = vmatprep.subr.mxu0 0.0
    %3554 = vmatpush1.msra.mxu0 0.0
    %3555 = vmatprep.subr.mxu0 0.0
    %3556 = vmatpush1.msra.mxu0 0.0
    %3557 = vmatprep.subr.mxu0 0.0
    %3558 = vmatpush1.msra.mxu0 0.0
    %3559 = vmatprep.subr.mxu0 0.0
    %3560 = vmatpush1.msra.mxu0 0.0
    %3561 = vmatprep.subr.mxu0 0.0
    %3562 = vmatpush1.msra.mxu0 0.0
    %3563 = vmatprep.mubr.f32.mxu0 0.0
    %3564 = vmatmul.mubr.f32.gmra.mrb[0].mxu0 %v3497
    %v3565 = vpop.f32.mrb[0].mxu0
    %v3566 = vadd.f32 0.0, %v3565
    %v3567 = vpop.f32.mrb[0].mxu0
    %3568 = vdwg.mxu0
    %v3569 = vtanh.pop %v2533
    %v3570 = vmul.f32 %v3569, 0.1
    %v3571 = vadd.f32 %v3570, %v3566
    %v3572 = vsel %vm2531, 1, 0
    %3573 = vset.pattern.permute.xlu0 0
    %3574 = vperm.xlu0 %3573, %v3572
    %v3575 = vpop.permute.xlu0 %3574
    %vm3576 = vcmp.eq.s32.totalorder %v3575, 1
    %v3577 = vsel %vm3576, %v3571, %v3569
    %v3578 = vsel %vm3576, %v2637, %v2532
    %s3579 = scalar_lea.vmem [#allocation15], 16
    %3580 = vst [vmem:[%s3579] sm:$0xff] %v3577
    %s3581 = scalar_lea.vmem [#allocation16], 16
    %3582 = vst [vmem:[%s3581] sm:$0xff] %v3578
    %3583 = vst [vmem:[#allocation2] sm:$0xff] %v3578
    %3584 = vst [vmem:[#allocation3] sm:$0xff] %v3577
    %s3585 = scalar_lea.vmem [#allocation4], 72
    %v3586 = vld [vmem:[%s3585] sm:$0xff]
    %v3587 = vld [vmem:[%s3585 + $0x8] sm:$0xff]
    %v3588 = vld [vmem:[%s3585 + $0x10] sm:$0xff]
    %s3589 = scalar_lea.vmem %s1, 24
    %v3590 = vld [vmem:[%s3589] sm:$0xff]
    %vm3591 = vcmp.gt.f32.partialorder %v3590, 0.0
    %v3592 = vld [vmem:[#allocation2] sm:$0xff]
    %v3593 = vld [vmem:[#allocation3] sm:$0xff]
    %v3594 = vpack.c.bf16 %v3592, %v3592
    %3595 = vmatprep.subr.bf16.mxu0 %v287
    %3596 = vmatpush1.bf16.msra.mxu0 %v286
    %3597 = vmatprep.subr.bf16.mxu0 %v290
    %3598 = vmatpush1.bf16.msra.mxu0 %v289
    %3599 = vmatprep.subr.bf16.mxu0 %v293
    %3600 = vmatpush1.bf16.msra.mxu0 %v292
    %3601 = vmatprep.subr.bf16.mxu0 %v296
    %3602 = vmatpush1.bf16.msra.mxu0 %v295
    %3603 = vmatprep.subr.bf16.mxu0 %v299
    %3604 = vmatpush1.bf16.msra.mxu0 %v298
    %3605 = vmatprep.subr.bf16.mxu0 %v302
    %3606 = vmatpush1.bf16.msra.mxu0 %v301
    %3607 = vmatprep.subr.bf16.mxu0 %v305
    %3608 = vmatpush1.bf16.msra.mxu0 %v304
    %3609 = vmatprep.subr.bf16.mxu0 %v308
    %3610 = vmatpush1.bf16.msra.mxu0 %v307
    %3611 = vmatprep.subr.bf16.mxu0 0
    %3612 = vmatpush1.bf16.msra.mxu0 0
    %3613 = vmatprep.subr.bf16.mxu0 0
    %3614 = vmatpush1.bf16.msra.mxu0 0
    %3615 = vmatprep.subr.bf16.mxu0 0
    %3616 = vmatpush1.bf16.msra.mxu0 0
    %3617 = vmatprep.subr.bf16.mxu0 0
    %3618 = vmatpush1.bf16.msra.mxu0 0
    %3619 = vmatprep.subr.bf16.mxu0 0
    %3620 = vmatpush1.bf16.msra.mxu0 0
    %3621 = vmatprep.subr.bf16.mxu0 0
    %3622 = vmatpush1.bf16.msra.mxu0 0
    %3623 = vmatprep.subr.bf16.mxu0 0
    %3624 = vmatpush1.bf16.msra.mxu0 0
    %3625 = vmatprep.subr.bf16.mxu0 0
    %3626 = vmatpush1.bf16.msra.mxu0 0
    %3627 = vmatprep.mubr.bf16.mxu0 0
    %3628 = vmatmul.mubr.bf16.gmra.mrb[0].mxu0 %v3594
    %v3629 = vpop.f32.mrb[0].mxu0
    %v3630 = vadd.f32 0.0, %v3629
    %v3631 = vpop.f32.mrb[0].mxu0
    %v3632 = vadd.f32 0.0, %v3631
    %v3633 = vpop.f32.mrb[0].mxu0
    %v3634 = vpop.f32.mrb[0].mxu0
    %3635 = vdwg.mxu0
    %3636 = vmatprep.subr.bf16.mxu0 0
    %3637 = vmatpush1.bf16.msra.mxu0 %v288
    %3638 = vmatprep.subr.bf16.mxu0 0
    %3639 = vmatpush1.bf16.msra.mxu0 %v291
    %3640 = vmatprep.subr.bf16.mxu0 0
    %3641 = vmatpush1.bf16.msra.mxu0 %v294
    %3642 = vmatprep.subr.bf16.mxu0 0
    %3643 = vmatpush1.bf16.msra.mxu0 %v297
    %3644 = vmatprep.subr.bf16.mxu0 0
    %3645 = vmatpush1.bf16.msra.mxu0 %v300
    %3646 = vmatprep.subr.bf16.mxu0 0
    %3647 = vmatpush1.bf16.msra.mxu0 %v303
    %3648 = vmatprep.subr.bf16.mxu0 0
    %3649 = vmatpush1.bf16.msra.mxu0 %v306
    %3650 = vmatprep.subr.bf16.mxu0 0
    %3651 = vmatpush1.bf16.msra.mxu0 %v309
    %3652 = vmatprep.subr.bf16.mxu0 0
    %3653 = vmatpush1.bf16.msra.mxu0 0
    %3654 = vmatprep.subr.bf16.mxu0 0
    %3655 = vmatpush1.bf16.msra.mxu0 0
    %3656 = vmatprep.subr.bf16.mxu0 0
    %3657 = vmatpush1.bf16.msra.mxu0 0
    %3658 = vmatprep.subr.bf16.mxu0 0
    %3659 = vmatpush1.bf16.msra.mxu0 0
    %3660 = vmatprep.subr.bf16.mxu0 0
    %3661 = vmatpush1.bf16.msra.mxu0 0
    %3662 = vmatprep.subr.bf16.mxu0 0
    %3663 = vmatpush1.bf16.msra.mxu0 0
    %3664 = vmatprep.subr.bf16.mxu0 0
    %3665 = vmatpush1.bf16.msra.mxu0 0
    %3666 = vmatprep.subr.bf16.mxu0 0
    %3667 = vmatpush1.bf16.msra.mxu0 0
    %3668 = vmatprep.mubr.bf16.mxu0 0
    %3669 = vmatmul.mubr.bf16.gmra.mrb[0].mxu0 %v3594
    %v3670 = vpop.f32.mrb[0].mxu0
    %v3671 = vadd.f32 0.0, %v3670
    %v3672 = vpop.f32.mrb[0].mxu0
    %v3673 = vpop.f32.mrb[0].mxu0
    %v3674 = vpop.f32.mrb[0].mxu0
    %3675 = vdwg.mxu0
    %v3676 = vadd.f32 %v3586, %v3630
    %v3677 = vxor.u32 %v3676, 2147483648
    %v3678 = vmul.f32 %v3677, 1.442695
    %v3679 = vpow.pop %v3678
    %v3680 = vadd.f32 %v3679, 1.0
    %v3681 = vrcp.pop %v3680
    %v3682 = vmul.f32 1.0, %v3681
    %v3683 = vadd.f32 %v3587, %v3632
    %v3684 = vxor.u32 %v3683, 2147483648
    %v3685 = vmul.f32 %v3684, 1.442695
    %v3686 = vpow.pop %v3685
    %v3687 = vadd.f32 %v3686, 1.0
    %v3688 = vrcp.pop %v3687
    %v3689 = vmul.f32 1.0, %v3688
    %v3690 = vadd.f32 %v3671, %v433
    %v3691 = vmul.f32 %v3682, %v3690
    %v3692 = vadd.f32 %v3588, %v3691
    %v3693 = vtanh.pop %v3692
    %v3694 = vsub.f32 1.0, %v3689
    %v3695 = vmul.f32 %v3694, %v3693
    %v3696 = vmul.f32 %v3689, %v3592
    %v3697 = vadd.f32 %v3695, %v3696
    %v3698 = vpack.c.bf16 %v3697, %v3697
    %3699 = vmatprep.subr.bf16.mxu0 0
    %3700 = vmatpush1.bf16.msra.mxu0 %v482
    %3701 = vmatprep.subr.bf16.mxu0 0
    %3702 = vmatpush1.bf16.msra.mxu0 %v483
    %3703 = vmatprep.subr.bf16.mxu0 0
    %3704 = vmatpush1.bf16.msra.mxu0 %v484
    %3705 = vmatprep.subr.bf16.mxu0 0
    %3706 = vmatpush1.bf16.msra.mxu0 %v485
    %3707 = vmatprep.subr.bf16.mxu0 0
    %3708 = vmatpush1.bf16.msra.mxu0 %v486
    %3709 = vmatprep.subr.bf16.mxu0 0
    %3710 = vmatpush1.bf16.msra.mxu0 %v487
    %3711 = vmatprep.subr.bf16.mxu0 0
    %3712 = vmatpush1.bf16.msra.mxu0 %v488
    %3713 = vmatprep.subr.bf16.mxu0 0
    %3714 = vmatpush1.bf16.msra.mxu0 %v489
    %3715 = vmatprep.subr.bf16.mxu0 0
    %3716 = vmatpush1.bf16.msra.mxu0 0
    %3717 = vmatprep.subr.bf16.mxu0 0
    %3718 = vmatpush1.bf16.msra.mxu0 0
    %3719 = vmatprep.subr.bf16.mxu0 0
    %3720 = vmatpush1.bf16.msra.mxu0 0
    %3721 = vmatprep.subr.bf16.mxu0 0
    %3722 = vmatpush1.bf16.msra.mxu0 0
    %3723 = vmatprep.subr.bf16.mxu0 0
    %3724 = vmatpush1.bf16.msra.mxu0 0
    %3725 = vmatprep.subr.bf16.mxu0 0
    %3726 = vmatpush1.bf16.msra.mxu0 0
    %3727 = vmatprep.subr.bf16.mxu0 0
    %3728 = vmatpush1.bf16.msra.mxu0 0
    %3729 = vmatprep.subr.bf16.mxu0 0
    %3730 = vmatpush1.bf16.msra.mxu0 0
    %3731 = vmatprep.mubr.bf16.mxu0 0
    %3732 = vmatmul.mubr.bf16.gmra.mrb[0].mxu0 %v3698
    %v3733 = vpop.f32.mrb[0].mxu0
    %v3734 = vadd.f32 %v448, %v3733
    %v3735 = vpop.f32.mrb[0].mxu0
    %v3736 = vpop.f32.mrb[0].mxu0
    %v3737 = vpop.f32.mrb[0].mxu0
    %3738 = vdwg.mxu0
    %v3739 = vpack.c.bf16 %v3734, %v3734
    %v3742 = vunpack.c.l.s4 1966171168
    %v3743 = vunpack.c.0.s8 %v3742
    %v3744 = vlaneseq
    %v3745 = vshrl.u32 %v3744, 7
    %v3746 = vsub.s32 %v3743, %v3745
    %v3747 = vrot.slane %v3739, %v3746
    %v3748 = vcombine.high %v3747, %v3747
    %v3750 = vunpack.c.l.s4 1966171168
    %v3751 = vunpack.c.0.s8 %v3750
    %v3752 = vlaneseq
    %v3753 = vshrl.u32 %v3752, 7
    %v3754 = vsub.s32 %v3751, %v3753
    %v3755 = vrot.slane %v3747, %v3754
    %v3757 = vunpack.c.l.s4 1966171168
    %v3758 = vunpack.c.0.s8 %v3757
    %v3759 = vlaneseq
    %v3760 = vshrl.u32 %v3759, 7
    %v3761 = vsub.s32 %v3758, %v3760
    %v3762 = vrot.slane %v3748, %v3761
    %v3763 = vcombine.high %v3755, %v3755
    %v3764 = vcombine.high %v3762, %v3762
    %v3765 = vunpack.i.l.s16 %v3755
    %v3766 = vunpack.i.h.s16 %v3755
    %v3767 = vunpack.i.l.s16 %v3762
    %v3768 = vunpack.i.h.s16 %v3762
    %v3769 = vunpack.i.l.s16 %v3763
    %v3770 = vunpack.i.h.s16 %v3763
    %v3771 = vunpack.i.l.s16 %v3764
    %v3772 = vunpack.i.h.s16 %v3764
    %v3773 = vpack.i.b16 %v3765, %v3765
    %v3774 = vpack.i.b16 %v3766, %v3766
    %v3775 = vpack.i.b16 %v3767, %v3767
    %v3776 = vpack.i.b16 %v3768, %v3768
    %v3777 = vpack.i.b16 %v3769, %v3769
    %v3778 = vpack.i.b16 %v3770, %v3770
    %v3779 = vpack.i.b16 %v3771, %v3771
    %v3780 = vpack.i.b16 %v3772, %v3772
    %v3781 = vlaneseq
    %v3782 = vshrl.u32 %v3781, 7
    %v3783 = vsub.s32 0, %v3782
    %v3784 = vrot.slane %v3773, %v3783
    %v3785 = vlaneseq
    %v3786 = vshrl.u32 %v3785, 7
    %v3787 = vsub.s32 0, %v3786
    %v3788 = vrot.slane %v3774, %v3787
    %v3789 = vlaneseq
    %v3790 = vshrl.u32 %v3789, 7
    %v3791 = vsub.s32 0, %v3790
    %v3792 = vrot.slane %v3775, %v3791
    %v3793 = vlaneseq
    %v3794 = vshrl.u32 %v3793, 7
    %v3795 = vsub.s32 0, %v3794
    %v3796 = vrot.slane %v3776, %v3795
    %v3797 = vlaneseq
    %v3798 = vshrl.u32 %v3797, 7
    %v3799 = vsub.s32 0, %v3798
    %v3800 = vrot.slane %v3777, %v3799
    %v3801 = vlaneseq
    %v3802 = vshrl.u32 %v3801, 7
    %v3803 = vsub.s32 0, %v3802
    %v3804 = vrot.slane %v3778, %v3803
    %v3805 = vlaneseq
    %v3806 = vshrl.u32 %v3805, 7
    %v3807 = vsub.s32 0, %v3806
    %v3808 = vrot.slane %v3779, %v3807
    %v3809 = vlaneseq
    %v3810 = vshrl.u32 %v3809, 7
    %v3811 = vsub.s32 0, %v3810
    %v3812 = vrot.slane %v3780, %v3811
    %v3814 = vpack.i.b16 %v3784, %v3784
    %v3816 = vlaneseq
    %v3817 = vshrl.u32 %v3816, 7
    %v3818 = vsub.s32 0, %v3817
    %v3819 = vrot.slane %v3814, %v3818
    %v3821 = vpack.i.b16 %v3788, %v3788
    %v3823 = vlaneseq
    %v3824 = vshrl.u32 %v3823, 7
    %v3825 = vsub.s32 0, %v3824
    %v3826 = vrot.slane %v3821, %v3825
    %v3828 = vpack.i.b16 %v3792, %v3792
    %v3830 = vlaneseq
    %v3831 = vshrl.u32 %v3830, 7
    %v3832 = vsub.s32 0, %v3831
    %v3833 = vrot.slane %v3828, %v3832
    %v3835 = vpack.i.b16 %v3796, %v3796
    %v3837 = vlaneseq
    %v3838 = vshrl.u32 %v3837, 7
    %v3839 = vsub.s32 0, %v3838
    %v3840 = vrot.slane %v3835, %v3839
    %v3842 = vpack.i.b16 %v3800, %v3800
    %v3844 = vlaneseq
    %v3845 = vshrl.u32 %v3844, 7
    %v3846 = vsub.s32 0, %v3845
    %v3847 = vrot.slane %v3842, %v3846
    %v3849 = vpack.i.b16 %v3804, %v3804
    %v3851 = vlaneseq
    %v3852 = vshrl.u32 %v3851, 7
    %v3853 = vsub.s32 0, %v3852
    %v3854 = vrot.slane %v3849, %v3853
    %v3856 = vpack.i.b16 %v3808, %v3808
    %v3858 = vlaneseq
    %v3859 = vshrl.u32 %v3858, 7
    %v3860 = vsub.s32 0, %v3859
    %v3861 = vrot.slane %v3856, %v3860
    %v3863 = vpack.i.b16 %v3812, %v3812
    %v3865 = vlaneseq
    %v3866 = vshrl.u32 %v3865, 7
    %v3867 = vsub.s32 0, %v3866
    %v3868 = vrot.slane %v3863, %v3867
    %v3877 = vunpack.c.l.b16 %v3819
    %v3878 = vunpack.c.h.b16 %v3819
    %v3879 = vunpack.c.l.b16 %v3826
    %v3880 = vunpack.c.h.b16 %v3826
    %v3881 = vunpack.c.l.b16 %v3833
    %v3882 = vunpack.c.h.b16 %v3833
    %v3883 = vunpack.c.l.b16 %v3840
    %v3884 = vunpack.c.h.b16 %v3840
    %v3885 = vunpack.c.l.b16 %v3847
    %v3886 = vunpack.c.h.b16 %v3847
    %v3887 = vunpack.c.l.b16 %v3854
    %v3888 = vunpack.c.h.b16 %v3854
    %v3889 = vunpack.c.l.b16 %v3861
    %v3890 = vunpack.c.h.b16 %v3861
    %v3891 = vunpack.c.l.b16 %v3868
    %v3892 = vunpack.c.h.b16 %v3868
    %v3893 = vpack.c.b16 %v3877, %v3877
    %v3894 = vpack.c.b16 %v3878, %v3878
    %v3895 = vpack.c.b16 %v3879, %v3879
    %v3896 = vpack.c.b16 %v3880, %v3880
    %v3897 = vpack.c.b16 %v3881, %v3881
    %v3898 = vpack.c.b16 %v3882, %v3882
    %v3899 = vpack.c.b16 %v3883, %v3883
    %v3900 = vpack.c.b16 %v3884, %v3884
    %v3901 = vpack.c.b16 %v3885, %v3885
    %v3902 = vpack.c.b16 %v3886, %v3886
    %v3903 = vpack.c.b16 %v3887, %v3887
    %v3904 = vpack.c.b16 %v3888, %v3888
    %v3905 = vpack.c.b16 %v3889, %v3889
    %v3906 = vpack.c.b16 %v3890, %v3890
    %v3907 = vpack.c.b16 %v3891, %v3891
    %v3908 = vpack.c.b16 %v3892, %v3892
    %v3925 = vadd.bf16 %v179, %v3893
    %v3926 = vadd.bf16 %v180, %v3894
    %v3927 = vadd.bf16 %v181, %v3895
    %v3928 = vadd.bf16 %v182, %v3896
    %v3929 = vadd.bf16 %v183, %v3897
    %v3930 = vadd.bf16 %v184, %v3898
    %v3931 = vadd.bf16 %v185, %v3899
    %v3932 = vadd.bf16 %v186, %v3900
    %v3933 = vadd.bf16 %v187, %v3901
    %v3934 = vadd.bf16 %v188, %v3902
    %v3935 = vadd.bf16 %v189, %v3903
    %v3936 = vadd.bf16 %v190, %v3904
    %v3937 = vadd.bf16 %v191, %v3905
    %v3938 = vadd.bf16 %v192, %v3906
    %v3939 = vadd.bf16 %v193, %v3907
    %v3940 = vadd.bf16 %v194, %v3908
    %v3941 = vtanh.bf16.pop %v3925
    %v3942 = vtanh.bf16.pop %v3926
    %v3943 = vtanh.bf16.pop %v3927
    %v3944 = vtanh.bf16.pop %v3928
    %v3945 = vtanh.bf16.pop %v3929
    %v3946 = vtanh.bf16.pop %v3930
    %v3947 = vtanh.bf16.pop %v3931
    %v3948 = vtanh.bf16.pop %v3932
    %v3949 = vtanh.bf16.pop %v3933
    %v3950 = vtanh.bf16.pop %v3934
    %v3951 = vtanh.bf16.pop %v3935
    %v3952 = vtanh.bf16.pop %v3936
    %v3953 = vtanh.bf16.pop %v3937
    %v3954 = vtanh.bf16.pop %v3938
    %v3955 = vtanh.bf16.pop %v3939
    %v3956 = vtanh.bf16.pop %v3940
    %v3957 = vmul.bf16 %v3941, %v765
    %v3958 = vmul.bf16 %v3942, %v765
    %v3959 = vmul.bf16 %v3943, %v765
    %v3960 = vmul.bf16 %v3944, %v765
    %v3961 = vmul.bf16 %v3945, %v765
    %v3962 = vmul.bf16 %v3946, %v765
    %v3963 = vmul.bf16 %v3947, %v765
    %v3964 = vmul.bf16 %v3948, %v765
    %v3965 = vmul.bf16 %v3949, %v765
    %v3966 = vmul.bf16 %v3950, %v765
    %v3967 = vmul.bf16 %v3951, %v765
    %v3968 = vmul.bf16 %v3952, %v765
    %v3969 = vmul.bf16 %v3953, %v765
    %v3970 = vmul.bf16 %v3954, %v765
    %v3971 = vmul.bf16 %v3955, %v765
    %v3972 = vmul.bf16 %v3956, %v765
    %v3973 = vunpack.c.l.bf16 %v3957
    %v3974 = vunpack.c.l.bf16 %v3958
    %v3975 = vunpack.c.l.bf16 %v3959
    %v3976 = vunpack.c.l.bf16 %v3960
    %v3977 = vunpack.c.l.bf16 %v3961
    %v3978 = vunpack.c.l.bf16 %v3962
    %v3979 = vunpack.c.l.bf16 %v3963
    %v3980 = vunpack.c.l.bf16 %v3964
    %v3981 = vunpack.c.l.bf16 %v3965
    %v3982 = vunpack.c.l.bf16 %v3966
    %v3983 = vunpack.c.l.bf16 %v3967
    %v3984 = vunpack.c.l.bf16 %v3968
    %v3985 = vunpack.c.l.bf16 %v3969
    %v3986 = vunpack.c.l.bf16 %v3970
    %v3987 = vunpack.c.l.bf16 %v3971
    %v3988 = vunpack.c.l.bf16 %v3972
    %3989 = vadd.xlane.f32.xlu0 %v3973
    %v3990 = vpop.xlane.xlu0 %3989
    %3991 = vadd.xlane.f32.xlu0 %v3974
    %v3992 = vpop.xlane.xlu0 %3991
    %3993 = vadd.xlane.f32.xlu0 %v3975
    %v3994 = vpop.xlane.xlu0 %3993
    %3995 = vadd.xlane.f32.xlu0 %v3976
    %v3996 = vpop.xlane.xlu0 %3995
    %3997 = vadd.xlane.f32.xlu0 %v3977
    %v3998 = vpop.xlane.xlu0 %3997
    %3999 = vadd.xlane.f32.xlu0 %v3978
    %v4000 = vpop.xlane.xlu0 %3999
    %4001 = vadd.xlane.f32.xlu0 %v3979
    %v4002 = vpop.xlane.xlu0 %4001
    %4003 = vadd.xlane.f32.xlu0 %v3980
    %v4004 = vpop.xlane.xlu0 %4003
    %4005 = vadd.xlane.f32.xlu0 %v3981
    %v4006 = vpop.xlane.xlu0 %4005
    %4007 = vadd.xlane.f32.xlu0 %v3982
    %v4008 = vpop.xlane.xlu0 %4007
    %4009 = vadd.xlane.f32.xlu0 %v3983
    %v4010 = vpop.xlane.xlu0 %4009
    %4011 = vadd.xlane.f32.xlu0 %v3984
    %v4012 = vpop.xlane.xlu0 %4011
    %4013 = vadd.xlane.f32.xlu0 %v3985
    %v4014 = vpop.xlane.xlu0 %4013
    %4015 = vadd.xlane.f32.xlu0 %v3986
    %v4016 = vpop.xlane.xlu0 %4015
    %4017 = vadd.xlane.f32.xlu0 %v3987
    %v4018 = vpop.xlane.xlu0 %4017
    %4019 = vadd.xlane.f32.xlu0 %v3988
    %v4020 = vpop.xlane.xlu0 %4019
    %v4037 = vlaneseq
    %v4038 = vshrl.u32 %v4037, 7
    %v4039 = vsub.s32 %v848, %v4038
    %v4040 = vrot.slane %v3990, %v4039
    %v4041 = vlaneseq
    %v4042 = vshrl.u32 %v4041, 7
    %v4043 = vsub.s32 %v853, %v4042
    %v4044 = vrot.slane %v3992, %v4043
    %v4045 = vsel %vm858, %v4044, %v4040
    %v4046 = vlaneseq
    %v4047 = vshrl.u32 %v4046, 7
    %v4048 = vsub.s32 %v848, %v4047
    %v4049 = vrot.slane %v3994, %v4048
    %v4050 = vlaneseq
    %v4051 = vshrl.u32 %v4050, 7
    %v4052 = vsub.s32 %v853, %v4051
    %v4053 = vrot.slane %v3996, %v4052
    %v4054 = vsel %vm858, %v4053, %v4049
    %v4055 = vlaneseq
    %v4056 = vshrl.u32 %v4055, 7
    %v4057 = vsub.s32 %v848, %v4056
    %v4058 = vrot.slane %v3998, %v4057
    %v4059 = vlaneseq
    %v4060 = vshrl.u32 %v4059, 7
    %v4061 = vsub.s32 %v853, %v4060
    %v4062 = vrot.slane %v4000, %v4061
    %v4063 = vsel %vm858, %v4062, %v4058
    %v4064 = vlaneseq
    %v4065 = vshrl.u32 %v4064, 7
    %v4066 = vsub.s32 %v848, %v4065
    %v4067 = vrot.slane %v4002, %v4066
    %v4068 = vlaneseq
    %v4069 = vshrl.u32 %v4068, 7
    %v4070 = vsub.s32 %v853, %v4069
    %v4071 = vrot.slane %v4004, %v4070
    %v4072 = vsel %vm858, %v4071, %v4067
    %v4073 = vlaneseq
    %v4074 = vshrl.u32 %v4073, 7
    %v4075 = vsub.s32 %v848, %v4074
    %v4076 = vrot.slane %v4006, %v4075
    %v4077 = vlaneseq
    %v4078 = vshrl.u32 %v4077, 7
    %v4079 = vsub.s32 %v853, %v4078
    %v4080 = vrot.slane %v4008, %v4079
    %v4081 = vsel %vm858, %v4080, %v4076
    %v4082 = vlaneseq
    %v4083 = vshrl.u32 %v4082, 7
    %v4084 = vsub.s32 %v848, %v4083
    %v4085 = vrot.slane %v4010, %v4084
    %v4086 = vlaneseq
    %v4087 = vshrl.u32 %v4086, 7
    %v4088 = vsub.s32 %v853, %v4087
    %v4089 = vrot.slane %v4012, %v4088
    %v4090 = vsel %vm858, %v4089, %v4085
    %v4091 = vlaneseq
    %v4092 = vshrl.u32 %v4091, 7
    %v4093 = vsub.s32 %v848, %v4092
    %v4094 = vrot.slane %v4014, %v4093
    %v4095 = vlaneseq
    %v4096 = vshrl.u32 %v4095, 7
    %v4097 = vsub.s32 %v853, %v4096
    %v4098 = vrot.slane %v4016, %v4097
    %v4099 = vsel %vm858, %v4098, %v4094
    %v4100 = vlaneseq
    %v4101 = vshrl.u32 %v4100, 7
    %v4102 = vsub.s32 %v848, %v4101
    %v4103 = vrot.slane %v4018, %v4102
    %v4104 = vlaneseq
    %v4105 = vshrl.u32 %v4104, 7
    %v4106 = vsub.s32 %v853, %v4105
    %v4107 = vrot.slane %v4020, %v4106
    %v4108 = vsel %vm858, %v4107, %v4103
    %v4109 = vsel %vm923, %v4054, %v4045
    %v4110 = vsel %vm925, %v4063, %v4109
    %v4111 = vsel %vm927, %v4072, %v4110
    %v4112 = vsel %vm929, %v4081, %v4111
    %v4113 = vsel %vm931, %v4090, %v4112
    %v4114 = vsel %vm933, %v4099, %v4113
    %v4115 = vsel %vm935, %v4108, %v4114
    %v4117 = vsel %vm938, %v4115, -inf
    %4118 = vmax.xlane.f32.xlu0 %v4117
    %v4119 = vpop.xlane.xlu0 %4118
    %v4121 = vlaneseq
    %v4122 = vshrl.u32 %v4121, 7
    %v4123 = vsub.s32 0, %v4122
    %v4124 = vrot.slane %v4119, %v4123
    %v4125 = vlaneseq
    %v4126 = vshrl.u32 %v4125, 7
    %v4127 = vsub.s32 1, %v4126
    %v4128 = vrot.slane %v4119, %v4127
    %v4129 = vlaneseq
    %v4130 = vshrl.u32 %v4129, 7
    %v4131 = vsub.s32 2, %v4130
    %v4132 = vrot.slane %v4119, %v4131
    %v4133 = vlaneseq
    %v4134 = vshrl.u32 %v4133, 7
    %v4135 = vsub.s32 3, %v4134
    %v4136 = vrot.slane %v4119, %v4135
    %v4137 = vlaneseq
    %v4138 = vshrl.u32 %v4137, 7
    %v4139 = vsub.s32 4, %v4138
    %v4140 = vrot.slane %v4119, %v4139
    %v4141 = vlaneseq
    %v4142 = vshrl.u32 %v4141, 7
    %v4143 = vsub.s32 5, %v4142
    %v4144 = vrot.slane %v4119, %v4143
    %v4145 = vlaneseq
    %v4146 = vshrl.u32 %v4145, 7
    %v4147 = vsub.s32 6, %v4146
    %v4148 = vrot.slane %v4119, %v4147
    %v4149 = vlaneseq
    %v4150 = vshrl.u32 %v4149, 7
    %v4151 = vsub.s32 7, %v4150
    %v4152 = vrot.slane %v4119, %v4151
    %v4161 = vsub.f32 %v3990, %v4124
    %v4162 = vsub.f32 %v3992, %v4124
    %v4163 = vsub.f32 %v3994, %v4128
    %v4164 = vsub.f32 %v3996, %v4128
    %v4165 = vsub.f32 %v3998, %v4132
    %v4166 = vsub.f32 %v4000, %v4132
    %v4167 = vsub.f32 %v4002, %v4136
    %v4168 = vsub.f32 %v4004, %v4136
    %v4169 = vsub.f32 %v4006, %v4140
    %v4170 = vsub.f32 %v4008, %v4140
    %v4171 = vsub.f32 %v4010, %v4144
    %v4172 = vsub.f32 %v4012, %v4144
    %v4173 = vsub.f32 %v4014, %v4148
    %v4174 = vsub.f32 %v4016, %v4148
    %v4175 = vsub.f32 %v4018, %v4152
    %v4176 = vsub.f32 %v4020, %v4152
    %v4177 = vmul.f32 %v4161, 1.442695
    %v4178 = vpow.pop %v4177
    %v4179 = vmul.f32 %v4162, 1.442695
    %v4180 = vpow.pop %v4179
    %v4181 = vmul.f32 %v4163, 1.442695
    %v4182 = vpow.pop %v4181
    %v4183 = vmul.f32 %v4164, 1.442695
    %v4184 = vpow.pop %v4183
    %v4185 = vmul.f32 %v4165, 1.442695
    %v4186 = vpow.pop %v4185
    %v4187 = vmul.f32 %v4166, 1.442695
    %v4188 = vpow.pop %v4187
    %v4189 = vmul.f32 %v4167, 1.442695
    %v4190 = vpow.pop %v4189
    %v4191 = vmul.f32 %v4168, 1.442695
    %v4192 = vpow.pop %v4191
    %v4193 = vmul.f32 %v4169, 1.442695
    %v4194 = vpow.pop %v4193
    %v4195 = vmul.f32 %v4170, 1.442695
    %v4196 = vpow.pop %v4195
    %v4197 = vmul.f32 %v4171, 1.442695
    %v4198 = vpow.pop %v4197
    %v4199 = vmul.f32 %v4172, 1.442695
    %v4200 = vpow.pop %v4199
    %v4201 = vmul.f32 %v4173, 1.442695
    %v4202 = vpow.pop %v4201
    %v4203 = vmul.f32 %v4174, 1.442695
    %v4204 = vpow.pop %v4203
    %v4205 = vmul.f32 %v4175, 1.442695
    %v4206 = vpow.pop %v4205
    %v4207 = vmul.f32 %v4176, 1.442695
    %v4208 = vpow.pop %v4207
    %4225 = vset.pattern.permute.xlu0 0
    %4226 = vperm.xlu0 %4225, %v4178
    %v4227 = vpop.permute.xlu0 %4226
    %4228 = vset.pattern.permute.xlu0 0
    %4229 = vperm.xlu0 %4228, %v4180
    %v4230 = vpop.permute.xlu0 %4229
    %4231 = vset.pattern.permute.xlu0 0
    %4232 = vperm.xlu0 %4231, %v4182
    %v4233 = vpop.permute.xlu0 %4232
    %4234 = vset.pattern.permute.xlu0 0
    %4235 = vperm.xlu0 %4234, %v4184
    %v4236 = vpop.permute.xlu0 %4235
    %4237 = vset.pattern.permute.xlu0 0
    %4238 = vperm.xlu0 %4237, %v4186
    %v4239 = vpop.permute.xlu0 %4238
    %4240 = vset.pattern.permute.xlu0 0
    %4241 = vperm.xlu0 %4240, %v4188
    %v4242 = vpop.permute.xlu0 %4241
    %4243 = vset.pattern.permute.xlu0 0
    %4244 = vperm.xlu0 %4243, %v4190
    %v4245 = vpop.permute.xlu0 %4244
    %4246 = vset.pattern.permute.xlu0 0
    %4247 = vperm.xlu0 %4246, %v4192
    %v4248 = vpop.permute.xlu0 %4247
    %4249 = vset.pattern.permute.xlu0 0
    %4250 = vperm.xlu0 %4249, %v4194
    %v4251 = vpop.permute.xlu0 %4250
    %4252 = vset.pattern.permute.xlu0 0
    %4253 = vperm.xlu0 %4252, %v4196
    %v4254 = vpop.permute.xlu0 %4253
    %4255 = vset.pattern.permute.xlu0 0
    %4256 = vperm.xlu0 %4255, %v4198
    %v4257 = vpop.permute.xlu0 %4256
    %4258 = vset.pattern.permute.xlu0 0
    %4259 = vperm.xlu0 %4258, %v4200
    %v4260 = vpop.permute.xlu0 %4259
    %4261 = vset.pattern.permute.xlu0 0
    %4262 = vperm.xlu0 %4261, %v4202
    %v4263 = vpop.permute.xlu0 %4262
    %4264 = vset.pattern.permute.xlu0 0
    %4265 = vperm.xlu0 %4264, %v4204
    %v4266 = vpop.permute.xlu0 %4265
    %4267 = vset.pattern.permute.xlu0 0
    %4268 = vperm.xlu0 %4267, %v4206
    %v4269 = vpop.permute.xlu0 %4268
    %4270 = vset.pattern.permute.xlu0 0
    %4271 = vperm.xlu0 %4270, %v4208
    %v4272 = vpop.permute.xlu0 %4271
    %v4273 = vlaneseq
    %v4274 = vshrl.u32 %v4273, 7
    %v4275 = vsub.s32 %v848, %v4274
    %v4276 = vrot.slane %v4227, %v4275
    %v4277 = vlaneseq
    %v4278 = vshrl.u32 %v4277, 7
    %v4279 = vsub.s32 %v853, %v4278
    %v4280 = vrot.slane %v4230, %v4279
    %v4281 = vsel %vm858, %v4280, %v4276
    %v4282 = vlaneseq
    %v4283 = vshrl.u32 %v4282, 7
    %v4284 = vsub.s32 %v848, %v4283
    %v4285 = vrot.slane %v4233, %v4284
    %v4286 = vlaneseq
    %v4287 = vshrl.u32 %v4286, 7
    %v4288 = vsub.s32 %v853, %v4287
    %v4289 = vrot.slane %v4236, %v4288
    %v4290 = vsel %vm858, %v4289, %v4285
    %v4291 = vlaneseq
    %v4292 = vshrl.u32 %v4291, 7
    %v4293 = vsub.s32 %v848, %v4292
    %v4294 = vrot.slane %v4239, %v4293
    %v4295 = vlaneseq
    %v4296 = vshrl.u32 %v4295, 7
    %v4297 = vsub.s32 %v853, %v4296
    %v4298 = vrot.slane %v4242, %v4297
    %v4299 = vsel %vm858, %v4298, %v4294
    %v4300 = vlaneseq
    %v4301 = vshrl.u32 %v4300, 7
    %v4302 = vsub.s32 %v848, %v4301
    %v4303 = vrot.slane %v4245, %v4302
    %v4304 = vlaneseq
    %v4305 = vshrl.u32 %v4304, 7
    %v4306 = vsub.s32 %v853, %v4305
    %v4307 = vrot.slane %v4248, %v4306
    %v4308 = vsel %vm858, %v4307, %v4303
    %v4309 = vlaneseq
    %v4310 = vshrl.u32 %v4309, 7
    %v4311 = vsub.s32 %v848, %v4310
    %v4312 = vrot.slane %v4251, %v4311
    %v4313 = vlaneseq
    %v4314 = vshrl.u32 %v4313, 7
    %v4315 = vsub.s32 %v853, %v4314
    %v4316 = vrot.slane %v4254, %v4315
    %v4317 = vsel %vm858, %v4316, %v4312
    %v4318 = vlaneseq
    %v4319 = vshrl.u32 %v4318, 7
    %v4320 = vsub.s32 %v848, %v4319
    %v4321 = vrot.slane %v4257, %v4320
    %v4322 = vlaneseq
    %v4323 = vshrl.u32 %v4322, 7
    %v4324 = vsub.s32 %v853, %v4323
    %v4325 = vrot.slane %v4260, %v4324
    %v4326 = vsel %vm858, %v4325, %v4321
    %v4327 = vlaneseq
    %v4328 = vshrl.u32 %v4327, 7
    %v4329 = vsub.s32 %v848, %v4328
    %v4330 = vrot.slane %v4263, %v4329
    %v4331 = vlaneseq
    %v4332 = vshrl.u32 %v4331, 7
    %v4333 = vsub.s32 %v853, %v4332
    %v4334 = vrot.slane %v4266, %v4333
    %v4335 = vsel %vm858, %v4334, %v4330
    %v4336 = vlaneseq
    %v4337 = vshrl.u32 %v4336, 7
    %v4338 = vsub.s32 %v848, %v4337
    %v4339 = vrot.slane %v4269, %v4338
    %v4340 = vlaneseq
    %v4341 = vshrl.u32 %v4340, 7
    %v4342 = vsub.s32 %v853, %v4341
    %v4343 = vrot.slane %v4272, %v4342
    %v4344 = vsel %vm858, %v4343, %v4339
    %v4345 = vsel %vm923, %v4290, %v4281
    %v4346 = vsel %vm925, %v4299, %v4345
    %v4347 = vsel %vm927, %v4308, %v4346
    %v4348 = vsel %vm929, %v4317, %v4347
    %v4349 = vsel %vm931, %v4326, %v4348
    %v4350 = vsel %vm933, %v4335, %v4349
    %v4351 = vsel %vm935, %v4344, %v4350
    %v4353 = vsel %vm938, %v4351, 0.0
    %4354 = vadd.xlane.f32.xlu0 %v4353
    %v4355 = vpop.xlane.xlu0 %4354
    %v4356 = vrcp.pop %v4355
    %v4358 = vlaneseq
    %v4359 = vshrl.u32 %v4358, 7
    %v4360 = vsub.s32 0, %v4359
    %v4361 = vrot.slane %v4356, %v4360
    %v4362 = vlaneseq
    %v4363 = vshrl.u32 %v4362, 7
    %v4364 = vsub.s32 1, %v4363
    %v4365 = vrot.slane %v4356, %v4364
    %v4366 = vlaneseq
    %v4367 = vshrl.u32 %v4366, 7
    %v4368 = vsub.s32 2, %v4367
    %v4369 = vrot.slane %v4356, %v4368
    %v4370 = vlaneseq
    %v4371 = vshrl.u32 %v4370, 7
    %v4372 = vsub.s32 3, %v4371
    %v4373 = vrot.slane %v4356, %v4372
    %v4374 = vlaneseq
    %v4375 = vshrl.u32 %v4374, 7
    %v4376 = vsub.s32 4, %v4375
    %v4377 = vrot.slane %v4356, %v4376
    %v4378 = vlaneseq
    %v4379 = vshrl.u32 %v4378, 7
    %v4380 = vsub.s32 5, %v4379
    %v4381 = vrot.slane %v4356, %v4380
    %v4382 = vlaneseq
    %v4383 = vshrl.u32 %v4382, 7
    %v4384 = vsub.s32 6, %v4383
    %v4385 = vrot.slane %v4356, %v4384
    %v4386 = vlaneseq
    %v4387 = vshrl.u32 %v4386, 7
    %v4388 = vsub.s32 7, %v4387
    %v4389 = vrot.slane %v4356, %v4388
    %v4398 = vmul.f32 %v4178, %v4361
    %v4399 = vmul.f32 %v4180, %v4361
    %v4400 = vmul.f32 %v4182, %v4365
    %v4401 = vmul.f32 %v4184, %v4365
    %v4402 = vmul.f32 %v4186, %v4369
    %v4403 = vmul.f32 %v4188, %v4369
    %v4404 = vmul.f32 %v4190, %v4373
    %v4405 = vmul.f32 %v4192, %v4373
    %v4406 = vmul.f32 %v4194, %v4377
    %v4407 = vmul.f32 %v4196, %v4377
    %v4408 = vmul.f32 %v4198, %v4381
    %v4409 = vmul.f32 %v4200, %v4381
    %v4410 = vmul.f32 %v4202, %v4385
    %v4411 = vmul.f32 %v4204, %v4385
    %v4412 = vmul.f32 %v4206, %v4389
    %v4413 = vmul.f32 %v4208, %v4389
    %4430 = vset.pattern.permute.xlu0 0
    %4431 = vperm.xlu0 %4430, %v4398
    %v4432 = vpop.permute.xlu0 %4431
    %4433 = vset.pattern.permute.xlu0 0
    %4434 = vperm.xlu0 %4433, %v4399
    %v4435 = vpop.permute.xlu0 %4434
    %4436 = vset.pattern.permute.xlu0 0
    %4437 = vperm.xlu0 %4436, %v4400
    %v4438 = vpop.permute.xlu0 %4437
    %4439 = vset.pattern.permute.xlu0 0
    %4440 = vperm.xlu0 %4439, %v4401
    %v4441 = vpop.permute.xlu0 %4440
    %4442 = vset.pattern.permute.xlu0 0
    %4443 = vperm.xlu0 %4442, %v4402
    %v4444 = vpop.permute.xlu0 %4443
    %4445 = vset.pattern.permute.xlu0 0
    %4446 = vperm.xlu0 %4445, %v4403
    %v4447 = vpop.permute.xlu0 %4446
    %4448 = vset.pattern.permute.xlu0 0
    %4449 = vperm.xlu0 %4448, %v4404
    %v4450 = vpop.permute.xlu0 %4449
    %4451 = vset.pattern.permute.xlu0 0
    %4452 = vperm.xlu0 %4451, %v4405
    %v4453 = vpop.permute.xlu0 %4452
    %4454 = vset.pattern.permute.xlu0 0
    %4455 = vperm.xlu0 %4454, %v4406
    %v4456 = vpop.permute.xlu0 %4455
    %4457 = vset.pattern.permute.xlu0 0
    %4458 = vperm.xlu0 %4457, %v4407
    %v4459 = vpop.permute.xlu0 %4458
    %4460 = vset.pattern.permute.xlu0 0
    %4461 = vperm.xlu0 %4460, %v4408
    %v4462 = vpop.permute.xlu0 %4461
    %4463 = vset.pattern.permute.xlu0 0
    %4464 = vperm.xlu0 %4463, %v4409
    %v4465 = vpop.permute.xlu0 %4464
    %4466 = vset.pattern.permute.xlu0 0
    %4467 = vperm.xlu0 %4466, %v4410
    %v4468 = vpop.permute.xlu0 %4467
    %4469 = vset.pattern.permute.xlu0 0
    %4470 = vperm.xlu0 %4469, %v4411
    %v4471 = vpop.permute.xlu0 %4470
    %4472 = vset.pattern.permute.xlu0 0
    %4473 = vperm.xlu0 %4472, %v4412
    %v4474 = vpop.permute.xlu0 %4473
    %4475 = vset.pattern.permute.xlu0 0
    %4476 = vperm.xlu0 %4475, %v4413
    %v4477 = vpop.permute.xlu0 %4476
    %v4478 = vlaneseq
    %v4479 = vshrl.u32 %v4478, 7
    %v4480 = vsub.s32 %v848, %v4479
    %v4481 = vrot.slane %v4432, %v4480
    %v4482 = vlaneseq
    %v4483 = vshrl.u32 %v4482, 7
    %v4484 = vsub.s32 %v853, %v4483
    %v4485 = vrot.slane %v4435, %v4484
    %v4486 = vsel %vm858, %v4485, %v4481
    %v4487 = vlaneseq
    %v4488 = vshrl.u32 %v4487, 7
    %v4489 = vsub.s32 %v848, %v4488
    %v4490 = vrot.slane %v4438, %v4489
    %v4491 = vlaneseq
    %v4492 = vshrl.u32 %v4491, 7
    %v4493 = vsub.s32 %v853, %v4492
    %v4494 = vrot.slane %v4441, %v4493
    %v4495 = vsel %vm858, %v4494, %v4490
    %v4496 = vlaneseq
    %v4497 = vshrl.u32 %v4496, 7
    %v4498 = vsub.s32 %v848, %v4497
    %v4499 = vrot.slane %v4444, %v4498
    %v4500 = vlaneseq
    %v4501 = vshrl.u32 %v4500, 7
    %v4502 = vsub.s32 %v853, %v4501
    %v4503 = vrot.slane %v4447, %v4502
    %v4504 = vsel %vm858, %v4503, %v4499
    %v4505 = vlaneseq
    %v4506 = vshrl.u32 %v4505, 7
    %v4507 = vsub.s32 %v848, %v4506
    %v4508 = vrot.slane %v4450, %v4507
    %v4509 = vlaneseq
    %v4510 = vshrl.u32 %v4509, 7
    %v4511 = vsub.s32 %v853, %v4510
    %v4512 = vrot.slane %v4453, %v4511
    %v4513 = vsel %vm858, %v4512, %v4508
    %v4514 = vlaneseq
    %v4515 = vshrl.u32 %v4514, 7
    %v4516 = vsub.s32 %v848, %v4515
    %v4517 = vrot.slane %v4456, %v4516
    %v4518 = vlaneseq
    %v4519 = vshrl.u32 %v4518, 7
    %v4520 = vsub.s32 %v853, %v4519
    %v4521 = vrot.slane %v4459, %v4520
    %v4522 = vsel %vm858, %v4521, %v4517
    %v4523 = vlaneseq
    %v4524 = vshrl.u32 %v4523, 7
    %v4525 = vsub.s32 %v848, %v4524
    %v4526 = vrot.slane %v4462, %v4525
    %v4527 = vlaneseq
    %v4528 = vshrl.u32 %v4527, 7
    %v4529 = vsub.s32 %v853, %v4528
    %v4530 = vrot.slane %v4465, %v4529
    %v4531 = vsel %vm858, %v4530, %v4526
    %v4532 = vlaneseq
    %v4533 = vshrl.u32 %v4532, 7
    %v4534 = vsub.s32 %v848, %v4533
    %v4535 = vrot.slane %v4468, %v4534
    %v4536 = vlaneseq
    %v4537 = vshrl.u32 %v4536, 7
    %v4538 = vsub.s32 %v853, %v4537
    %v4539 = vrot.slane %v4471, %v4538
    %v4540 = vsel %vm858, %v4539, %v4535
    %v4541 = vlaneseq
    %v4542 = vshrl.u32 %v4541, 7
    %v4543 = vsub.s32 %v848, %v4542
    %v4544 = vrot.slane %v4474, %v4543
    %v4545 = vlaneseq
    %v4546 = vshrl.u32 %v4545, 7
    %v4547 = vsub.s32 %v853, %v4546
    %v4548 = vrot.slane %v4477, %v4547
    %v4549 = vsel %vm858, %v4548, %v4544
    %v4550 = vsel %vm923, %v4495, %v4486
    %v4551 = vsel %vm925, %v4504, %v4550
    %v4552 = vsel %vm927, %v4513, %v4551
    %v4553 = vsel %vm929, %v4522, %v4552
    %v4554 = vsel %vm931, %v4531, %v4553
    %v4555 = vsel %vm933, %v4540, %v4554
    %v4556 = vsel %vm935, %v4549, %v4555
    %v4557 = vsel %vm938, %v4556, 0
    %4559 = vmatprep.subr.mxu0 0.0
    %4560 = vmatpush1.msra.mxu0 %v196
    %4561 = vmatprep.subr.mxu0 0.0
    %4562 = vmatpush1.msra.mxu0 %v197
    %4563 = vmatprep.subr.mxu0 0.0
    %4564 = vmatpush1.msra.mxu0 0.0
    %4565 = vmatprep.subr.mxu0 0.0
    %4566 = vmatpush1.msra.mxu0 0.0
    %4567 = vmatprep.subr.mxu0 0.0
    %4568 = vmatpush1.msra.mxu0 0.0
    %4569 = vmatprep.subr.mxu0 0.0
    %4570 = vmatpush1.msra.mxu0 0.0
    %4571 = vmatprep.subr.mxu0 0.0
    %4572 = vmatpush1.msra.mxu0 0.0
    %4573 = vmatprep.subr.mxu0 0.0
    %4574 = vmatpush1.msra.mxu0 0.0
    %4575 = vmatprep.subr.mxu0 0.0
    %4576 = vmatpush1.msra.mxu0 0.0
    %4577 = vmatprep.subr.mxu0 0.0
    %4578 = vmatpush1.msra.mxu0 0.0
    %4579 = vmatprep.subr.mxu0 0.0
    %4580 = vmatpush1.msra.mxu0 0.0
    %4581 = vmatprep.subr.mxu0 0.0
    %4582 = vmatpush1.msra.mxu0 0.0
    %4583 = vmatprep.subr.mxu0 0.0
    %4584 = vmatpush1.msra.mxu0 0.0
    %4585 = vmatprep.subr.mxu0 0.0
    %4586 = vmatpush1.msra.mxu0 0.0
    %4587 = vmatprep.subr.mxu0 0.0
    %4588 = vmatpush1.msra.mxu0 0.0
    %4589 = vmatprep.subr.mxu0 0.0
    %4590 = vmatpush1.msra.mxu0 0.0
    %4591 = vmatprep.subr.mxu0 0.0
    %4592 = vmatpush1.msra.mxu0 0.0
    %4593 = vmatprep.subr.mxu0 0.0
    %4594 = vmatpush1.msra.mxu0 0.0
    %4595 = vmatprep.subr.mxu0 0.0
    %4596 = vmatpush1.msra.mxu0 0.0
    %4597 = vmatprep.subr.mxu0 0.0
    %4598 = vmatpush1.msra.mxu0 0.0
    %4599 = vmatprep.subr.mxu0 0.0
    %4600 = vmatpush1.msra.mxu0 0.0
    %4601 = vmatprep.subr.mxu0 0.0
    %4602 = vmatpush1.msra.mxu0 0.0
    %4603 = vmatprep.subr.mxu0 0.0
    %4604 = vmatpush1.msra.mxu0 0.0
    %4605 = vmatprep.subr.mxu0 0.0
    %4606 = vmatpush1.msra.mxu0 0.0
    %4607 = vmatprep.subr.mxu0 0.0
    %4608 = vmatpush1.msra.mxu0 0.0
    %4609 = vmatprep.subr.mxu0 0.0
    %4610 = vmatpush1.msra.mxu0 0.0
    %4611 = vmatprep.subr.mxu0 0.0
    %4612 = vmatpush1.msra.mxu0 0.0
    %4613 = vmatprep.subr.mxu0 0.0
    %4614 = vmatpush1.msra.mxu0 0.0
    %4615 = vmatprep.subr.mxu0 0.0
    %4616 = vmatpush1.msra.mxu0 0.0
    %4617 = vmatprep.subr.mxu0 0.0
    %4618 = vmatpush1.msra.mxu0 0.0
    %4619 = vmatprep.subr.mxu0 0.0
    %4620 = vmatpush1.msra.mxu0 0.0
    %4621 = vmatprep.subr.mxu0 0.0
    %4622 = vmatpush1.msra.mxu0 0.0
    %4623 = vmatprep.mubr.f32.mxu0 0.0
    %4624 = vmatmul.mubr.f32.gmra.mrb[0].mxu0 %v4557
    %v4625 = vpop.f32.mrb[0].mxu0
    %v4626 = vadd.f32 0.0, %v4625
    %v4627 = vpop.f32.mrb[0].mxu0
    %4628 = vdwg.mxu0
    %v4629 = vtanh.pop %v3593
    %v4630 = vmul.f32 %v4629, 0.1
    %v4631 = vadd.f32 %v4630, %v4626
    %v4632 = vsel %vm3591, 1, 0
    %4633 = vset.pattern.permute.xlu0 0
    %4634 = vperm.xlu0 %4633, %v4632
    %v4635 = vpop.permute.xlu0 %4634
    %vm4636 = vcmp.eq.s32.totalorder %v4635, 1
    %v4637 = vsel %vm4636, %v4631, %v4629
    %v4638 = vsel %vm4636, %v3697, %v3592
    %s4639 = scalar_lea.vmem [#allocation15], 24
    %4640 = vst [vmem:[%s4639] sm:$0xff] %v4637
    %s4641 = scalar_lea.vmem [#allocation16], 24
    %4642 = vst [vmem:[%s4641] sm:$0xff] %v4638
    %4643 = vst [vmem:[#allocation2] sm:$0xff] %v4638
    %4644 = vst [vmem:[#allocation3] sm:$0xff] %v4637
    // Predicated region
    $region74: #{tpu_custom_call.1} parent=1 // pred_check
      _
    $region75: #{tpu_custom_call.1} parent=1 // pred_check_branch
      %4646 = sbr.rel (0) target = $region77
    $region76: #{tpu_custom_call.1} parent=1 // pred_region
      %s4648 = ssub.s32 512, 512
      %4649 = vsyncadd [#allocation6], %s4648
      %s4650 = sshll.u32 [#allocation15], 4
      %s4651 = int_to_ptr.vmem [resolvable:$true] %s4650
      %4656 = dma.vmem_to_hbm [thread:$0]  %s4651, 512, %s11, [#allocation6], 128, 128, 8
    $region77: #{tpu_custom_call.1} parent=1 // pred_fallthru
      _
    // Predicated region
    $region78: #{tpu_custom_call.1} parent=1 // pred_check
      _
    $region79: #{tpu_custom_call.1} parent=1 // pred_check_branch
      %4658 = sbr.rel (0) target = $region81
    $region80: #{tpu_custom_call.1} parent=1 // pred_region
      %s4660 = ssub.s32 512, 512
      %4661 = vsyncadd [#allocation17], %s4660
      %s4662 = sshll.u32 [#allocation16], 4
      %s4663 = int_to_ptr.vmem [resolvable:$true] %s4662
      %4668 = dma.vmem_to_hbm [thread:$0]  %s4663, 512, %s12, [#allocation17], 128, 128, 8
    $region81: #{tpu_custom_call.1} parent=1 // pred_fallthru
      _
    // Predicated region
    $region82: #{tpu_custom_call.1} parent=1 // pred_check
      _
    $region83: #{tpu_custom_call.1} parent=1 // pred_check_branch
      %4670 = sbr.rel (0) target = $region85
    $region84: #{tpu_custom_call.1} parent=1 // pred_region
      %4671 = dma.done [#allocation6], 512
    $region85: #{tpu_custom_call.1} parent=1 // pred_fallthru
      _
    // Predicated region
    $region86: #{tpu_custom_call.1} parent=1 // pred_check
      _
    $region87: #{tpu_custom_call.1} parent=1 // pred_check_branch
      %4673 = sbr.rel (0) target = $region89
    $region88: #{tpu_custom_call.1} parent=1 // pred_region
      %4674 = dma.done [#allocation17], 512
    $region89: #{tpu_custom_call.1} parent=1 // pred_fallthru
      _
    %4675 = vsyncpa [#allocation5], 1
    %4676 = vsyncpa [#allocation8], 1
    %4677 = vsyncpa [#allocation11], 1
    %4678 = vsyncpa [#allocation14], 1
    %4679 = vsyncpa [#allocation6], 1
    %4680 = vsyncpa [#allocation17], 1

</llo_original>
